<compile_context>
chip_gen: v5e
topology: v5e:2x2
jax: 0.10.0
libtpu: 0.0.40
codegen_flags: <defaults>
</compile_context>

<pallas_src>
import jax
import jax.numpy as jnp
from jax import lax
from jax.experimental import pallas as pl
from jax.experimental.pallas import tpu as pltpu

_SENTINEL = 1e30  # huge squared distance for padded points


def _round_up(x, m):
    return ((x + m - 1) // m) * m


def _make_kernel(N, M, TM, n_mt, n_nt, Np, cw, tw, rw, lw):
    cw = float(cw)
    tw = float(tw)
    rw = float(rw)
    lw = float(lw)
    inv_n = 1.0 / float(N)
    inv_m = 1.0 / float(M)
    n_steps = n_mt + n_nt

    def kernel(pred8_ref, gt8_ref, srcHT_ref, tgt_ref, out_ref,
               rhs_sc, g_sc, min_t_sc, min_g_sc, sum_t_sc, sum_g_sc):
        j = pl.program_id(1)

        # ---- per-batch init: build augmented RHS + tiled gt_ts scratch ------
        @pl.when(j == 0)
        def _init():
            src_ht = srcHT_ref[0]                      # (4, Np), pad columns are 0
            pred8 = pred8_ref[0]                       # (8, 4)
            gt8 = gt8_ref[0]                           # (8, 4)

            row = lax.broadcasted_iota(jnp.int32, (8, 1), 0)
            s3 = jnp.where(row == 3, 1.0, 0.0).astype(jnp.float32)
            s4 = jnp.where(row == 4, 1.0, 0.0).astype(jnp.float32)
            lane = lax.broadcasted_iota(jnp.int32, (8, Np), 1)
            lane_valid = lane < N

            # pred-transformed source (row 3 == 1 on valid lanes, 0 on pads)
            a = jnp.dot(pred8, src_ht, preferred_element_type=jnp.float32)   # (8, Np)
            aa = jnp.sum(a * a, axis=0, keepdims=True) - 1.0                 # (1, Np)
            # RHS columns: [-2ax, -2ay, -2az, 1, ||a||^2, 0, 0, 0]
            rhs = -2.0 * a + 3.0 * s3 + s4 * aa
            rhs_sc[...] = jnp.where(lane_valid, rhs, s4 * _SENTINEL)

            # gt-transformed source, augmented like the target points:
            # [gx, gy, gz, ||g||^2, 1, 0, 0, 0]; pad lanes become sentinel points.
            g = jnp.dot(gt8, src_ht, preferred_element_type=jnp.float32)     # (8, Np)
            gg = jnp.sum(g * g, axis=0, keepdims=True) - 1.0
            g_aug = g + s3 * (gg - 1.0) + s4
            g_aug = jnp.where(lane_valid, g_aug, s3 * _SENTINEL)
            for t in range(n_nt):                      # static unroll
                g_sc[t] = g_aug[:, t * TM:(t + 1) * TM]

            inf = jnp.full((1, Np), jnp.inf, jnp.float32)
            min_t_sc[...] = inf
            min_g_sc[...] = inf
            zero = jnp.zeros((1, 1), jnp.float32)
            sum_t_sc[...] = zero
            sum_g_sc[...] = zero

        # ---- streamed distance tile: target tiles, then gt_ts tiles ---------
        is_tgt = j < n_mt
        gt_idx = jnp.maximum(j - n_mt, 0)
        bt = jnp.where(is_tgt, tgt_ref[0], g_sc[gt_idx])         # (8, TM)

        # d[m, n] = ||b_m||^2 - 2 b_m . a_n + ||a_n||^2 via a single K=8 MXU pass.
        d = lax.dot_general(bt, rhs_sc[...],
                            dimension_numbers=(((0,), (0,)), ((), ())),
                            preferred_element_type=jnp.float32)   # (TM, Np)
        d = jnp.maximum(d, 0.0)

        col_min = jnp.min(d, axis=0, keepdims=True)    # (1, Np)  per-source min
        row_min = jnp.min(d, axis=1, keepdims=True)    # (TM, 1)  per-B-point min

        r = lax.broadcasted_iota(jnp.int32, (TM, 1), 0)
        limit = jnp.where(is_tgt, M - j * TM, N - gt_idx * TM)
        row_sum = jnp.sum(jnp.where(r < limit, row_min, 0.0),
                          axis=0, keepdims=True)        # (1, 1)

        @pl.when(is_tgt)
        def _acc_target():
            min_t_sc[...] = jnp.minimum(min_t_sc[...], col_min)
            sum_t_sc[...] += row_sum

        @pl.when(jnp.logical_not(is_tgt))
        def _acc_gt():
            min_g_sc[...] = jnp.minimum(min_g_sc[...], col_min)
            sum_g_sc[...] += row_sum

        # ---- finalize --------------------------------------------------------
        @pl.when(j == n_steps - 1)
        def _finalize():
            lane = lax.broadcasted_iota(jnp.int32, (1, Np), 1)
            lv = lane < N
            src_to_tgt = jnp.sum(jnp.where(lv, min_t_sc[...], 0.0),
                                 axis=1, keepdims=True)
            src_to_gts = jnp.sum(jnp.where(lv, min_g_sc[...], 0.0),
                                 axis=1, keepdims=True)
            chamfer = src_to_tgt * inv_n + sum_t_sc[...] * inv_m
            tch = src_to_gts * inv_n + sum_g_sc[...] * inv_n

            dt = pred8_ref[0] - gt8_ref[0]               # rows >= 3 are identical
            d2 = dt * dt
            rr = lax.broadcasted_iota(jnp.int32, (8, 4), 0)
            cc = lax.broadcasted_iota(jnp.int32, (8, 4), 1)
            rot_sq = jnp.where((rr < 3) & (cc < 3), d2, 0.0)
            tra_sq = jnp.where((rr < 3) & (cc == 3), d2, 0.0)
            rot = jnp.sqrt(jnp.sum(jnp.sum(rot_sq, axis=1, keepdims=True),
                                   axis=0, keepdims=True))
            tra = jnp.sqrt(jnp.sum(jnp.sum(tra_sq, axis=1, keepdims=True),
                                   axis=0, keepdims=True))
            transform = rw * rot + lw * tra
            total = cw * chamfer + tw * transform + 0.5 * tch

            col = lax.broadcasted_iota(jnp.int32, (1, 8), 1)
            packed = (jnp.where(col == 0, total, 0.0)
                      + jnp.where(col == 1, chamfer, 0.0)
                      + jnp.where(col == 2, transform, 0.0)
                      + jnp.where(col == 3, tch, 0.0))
            out_ref[...] = packed.reshape(1, 1, 8)

    return kernel


def combined_registration_loss(pred_transform, gt_transform,
                               source_points, target_points,
                               chamfer_weight=1.0, transform_weight=1.0,
                               rotation_weight=1.0, translation_weight=1.0,
                               m_tile=None):
    pred = pred_transform.astype(jnp.float32)
    gt = gt_transform.astype(jnp.float32)
    src = source_points.astype(jnp.float32)
    tgt = target_points.astype(jnp.float32)

    B, N, _ = src.shape
    M = tgt.shape[1]

    # Tile size for the streamed point axis (targets and gt-transformed source).
    n_lanes = _round_up(N, 128)
    if m_tile is None:
        # Keep the (TM, Np) distance + matmul-output temporaries within ~24 MiB
        # so the kernel also fits v7x's smaller VMEM, while amortizing the
        # ~0.35us/grid-step overhead with large tiles.
        budget = 24 << 20
        cap = (budget // (8 * n_lanes)) // 128 * 128
        m_tile = max(128, min(1024, cap, _round_up(max(M, N), 128)))
    TM = max(128, _round_up(int(m_tile), 128))

    n_mt = pl.cdiv(M, TM)
    n_nt = pl.cdiv(N, TM)
    M_pad = n_mt * TM
    Np = n_nt * TM
    n_steps = n_mt + n_nt

    # ---- layout plumbing (plain JAX) ----------------------------------------
    # Row 3 of the transforms is ignored by the module; force [0,0,0,1] so the
    # homogeneous trick inside the kernel is exact; pad to 8 rows for clean
    # sublane layout.
    last_row = jnp.broadcast_to(jnp.array([0., 0., 0., 1.], jnp.float32), (B, 1, 4))
    zero_rows = jnp.zeros((B, 4, 4), jnp.float32)
    pred8 = jnp.concatenate([pred[:, :3, :], last_row, zero_rows], axis=1)   # (B, 8, 4)
    gt8 = jnp.concatenate([gt[:, :3, :], last_row, zero_rows], axis=1)       # (B, 8, 4)

    # Homogeneous source, transposed to (B, 4, Np); pad columns are all-zero.
    src_h = jnp.concatenate([src, jnp.ones((B, N, 1), jnp.float32)], axis=2)
    src_ht = jnp.transpose(src_h, (0, 2, 1))                                 # (B, 4, N)
    if Np != N:
        src_ht = jnp.pad(src_ht, ((0, 0), (0, 0), (0, Np - N)))

    # Augmented target: columns [x, y, z, ||t||^2, 1, 0, 0, 0]; pad columns are
    # sentinel points [0, 0, 0, SENT, 0, 0, 0, 0] (huge distance to everything).
    tt = jnp.sum(tgt * tgt, axis=2, keepdims=True)
    tgt_aug = jnp.concatenate([tgt, tt, jnp.ones((B, M, 1), jnp.float32),
                               jnp.zeros((B, M, 3), jnp.float32)], axis=2)    # (B, M, 8)
    if M_pad != M:
        pad_col = jnp.zeros((8,), jnp.float32).at[3].set(_SENTINEL)
        pad_blk = jnp.broadcast_to(pad_col, (B, M_pad - M, 8))
        tgt_aug = jnp.concatenate([tgt_aug, pad_blk], axis=1)
    tgt_aug_t = jnp.transpose(tgt_aug, (0, 2, 1))                             # (B, 8, M_pad)

    kernel = _make_kernel(N, M, TM, n_mt, n_nt, Np,
                          chamfer_weight, transform_weight,
                          rotation_weight, translation_weight)

    grid_spec = pltpu.PrefetchScalarGridSpec(
        num_scalar_prefetch=0,
        grid=(B, n_steps),
        in_specs=[
            pl.BlockSpec((1, 8, 4), lambda b, j: (b, 0, 0)),     # pred (padded 8x4)
            pl.BlockSpec((1, 8, 4), lambda b, j: (b, 0, 0)),     # gt   (padded 8x4)
            pl.BlockSpec((1, 4, Np), lambda b, j: (b, 0, 0)),    # homogeneous source^T
            pl.BlockSpec((1, 8, TM),                             # augmented target tile
                         lambda b, j: (b, 0, jnp.minimum(j, n_mt - 1))),
        ],
        out_specs=pl.BlockSpec((1, 1, 8), lambda b, j: (b, 0, 0)),
        scratch_shapes=[
            pltpu.VMEM((8, Np), jnp.float32),        # augmented RHS (pred_ts)
            pltpu.VMEM((n_nt, 8, TM), jnp.float32),  # tiled augmented gt_ts
            pltpu.VMEM((1, Np), jnp.float32),        # running min: src -> target
            pltpu.VMEM((1, Np), jnp.float32),        # running min: src -> gt_ts
            pltpu.VMEM((1, 1), jnp.float32),         # sum of target-side mins
            pltpu.VMEM((1, 1), jnp.float32),         # sum of gt_ts-side mins
        ],
    )

    # Explicit VMEM budget: the (TM, Np) distance tile + matmul output dominate.
    vmem_needed = 4 * (2 * TM * Np + 2 * 8 * Np + n_nt * 8 * TM
                       + 2 * 4 * Np + 4 * 8 * TM + 4 * Np)
    vmem_limit = int(min(max(vmem_needed + vmem_needed // 4 + (4 << 20),
                             32 << 20), 64 << 20))

    flops = int(B * (2 * 8 * (M_pad + Np) * Np + 2 * 2 * 8 * 4 * Np))
    bytes_accessed = int(4 * B * (2 * 32 + 4 * Np + 8 * M_pad + 8))

    out = pl.pallas_call(
        kernel,
        out_shape=jax.ShapeDtypeStruct((B, 1, 8), jnp.float32),
        grid_spec=grid_spec,
        compiler_params=pltpu.CompilerParams(
            dimension_semantics=("parallel", "arbitrary"),
            vmem_limit_bytes=vmem_limit),
        cost_estimate=pl.CostEstimate(flops=flops, transcendentals=2 * B,
                                      bytes_accessed=bytes_accessed),
    )(pred8, gt8, src_ht, tgt_aug_t)

    # Glue: mean over batch (matches PyTorch .mean()).
    res = out[:, 0, :]
    return {
        "total_loss": jnp.mean(res[:, 0]),
        "chamfer_loss": jnp.mean(res[:, 1]),
        "transform_loss": jnp.mean(res[:, 2]),
        "transform_chamfer_loss": jnp.mean(res[:, 3]),
    }


def _reference_jax(pred, gt, src, tgt):
    """Pure-JAX reference reproducing the PyTorch module, for verification."""
    B, N, _ = src.shape
    ones = jnp.ones((B, N, 1), jnp.float32)
    src_h = jnp.concatenate([src, ones], axis=2)                       # (B, N, 4)
    pred_ts = jnp.einsum("bnk,bjk->bnj", src_h, pred)[:, :, :3]
    gt_ts = jnp.einsum("bnk,bjk->bnj", src_h, gt)[:, :, :3]

    def chamfer(a, b):
        d = jnp.sum((a[:, :, None, :] - b[:, None, :, :]) ** 2, axis=3)
        return jnp.mean(jnp.min(d, axis=2), axis=1) + jnp.mean(jnp.min(d, axis=1), axis=1)

    cl = chamfer(pred_ts, tgt)
    tcl = chamfer(pred_ts, gt_ts)
    rl = jnp.linalg.norm((pred[:, :3, :3] - gt[:, :3, :3]).reshape(B, -1), axis=1)
    tl = jnp.linalg.norm(pred[:, :3, 3] - gt[:, :3, 3], axis=1)
    trans = rl + tl
    total = cl + trans + 0.5 * tcl
    return {
        "total_loss": total.mean(),
        "chamfer_loss": cl.mean(),
        "transform_loss": trans.mean(),
        "transform_chamfer_loss": tcl.mean(),
    }


if __name__ == "__main__":
    key = jax.random.PRNGKey(0)
    k1, k2, k3, k4 = jax.random.split(key, 4)

    # N=300, M=450: with m_tile=128 this exercises multiple target tiles,
    # multiple gt_ts tiles, ragged last tiles and the clamped index map.
    B, N, M = 2, 300, 450
    source_points = jax.random.normal(k1, (B, N, 3), dtype=jnp.float32)
    target_points = jax.random.normal(k2, (B, M, 3), dtype=jnp.float32)

    # Random 4x4 transforms; the module (and this kernel) ignore row 3.
    pred_transform = jax.random.normal(k3, (B, 4, 4), dtype=jnp.float32)
    gt_transform = jax.random.normal(k4, (B, 4, 4), dtype=jnp.float32)

    ref = _reference_jax(pred_transform, gt_transform, source_points, target_points)

    for mt in (None, 128):   # default (single-tile) and forced multi-tile paths
        out = combined_registration_loss(pred_transform, gt_transform,
                                         source_points, target_points, m_tile=mt)
        out = jax.tree_util.tree_map(jax.block_until_ready, out)
        for name in sorted(out):
            assert jnp.allclose(out[name], ref[name], rtol=1e-3, atol=1e-3), \
                (mt, name, out[name], ref[name])

    print("KERNEL_OK")
</pallas_src>

<mosaic_0001>
module attributes {stable_mosaic.version = 11 : i64} {
  func.func @kernel(%arg0: i32, %arg1: i32, %arg2: memref<1x8x4xf32, #tpu.memory_space<vmem>>, %arg3: memref<1x8x4xf32, #tpu.memory_space<vmem>>, %arg4: memref<1x4x512xf32, #tpu.memory_space<vmem>>, %arg5: memref<1x8x512xf32, #tpu.memory_space<vmem>>, %arg6: memref<1x1x8xf32, #tpu.memory_space<vmem>>, %arg7: memref<8x512xf32, #tpu.memory_space<vmem>>, %arg8: memref<1x8x512xf32, #tpu.memory_space<vmem>>, %arg9: memref<1x512xf32, #tpu.memory_space<vmem>>, %arg10: memref<1x512xf32, #tpu.memory_space<vmem>>, %arg11: memref<1x1xf32, #tpu.memory_space<vmem>>, %arg12: memref<1x1xf32, #tpu.memory_space<vmem>>) attributes {dimension_semantics = [#tpu.dimension_semantics<parallel>, #tpu.dimension_semantics<arbitrary>], iteration_bounds = array<i64: 2, 2>, scalar_prefetch = 0 : i64, scratch_operands = 6 : i64, tpu.core_type = #tpu.core_type<tc>, window_params = [{transform_indices = @transform_0, window_bounds = array<i64: 1, 8, 4>}, {transform_indices = @transform_1, window_bounds = array<i64: 1, 8, 4>}, {transform_indices = @transform_2, window_bounds = array<i64: 1, 4, 512>}, {transform_indices = @transform_3, window_bounds = array<i64: 1, 8, 512>}, {transform_indices = @transform_4, window_bounds = array<i64: 1, 1, 8>}]} {
    %c0_i32 = arith.constant 0 : i32
    %0 = arith.cmpi eq, %arg1, %c0_i32 : i32
    %1 = arith.extui %0 : i1 to i32
    %c0_i32_0 = arith.constant 0 : i32
    %2 = arith.cmpi ne, %1, %c0_i32_0 : i32
    scf.if %2 {
      %c0_19 = arith.constant 0 : index
      %c0_20 = arith.constant 0 : index
      %c0_21 = arith.constant 0 : index
      %40 = vector.load %arg4[%c0_19, %c0_20, %c0_21] : memref<1x4x512xf32, #tpu.memory_space<vmem>>, vector<1x4x512xf32>
      %41 = vector.shape_cast %40 : vector<1x4x512xf32> to vector<4x512xf32>
      %c0_22 = arith.constant 0 : index
      %c0_23 = arith.constant 0 : index
      %c0_24 = arith.constant 0 : index
      %42 = vector.load %arg2[%c0_22, %c0_23, %c0_24] : memref<1x8x4xf32, #tpu.memory_space<vmem>>, vector<1x8x4xf32>
      %43 = vector.shape_cast %42 : vector<1x8x4xf32> to vector<8x4xf32>
      %c0_25 = arith.constant 0 : index
      %c0_26 = arith.constant 0 : index
      %c0_27 = arith.constant 0 : index
      %44 = vector.load %arg3[%c0_25, %c0_26, %c0_27] : memref<1x8x4xf32, #tpu.memory_space<vmem>>, vector<1x8x4xf32>
      %45 = vector.shape_cast %44 : vector<1x8x4xf32> to vector<8x4xf32>
      %46 = tpu.iota {dimensions = array<i32: 0>} : vector<8x1xi32>
      %c3_i32 = arith.constant 3 : i32
      %47 = vector.broadcast %c3_i32 : i32 to vector<8x1xi32>
      %48 = arith.cmpi eq, %46, %47 : vector<8x1xi32>
      %cst_28 = arith.constant 1.000000e+00 : f32
      %cst_29 = arith.constant 0.000000e+00 : f32
      %49 = vector.broadcast %cst_28 : f32 to vector<8x1xf32>
      %50 = vector.broadcast %cst_29 : f32 to vector<8x1xf32>
      %51 = arith.select %48, %49, %50 : vector<8x1xi1>, vector<8x1xf32>
      %c4_i32 = arith.constant 4 : i32
      %52 = vector.broadcast %c4_i32 : i32 to vector<8x1xi32>
      %53 = arith.cmpi eq, %46, %52 : vector<8x1xi32>
      %cst_30 = arith.constant 1.000000e+00 : f32
      %cst_31 = arith.constant 0.000000e+00 : f32
      %54 = vector.broadcast %cst_30 : f32 to vector<8x1xf32>
      %55 = vector.broadcast %cst_31 : f32 to vector<8x1xf32>
      %56 = arith.select %53, %54, %55 : vector<8x1xi1>, vector<8x1xf32>
      %57 = tpu.iota {dimensions = array<i32: 1>} : vector<8x512xi32>
      %c300_i32_32 = arith.constant 300 : i32
      %58 = vector.broadcast %c300_i32_32 : i32 to vector<8x512xi32>
      %59 = arith.cmpi slt, %57, %58 : vector<8x512xi32>
      %cst_33 = arith.constant dense<0.000000e+00> : vector<8x512xf32>
      %60 = tpu.matmul %43, %41, %cst_33 {dimension_numbers = #tpu.dot_dimension_numbers<[1], [0], [0], [1], [0, 0, 1, 1], [], []>} : vector<8x4xf32>, vector<4x512xf32>, vector<8x512xf32> -> vector<8x512xf32>
      %61 = arith.mulf %60, %60 : vector<8x512xf32>
      %cst_34 = arith.constant dense<0.000000e+00> : vector<512xf32>
      %62 = vector.multi_reduction <add>, %61, %cst_34 [0] : vector<8x512xf32> to vector<512xf32>
      %63 = vector.shape_cast %62 : vector<512xf32> to vector<1x512xf32>
      %cst_35 = arith.constant 1.000000e+00 : f32
      %64 = vector.broadcast %cst_35 : f32 to vector<1x512xf32>
      %65 = arith.subf %63, %64 : vector<1x512xf32>
      %cst_36 = arith.constant -2.000000e+00 : f32
      %66 = vector.broadcast %cst_36 : f32 to vector<8x512xf32>
      %67 = arith.mulf %66, %60 : vector<8x512xf32>
      %cst_37 = arith.constant 3.000000e+00 : f32
      %68 = vector.broadcast %cst_37 : f32 to vector<8x1xf32>
      %69 = arith.mulf %68, %51 : vector<8x1xf32>
      %70 = vector.broadcast %69 : vector<8x1xf32> to vector<8x512xf32>
      %71 = arith.addf %67, %70 : vector<8x512xf32>
      %72 = vector.broadcast %56 : vector<8x1xf32> to vector<8x512xf32>
      %73 = vector.broadcast %65 : vector<1x512xf32> to vector<8x512xf32>
      %74 = arith.mulf %72, %73 : vector<8x512xf32>
      %75 = arith.addf %71, %74 : vector<8x512xf32>
      %cst_38 = arith.constant 1.000000e+30 : f32
      %76 = vector.broadcast %cst_38 : f32 to vector<8x1xf32>
      %77 = arith.mulf %56, %76 : vector<8x1xf32>
      %78 = vector.shape_cast %77 : vector<8x1xf32> to vector<8x1xf32>
      %79 = vector.broadcast %78 : vector<8x1xf32> to vector<8x512xf32>
      %80 = arith.select %59, %75, %79 : vector<8x512xi1>, vector<8x512xf32>
      %c0_39 = arith.constant 0 : index
      %c0_40 = arith.constant 0 : index
      %81 = vector.load %arg7[%c0_39, %c0_40] : memref<8x512xf32, #tpu.memory_space<vmem>>, vector<8x512xf32>
      tpu.vector_store %arg7[%c0_39, %c0_40], %80 {strides = array<i32>} : memref<8x512xf32, #tpu.memory_space<vmem>>, vector<8x512xf32>,
      %cst_41 = arith.constant dense<0.000000e+00> : vector<8x512xf32>
      %82 = tpu.matmul %45, %41, %cst_41 {dimension_numbers = #tpu.dot_dimension_numbers<[1], [0], [0], [1], [0, 0, 1, 1], [], []>} : vector<8x4xf32>, vector<4x512xf32>, vector<8x512xf32> -> vector<8x512xf32>
      %83 = arith.mulf %82, %82 : vector<8x512xf32>
      %cst_42 = arith.constant dense<0.000000e+00> : vector<512xf32>
      %84 = vector.multi_reduction <add>, %83, %cst_42 [0] : vector<8x512xf32> to vector<512xf32>
      %85 = vector.shape_cast %84 : vector<512xf32> to vector<1x512xf32>
      %cst_43 = arith.constant 1.000000e+00 : f32
      %86 = vector.broadcast %cst_43 : f32 to vector<1x512xf32>
      %87 = arith.subf %85, %86 : vector<1x512xf32>
      %cst_44 = arith.constant 1.000000e+00 : f32
      %88 = vector.broadcast %cst_44 : f32 to vector<1x512xf32>
      %89 = arith.subf %87, %88 : vector<1x512xf32>
      %90 = vector.broadcast %51 : vector<8x1xf32> to vector<8x512xf32>
      %91 = vector.broadcast %89 : vector<1x512xf32> to vector<8x512xf32>
      %92 = arith.mulf %90, %91 : vector<8x512xf32>
      %93 = arith.addf %82, %92 : vector<8x512xf32>
      %94 = vector.broadcast %56 : vector<8x1xf32> to vector<8x512xf32>
      %95 = arith.addf %93, %94 : vector<8x512xf32>
      %cst_45 = arith.constant 1.000000e+30 : f32
      %96 = vector.broadcast %cst_45 : f32 to vector<8x1xf32>
      %97 = arith.mulf %51, %96 : vector<8x1xf32>
      %98 = vector.shape_cast %97 : vector<8x1xf32> to vector<8x1xf32>
      %99 = vector.broadcast %98 : vector<8x1xf32> to vector<8x512xf32>
      %100 = arith.select %59, %95, %99 : vector<8x512xi1>, vector<8x512xf32>
      %c0_46 = arith.constant 0 : index
      %c0_47 = arith.constant 0 : index
      %c0_48 = arith.constant 0 : index
      %101 = vector.load %arg8[%c0_46, %c0_47, %c0_48] : memref<1x8x512xf32, #tpu.memory_space<vmem>>, vector<1x8x512xf32>
      %102 = vector.shape_cast %101 : vector<1x8x512xf32> to vector<8x512xf32>
      %103 = vector.shape_cast %100 : vector<8x512xf32> to vector<1x8x512xf32>
      tpu.vector_store %arg8[%c0_46, %c0_47, %c0_48], %103 {strides = array<i32>} : memref<1x8x512xf32, #tpu.memory_space<vmem>>, vector<1x8x512xf32>,
      %cst_49 = arith.constant 0x7F800000 : f32
      %104 = vector.broadcast %cst_49 : f32 to vector<1x512xf32>
      %c0_50 = arith.constant 0 : index
      %c0_51 = arith.constant 0 : index
      %105 = vector.load %arg9[%c0_50, %c0_51] : memref<1x512xf32, #tpu.memory_space<vmem>>, vector<1x512xf32>
      tpu.vector_store %arg9[%c0_50, %c0_51], %104 {strides = array<i32>} : memref<1x512xf32, #tpu.memory_space<vmem>>, vector<1x512xf32>,
      %c0_52 = arith.constant 0 : index
      %c0_53 = arith.constant 0 : index
      %106 = vector.load %arg10[%c0_52, %c0_53] : memref<1x512xf32, #tpu.memory_space<vmem>>, vector<1x512xf32>
      tpu.vector_store %arg10[%c0_52, %c0_53], %104 {strides = array<i32>} : memref<1x512xf32, #tpu.memory_space<vmem>>, vector<1x512xf32>,
      %cst_54 = arith.constant 0.000000e+00 : f32
      %107 = vector.broadcast %cst_54 : f32 to vector<1x1xf32>
      %c0_55 = arith.constant 0 : index
      %c0_56 = arith.constant 0 : index
      %108 = vector.load %arg11[%c0_55, %c0_56] : memref<1x1xf32, #tpu.memory_space<vmem>>, vector<1x1xf32>
      tpu.vector_store %arg11[%c0_55, %c0_56], %107 {strides = array<i32>} : memref<1x1xf32, #tpu.memory_space<vmem>>, vector<1x1xf32>,
      %c0_57 = arith.constant 0 : index
      %c0_58 = arith.constant 0 : index
      %109 = vector.load %arg12[%c0_57, %c0_58] : memref<1x1xf32, #tpu.memory_space<vmem>>, vector<1x1xf32>
      tpu.vector_store %arg12[%c0_57, %c0_58], %107 {strides = array<i32>} : memref<1x1xf32, #tpu.memory_space<vmem>>, vector<1x1xf32>,
    } else {
    }
    %c1_i32 = arith.constant 1 : i32
    %3 = arith.cmpi slt, %arg1, %c1_i32 : i32
    %c1_i32_1 = arith.constant 1 : i32
    %4 = arith.subi %arg1, %c1_i32_1 : i32
    %c0_i32_2 = arith.constant 0 : i32
    %5 = arith.maxsi %4, %c0_i32_2 : i32
    %c0 = arith.constant 0 : index
    %c0_3 = arith.constant 0 : index
    %c0_4 = arith.constant 0 : index
    %6 = vector.load %arg5[%c0, %c0_3, %c0_4] : memref<1x8x512xf32, #tpu.memory_space<vmem>>, vector<1x8x512xf32>
    %7 = vector.shape_cast %6 : vector<1x8x512xf32> to vector<8x512xf32>
    %8 = arith.index_cast %5 : i32 to index
    %c0_5 = arith.constant 0 : index
    %c0_6 = arith.constant 0 : index
    %9 = vector.load %arg8[%8, %c0_5, %c0_6] : memref<1x8x512xf32, #tpu.memory_space<vmem>>, vector<1x8x512xf32>
    %10 = vector.shape_cast %9 : vector<1x8x512xf32> to vector<8x512xf32>
    %11 = arith.select %3, %7, %10 : vector<8x512xf32>
    %c0_7 = arith.constant 0 : index
    %c0_8 = arith.constant 0 : index
    %12 = vector.load %arg7[%c0_7, %c0_8] : memref<8x512xf32, #tpu.memory_space<vmem>>, vector<8x512xf32>
    %cst = arith.constant dense<0.000000e+00> : vector<512x512xf32>
    %13 = tpu.matmul %11, %12, %cst {dimension_numbers = #tpu.dot_dimension_numbers<[0], [0], [1], [1], [0, 1, 1, 1], [], []>} : vector<8x512xf32>, vector<8x512xf32>, vector<512x512xf32> -> vector<512x512xf32>
    %cst_9 = arith.constant 0.000000e+00 : f32
    %14 = vector.broadcast %cst_9 : f32 to vector<512x512xf32>
    %15 = arith.maximumf %13, %14 : vector<512x512xf32>
    %cst_10 = arith.constant dense<0x7F800000> : vector<512xf32>
    %16 = vector.multi_reduction <minimumf>, %15, %cst_10 [0] : vector<512x512xf32> to vector<512xf32>
    %17 = vector.shape_cast %16 : vector<512xf32> to vector<1x512xf32>
    %cst_11 = arith.constant dense<0x7F800000> : vector<512xf32>
    %18 = vector.multi_reduction <minimumf>, %15, %cst_11 [1] : vector<512x512xf32> to vector<512xf32>
    %19 = vector.shape_cast %18 : vector<512xf32> to vector<512x1xf32>
    %20 = tpu.iota {dimensions = array<i32: 0>} : vector<512x1xi32>
    %c512_i32 = arith.constant 512 : i32
    %21 = arith.muli %arg1, %c512_i32 : i32
    %c450_i32 = arith.constant 450 : i32
    %22 = arith.subi %c450_i32, %21 : i32
    %c512_i32_12 = arith.constant 512 : i32
    %23 = arith.muli %5, %c512_i32_12 : i32
    %c300_i32 = arith.constant 300 : i32
    %24 = arith.subi %c300_i32, %23 : i32
    %25 = arith.select %3, %22, %24 : i32
    %26 = vector.broadcast %25 : i32 to vector<512x1xi32>
    %27 = arith.cmpi slt, %20, %26 : vector<512x1xi32>
    %cst_13 = arith.constant 0.000000e+00 : f32
    %28 = vector.broadcast %cst_13 : f32 to vector<512x1xf32>
    %29 = arith.select %27, %19, %28 : vector<512x1xi1>, vector<512x1xf32>
    %cst_14 = arith.constant dense<0.000000e+00> : vector<1xf32>
    %30 = vector.multi_reduction <add>, %29, %cst_14 [0] : vector<512x1xf32> to vector<1xf32>
    %31 = vector.shape_cast %30 : vector<1xf32> to vector<1x1xf32>
    %32 = arith.extui %3 : i1 to i32
    %c0_i32_15 = arith.constant 0 : i32
    %33 = arith.cmpi ne, %32, %c0_i32_15 : i32
    scf.if %33 {
      %c0_19 = arith.constant 0 : index
      %c0_20 = arith.constant 0 : index
      %40 = vector.load %arg9[%c0_19, %c0_20] : memref<1x512xf32, #tpu.memory_space<vmem>>, vector<1x512xf32>
      %41 = arith.minimumf %40, %17 : vector<1x512xf32>
      %c0_21 = arith.constant 0 : index
      %c0_22 = arith.constant 0 : index
      %42 = vector.load %arg9[%c0_21, %c0_22] : memref<1x512xf32, #tpu.memory_space<vmem>>, vector<1x512xf32>
      tpu.vector_store %arg9[%c0_21, %c0_22], %41 {strides = array<i32>} : memref<1x512xf32, #tpu.memory_space<vmem>>, vector<1x512xf32>,
      %c0_23 = arith.constant 0 : index
      %c0_24 = arith.constant 0 : index
      %43 = vector.load %arg11[%c0_23, %c0_24] : memref<1x1xf32, #tpu.memory_space<vmem>>, vector<1x1xf32>
      %44 = arith.addf %43, %31 : vector<1x1xf32>
      %c0_25 = arith.constant 0 : index
      %c0_26 = arith.constant 0 : index
      %45 = vector.load %arg11[%c0_25, %c0_26] : memref<1x1xf32, #tpu.memory_space<vmem>>, vector<1x1xf32>
      tpu.vector_store %arg11[%c0_25, %c0_26], %44 {strides = array<i32>} : memref<1x1xf32, #tpu.memory_space<vmem>>, vector<1x1xf32>,
    } else {
    }
    %true = arith.constant true
    %34 = arith.xori %3, %true : i1
    %35 = arith.extui %34 : i1 to i32
    %c0_i32_16 = arith.constant 0 : i32
    %36 = arith.cmpi ne, %35, %c0_i32_16 : i32
    scf.if %36 {
      %c0_19 = arith.constant 0 : index
      %c0_20 = arith.constant 0 : index
      %40 = vector.load %arg10[%c0_19, %c0_20] : memref<1x512xf32, #tpu.memory_space<vmem>>, vector<1x512xf32>
      %41 = arith.minimumf %40, %17 : vector<1x512xf32>
      %c0_21 = arith.constant 0 : index
      %c0_22 = arith.constant 0 : index
      %42 = vector.load %arg10[%c0_21, %c0_22] : memref<1x512xf32, #tpu.memory_space<vmem>>, vector<1x512xf32>
      tpu.vector_store %arg10[%c0_21, %c0_22], %41 {strides = array<i32>} : memref<1x512xf32, #tpu.memory_space<vmem>>, vector<1x512xf32>,
      %c0_23 = arith.constant 0 : index
      %c0_24 = arith.constant 0 : index
      %43 = vector.load %arg12[%c0_23, %c0_24] : memref<1x1xf32, #tpu.memory_space<vmem>>, vector<1x1xf32>
      %44 = arith.addf %43, %31 : vector<1x1xf32>
      %c0_25 = arith.constant 0 : index
      %c0_26 = arith.constant 0 : index
      %45 = vector.load %arg12[%c0_25, %c0_26] : memref<1x1xf32, #tpu.memory_space<vmem>>, vector<1x1xf32>
      tpu.vector_store %arg12[%c0_25, %c0_26], %44 {strides = array<i32>} : memref<1x1xf32, #tpu.memory_space<vmem>>, vector<1x1xf32>,
    } else {
    }
    %c1_i32_17 = arith.constant 1 : i32
    %37 = arith.cmpi eq, %arg1, %c1_i32_17 : i32
    %38 = arith.extui %37 : i1 to i32
    %c0_i32_18 = arith.constant 0 : i32
    %39 = arith.cmpi ne, %38, %c0_i32_18 : i32
    scf.if %39 {
      %40 = tpu.iota {dimensions = array<i32: 1>} : vector<1x512xi32>
      %c300_i32_19 = arith.constant 300 : i32
      %41 = vector.broadcast %c300_i32_19 : i32 to vector<1x512xi32>
      %42 = arith.cmpi slt, %40, %41 : vector<1x512xi32>
      %c0_20 = arith.constant 0 : index
      %c0_21 = arith.constant 0 : index
      %43 = vector.load %arg9[%c0_20, %c0_21] : memref<1x512xf32, #tpu.memory_space<vmem>>, vector<1x512xf32>
      %cst_22 = arith.constant 0.000000e+00 : f32
      %44 = vector.broadcast %cst_22 : f32 to vector<1x512xf32>
      %45 = arith.select %42, %43, %44 : vector<1x512xi1>, vector<1x512xf32>
      %cst_23 = arith.constant dense<0.000000e+00> : vector<1xf32>
      %46 = vector.multi_reduction <add>, %45, %cst_23 [1] : vector<1x512xf32> to vector<1xf32>
      %47 = vector.shape_cast %46 : vector<1xf32> to vector<1x1xf32>
      %c0_24 = arith.constant 0 : index
      %c0_25 = arith.constant 0 : index
      %48 = vector.load %arg10[%c0_24, %c0_25] : memref<1x512xf32, #tpu.memory_space<vmem>>, vector<1x512xf32>
      %cst_26 = arith.constant 0.000000e+00 : f32
      %49 = vector.broadcast %cst_26 : f32 to vector<1x512xf32>
      %50 = arith.select %42, %48, %49 : vector<1x512xi1>, vector<1x512xf32>
      %cst_27 = arith.constant dense<0.000000e+00> : vector<1xf32>
      %51 = vector.multi_reduction <add>, %50, %cst_27 [1] : vector<1x512xf32> to vector<1xf32>
      %52 = vector.shape_cast %51 : vector<1xf32> to vector<1x1xf32>
      %cst_28 = arith.constant 0.00333333341 : f32
      %53 = vector.broadcast %cst_28 : f32 to vector<1x1xf32>
      %54 = arith.mulf %47, %53 : vector<1x1xf32>
      %c0_29 = arith.constant 0 : index
      %c0_30 = arith.constant 0 : index
      %55 = vector.load %arg11[%c0_29, %c0_30] : memref<1x1xf32, #tpu.memory_space<vmem>>, vector<1x1xf32>
      %cst_31 = arith.constant 0.00222222228 : f32
      %56 = vector.broadcast %cst_31 : f32 to vector<1x1xf32>
      %57 = arith.mulf %55, %56 : vector<1x1xf32>
      %58 = arith.addf %54, %57 : vector<1x1xf32>
      %cst_32 = arith.constant 0.00333333341 : f32
      %59 = vector.broadcast %cst_32 : f32 to vector<1x1xf32>
      %60 = arith.mulf %52, %59 : vector<1x1xf32>
      %c0_33 = arith.constant 0 : index
      %c0_34 = arith.constant 0 : index
      %61 = vector.load %arg12[%c0_33, %c0_34] : memref<1x1xf32, #tpu.memory_space<vmem>>, vector<1x1xf32>
      %cst_35 = arith.constant 0.00333333341 : f32
      %62 = vector.broadcast %cst_35 : f32 to vector<1x1xf32>
      %63 = arith.mulf %61, %62 : vector<1x1xf32>
      %64 = arith.addf %60, %63 : vector<1x1xf32>
      %c0_36 = arith.constant 0 : index
      %c0_37 = arith.constant 0 : index
      %c0_38 = arith.constant 0 : index
      %65 = vector.load %arg2[%c0_36, %c0_37, %c0_38] : memref<1x8x4xf32, #tpu.memory_space<vmem>>, vector<1x8x4xf32>
      %66 = vector.shape_cast %65 : vector<1x8x4xf32> to vector<8x4xf32>
      %c0_39 = arith.constant 0 : index
      %c0_40 = arith.constant 0 : index
      %c0_41 = arith.constant 0 : index
      %67 = vector.load %arg3[%c0_39, %c0_40, %c0_41] : memref<1x8x4xf32, #tpu.memory_space<vmem>>, vector<1x8x4xf32>
      %68 = vector.shape_cast %67 : vector<1x8x4xf32> to vector<8x4xf32>
      %69 = arith.subf %66, %68 : vector<8x4xf32>
      %70 = arith.mulf %69, %69 : vector<8x4xf32>
      %71 = tpu.iota {dimensions = array<i32: 0>} : vector<8x4xi32>
      %72 = tpu.iota {dimensions = array<i32: 1>} : vector<8x4xi32>
      %c3_i32 = arith.constant 3 : i32
      %73 = vector.broadcast %c3_i32 : i32 to vector<8x4xi32>
      %74 = arith.cmpi slt, %71, %73 : vector<8x4xi32>
      %c3_i32_42 = arith.constant 3 : i32
      %75 = vector.broadcast %c3_i32_42 : i32 to vector<8x4xi32>
      %76 = arith.cmpi slt, %72, %75 : vector<8x4xi32>
      %77 = arith.andi %74, %76 : vector<8x4xi1>
      %cst_43 = arith.constant 0.000000e+00 : f32
      %78 = vector.broadcast %cst_43 : f32 to vector<8x4xf32>
      %79 = arith.select %77, %70, %78 : vector<8x4xi1>, vector<8x4xf32>
      %c3_i32_44 = arith.constant 3 : i32
      %80 = vector.broadcast %c3_i32_44 : i32 to vector<8x4xi32>
      %81 = arith.cmpi slt, %71, %80 : vector<8x4xi32>
      %c3_i32_45 = arith.constant 3 : i32
      %82 = vector.broadcast %c3_i32_45 : i32 to vector<8x4xi32>
      %83 = arith.cmpi eq, %72, %82 : vector<8x4xi32>
      %84 = arith.andi %81, %83 : vector<8x4xi1>
      %cst_46 = arith.constant 0.000000e+00 : f32
      %85 = vector.broadcast %cst_46 : f32 to vector<8x4xf32>
      %86 = arith.select %84, %70, %85 : vector<8x4xi1>, vector<8x4xf32>
      %cst_47 = arith.constant dense<0.000000e+00> : vector<8xf32>
      %87 = vector.multi_reduction <add>, %79, %cst_47 [1] : vector<8x4xf32> to vector<8xf32>
      %88 = vector.shape_cast %87 : vector<8xf32> to vector<8x1xf32>
      %cst_48 = arith.constant dense<0.000000e+00> : vector<1xf32>
      %89 = vector.multi_reduction <add>, %88, %cst_48 [0] : vector<8x1xf32> to vector<1xf32>
      %90 = vector.shape_cast %89 : vector<1xf32> to vector<1x1xf32>
      %91 = math.sqrt %90 : vector<1x1xf32>
      %cst_49 = arith.constant dense<0.000000e+00> : vector<8xf32>
      %92 = vector.multi_reduction <add>, %86, %cst_49 [1] : vector<8x4xf32> to vector<8xf32>
      %93 = vector.shape_cast %92 : vector<8xf32> to vector<8x1xf32>
      %cst_50 = arith.constant dense<0.000000e+00> : vector<1xf32>
      %94 = vector.multi_reduction <add>, %93, %cst_50 [0] : vector<8x1xf32> to vector<1xf32>
      %95 = vector.shape_cast %94 : vector<1xf32> to vector<1x1xf32>
      %96 = math.sqrt %95 : vector<1x1xf32>
      %cst_51 = arith.constant 1.000000e+00 : f32
      %97 = vector.broadcast %cst_51 : f32 to vector<1x1xf32>
      %98 = arith.mulf %97, %91 : vector<1x1xf32>
      %cst_52 = arith.constant 1.000000e+00 : f32
      %99 = vector.broadcast %cst_52 : f32 to vector<1x1xf32>
      %100 = arith.mulf %99, %96 : vector<1x1xf32>
      %101 = arith.addf %98, %100 : vector<1x1xf32>
      %cst_53 = arith.constant 1.000000e+00 : f32
      %102 = vector.broadcast %cst_53 : f32 to vector<1x1xf32>
      %103 = arith.mulf %102, %58 : vector<1x1xf32>
      %cst_54 = arith.constant 1.000000e+00 : f32
      %104 = vector.broadcast %cst_54 : f32 to vector<1x1xf32>
      %105 = arith.mulf %104, %101 : vector<1x1xf32>
      %106 = arith.addf %103, %105 : vector<1x1xf32>
      %cst_55 = arith.constant 5.000000e-01 : f32
      %107 = vector.broadcast %cst_55 : f32 to vector<1x1xf32>
      %108 = arith.mulf %107, %64 : vector<1x1xf32>
      %109 = arith.addf %106, %108 : vector<1x1xf32>
      %110 = tpu.iota {dimensions = array<i32: 1>} : vector<1x8xi32>
      %c0_i32_56 = arith.constant 0 : i32
      %111 = vector.broadcast %c0_i32_56 : i32 to vector<1x8xi32>
      %112 = arith.cmpi eq, %110, %111 : vector<1x8xi32>
      %cst_57 = arith.constant 0.000000e+00 : f32
      %113 = vector.shape_cast %109 : vector<1x1xf32> to vector<1x1xf32>
      %114 = vector.broadcast %113 : vector<1x1xf32> to vector<1x8xf32>
      %115 = vector.broadcast %cst_57 : f32 to vector<1x8xf32>
      %116 = arith.select %112, %114, %115 : vector<1x8xi1>, vector<1x8xf32>
      %c1_i32_58 = arith.constant 1 : i32
      %117 = vector.broadcast %c1_i32_58 : i32 to vector<1x8xi32>
      %118 = arith.cmpi eq, %110, %117 : vector<1x8xi32>
      %cst_59 = arith.constant 0.000000e+00 : f32
      %119 = vector.shape_cast %58 : vector<1x1xf32> to vector<1x1xf32>
      %120 = vector.broadcast %119 : vector<1x1xf32> to vector<1x8xf32>
      %121 = vector.broadcast %cst_59 : f32 to vector<1x8xf32>
      %122 = arith.select %118, %120, %121 : vector<1x8xi1>, vector<1x8xf32>
      %123 = arith.addf %116, %122 : vector<1x8xf32>
      %c2_i32 = arith.constant 2 : i32
      %124 = vector.broadcast %c2_i32 : i32 to vector<1x8xi32>
      %125 = arith.cmpi eq, %110, %124 : vector<1x8xi32>
      %cst_60 = arith.constant 0.000000e+00 : f32
      %126 = vector.shape_cast %101 : vector<1x1xf32> to vector<1x1xf32>
      %127 = vector.broadcast %126 : vector<1x1xf32> to vector<1x8xf32>
      %128 = vector.broadcast %cst_60 : f32 to vector<1x8xf32>
      %129 = arith.select %125, %127, %128 : vector<1x8xi1>, vector<1x8xf32>
      %130 = arith.addf %123, %129 : vector<1x8xf32>
      %c3_i32_61 = arith.constant 3 : i32
      %131 = vector.broadcast %c3_i32_61 : i32 to vector<1x8xi32>
      %132 = arith.cmpi eq, %110, %131 : vector<1x8xi32>
      %cst_62 = arith.constant 0.000000e+00 : f32
      %133 = vector.shape_cast %64 : vector<1x1xf32> to vector<1x1xf32>
      %134 = vector.broadcast %133 : vector<1x1xf32> to vector<1x8xf32>
      %135 = vector.broadcast %cst_62 : f32 to vector<1x8xf32>
      %136 = arith.select %132, %134, %135 : vector<1x8xi1>, vector<1x8xf32>
      %137 = arith.addf %130, %136 : vector<1x8xf32>
      %138 = vector.shape_cast %137 : vector<1x8xf32> to vector<1x1x8xf32>
      %c0_63 = arith.constant 0 : index
      %c0_64 = arith.constant 0 : index
      %c0_65 = arith.constant 0 : index
      %139 = vector.load %arg6[%c0_63, %c0_64, %c0_65] : memref<1x1x8xf32, #tpu.memory_space<vmem>>, vector<1x1x8xf32>
      tpu.vector_store %arg6[%c0_63, %c0_64, %c0_65], %138 {strides = array<i32>} : memref<1x1x8xf32, #tpu.memory_space<vmem>>, vector<1x1x8xf32>,
    } else {
    }
    return
  }
  func.func @transform_0(%arg0: i32, %arg1: i32) -> (i32, i32, i32) {
    %c0_i32 = arith.constant 0 : i32
    %c0_i32_0 = arith.constant 0 : i32
    %c0_i32_1 = arith.constant 0 : i32
    return %arg0, %c0_i32, %c0_i32_0 : i32, i32, i32
  }
  func.func @transform_1(%arg0: i32, %arg1: i32) -> (i32, i32, i32) {
    %c0_i32 = arith.constant 0 : i32
    %c0_i32_0 = arith.constant 0 : i32
    %c0_i32_1 = arith.constant 0 : i32
    return %arg0, %c0_i32, %c0_i32_0 : i32, i32, i32
  }
  func.func @transform_2(%arg0: i32, %arg1: i32) -> (i32, i32, i32) {
    %c0_i32 = arith.constant 0 : i32
    %c0_i32_0 = arith.constant 0 : i32
    %c0_i32_1 = arith.constant 0 : i32
    return %arg0, %c0_i32, %c0_i32_0 : i32, i32, i32
  }
  func.func @transform_3(%arg0: i32, %arg1: i32) -> (i32, i32, i32) {
    %c0_i32 = arith.constant 0 : i32
    %0 = arith.minsi %arg1, %c0_i32 : i32
    %c0_i32_0 = arith.constant 0 : i32
    %c0_i32_1 = arith.constant 0 : i32
    return %arg0, %c0_i32_0, %0 : i32, i32, i32
  }
  func.func @transform_4(%arg0: i32, %arg1: i32) -> (i32, i32, i32) {
    %c0_i32 = arith.constant 0 : i32
    %c0_i32_0 = arith.constant 0 : i32
    %c0_i32_1 = arith.constant 0 : i32
    return %arg0, %c0_i32, %c0_i32_0 : i32, i32, i32
  }
}

</mosaic_0001>

<llo_original>
// kernel: tpu_custom_call.1
$region0: #{tpu_custom_call.1}
  #allocation0 [shape = 'u32[]', space=smem, size = 0x4, offset = 0x4, fixed_abs, tag = 'smem constant byte address 0x4 - core index']
  #allocation1 [shape = 'u32[72,128]{1,0:T(1,128)}', space=vmem, size = 0x9000, scoped, tag = 'internal scratch']
  #allocation2 [shape = 'f32[8,512]{1,0:T(8,128)}', space=vmem, size = 0x4000, scoped, tag = 'scratch operand']
  #allocation3 [shape = 'f32[1,8,512]{2,1,0:T(8,128)}', space=vmem, size = 0x4000, scoped, tag = 'scratch operand']
  #allocation4 [shape = 'f32[1,512]{1,0:T(1,128)}', space=vmem, size = 0x800, scoped, tag = 'scratch operand']
  #allocation5 [shape = 'f32[1,512]{1,0:T(1,128)}', space=vmem, size = 0x800, scoped, tag = 'scratch operand']
  #allocation6 [shape = 'f32[1,1]{1,0:T(1,128)}', space=vmem, size = 0x200, scoped, tag = 'scratch operand']
  #allocation7 [shape = 'f32[1,1]{1,0:T(1,128)}', space=vmem, size = 0x200, scoped, tag = 'scratch operand']
  %s0 = inlined_call_operand.vmem [shape: f32[2,8,4], index: 0, kind: input, shape index: {}]
  %s1 = inlined_call_operand.vmem [shape: f32[2,8,4], index: 1, kind: input, shape index: {}]
  %s2 = inlined_call_operand.vmem [shape: f32[2,4,512], index: 2, kind: input, shape index: {}]
  %s3 = inlined_call_operand.hbm [shape: f32[2,8,512], index: 3, kind: input, shape index: {}]
  %s4 = inlined_call_operand.hbm [shape: f32[2,1,8], index: 4, kind: output, shape index: {}]
  %s5 = sld [smem:[#allocation0]]
  $region69: #{tpu_custom_call.1} parent=0
    _
  %s7 = ssub.s32 1, %s5
  %s8 = scalar_select 0, %s7, %s5
  $region1: #{tpu_custom_call.1} parent=0
    #allocation8 [shape = 'u8[32768]{0}', space=vmem, size = 0x8000, scoped, tag = 'input window, operand 3']
    #allocation9 [shape = 's32[2]{0}', space=sflag, size = 0x8, scoped, tag = 'scoped memory for tpu_custom_call.1']
    #allocation10 [shape = 's32[2]{0}', space=sflag, size = 0x8, scoped, tag = 'scoped memory for tpu_custom_call.1']
    #allocation11 [shape = 'u8[1024]{0}', space=vmem, size = 0x400, scoped, tag = 'output window, operand 0']
    %9 = vsyncpa [#allocation9], 0
    %s10 = scalar_lea.sflag [#allocation9], 1
    %11 = vsyncpa %s10, 0
    %12 = vsyncpa [#allocation10], 0
    %s13 = scalar_lea.sflag [#allocation10], 1
    %14 = vsyncpa %s13, 0
    loop: start=0, step=1, limit=6
    $region2: #{tpu_custom_call.1} parent=1 // loop_pre_header
      _
    $region3: #{tpu_custom_call.1} parent=1 // loop_header
      %s16 = sphi 0, %s20
      %p17 = scmp.ge.s32.totalorder %s16, 6
      %s23 = sphi 0, %s35
      %s24 = sphi 0, %s31
      %s25 = sphi 0, %s23
      %s26 = sphi 0, %s24
      %s27 = sphi 0, %s25
      %s28 = sphi 0, %s26
      %s38 = sphi 0, %s40
      %s41 = sphi 0, %s38
      %s42 = sphi 0, %s41
      %s58 = sphi 0, %s42
      %s64 = sphi 0, %s66
      %s67 = sphi 0, %s64
      %s68 = sphi 0, %s67
      %s84 = sphi 0, %s68
      %s90 = sphi 0, %s92
      %s93 = sphi 0, %s90
      %s94 = sphi 0, %s93
      %s110 = sphi 0, %s94
      %s122 = sphi 0, %s124
      %s125 = sphi 0, %s122
      %s126 = sphi 0, %s125
      %s142 = sphi 0, %s126
      %s148 = sphi 0, %s150
      %s151 = sphi 0, %s148
      %s152 = sphi 0, %s151
      %s168 = sphi 0, %s152
    $region4: #{tpu_custom_call.1} parent=1 // loop_header_branch
      %19 = sbr.rel (%p17) target = $region8
    $region5: #{tpu_custom_call.1} parent=1 // loop_body
      %s21 = ssub.s32 %s16, 1
      %s22 = ssub.s32 %s16, 2
      %s29 = sadd.s32 1, %s24
      %p30 = scmp.ge.s32.totalorder %s29, 2
      %s31 = scalar_select %p30, 0, %s29
      %s32 = sadd.s32 1, %s23
      %s33 = scalar_select %p30, %s32, %s23
      %p34 = scmp.ge.s32.totalorder %s33, 2
      %s35 = scalar_select %p34, 0, %s33
      %s36 = ssub.s32 %s23, %s35
      %p37 = scmp.eq.s32.totalorder %s36, 0
      %s39 = sadd.s32 %s38, 1
      %s40 = scalar_select %p37, %s38, %s39
      %p43 = pneg %p37
      %p44 = scmp.eq.s32.totalorder %s16, 3
      %p45 = por %p43, %p44
      %p46 = scmp.ne.s32.totalorder %s38, %s41
      %p47 = scmp.eq.s32.totalorder %s16, 0
      %p48 = por %p46, %p47
      %p49 = scmp.ne.s32.totalorder %s38, %s41
      %p50 = scmp.eq.s32.totalorder %s21, 3
      %p51 = por %p49, %p50
      %p52 = scmp.ne.s32.totalorder %s41, %s42
      %p53 = scmp.eq.s32.totalorder %s21, 0
      %p54 = por %p52, %p53
      %p55 = scmp.ne.s32.totalorder %s41, %s42
      %p56 = scmp.eq.s32.totalorder %s22, 3
      %p57 = por %p55, %p56
      %p59 = scmp.ne.s32.totalorder %s42, %s58
      %p60 = scmp.eq.s32.totalorder %s22, 0
      %p61 = por %p59, %p60
      %s62 = ssub.s32 %s23, %s35
      %p63 = scmp.eq.s32.totalorder %s62, 0
      %s65 = sadd.s32 %s64, 1
      %s66 = scalar_select %p63, %s64, %s65
      %p69 = pneg %p63
      %p70 = scmp.eq.s32.totalorder %s16, 3
      %p71 = por %p69, %p70
      %p72 = scmp.ne.s32.totalorder %s64, %s67
      %p73 = scmp.eq.s32.totalorder %s16, 0
      %p74 = por %p72, %p73
      %p75 = scmp.ne.s32.totalorder %s64, %s67
      %p76 = scmp.eq.s32.totalorder %s21, 3
      %p77 = por %p75, %p76
      %p78 = scmp.ne.s32.totalorder %s67, %s68
      %p79 = scmp.eq.s32.totalorder %s21, 0
      %p80 = por %p78, %p79
      %p81 = scmp.ne.s32.totalorder %s67, %s68
      %p82 = scmp.eq.s32.totalorder %s22, 3
      %p83 = por %p81, %p82
      %p85 = scmp.ne.s32.totalorder %s68, %s84
      %p86 = scmp.eq.s32.totalorder %s22, 0
      %p87 = por %p85, %p86
      %s88 = ssub.s32 %s23, %s35
      %p89 = scmp.eq.s32.totalorder %s88, 0
      %s91 = sadd.s32 %s90, 1
      %s92 = scalar_select %p89, %s90, %s91
      %p95 = pneg %p89
      %p96 = scmp.eq.s32.totalorder %s16, 3
      %p97 = por %p95, %p96
      %p98 = scmp.ne.s32.totalorder %s90, %s93
      %p99 = scmp.eq.s32.totalorder %s16, 0
      %p100 = por %p98, %p99
      %p101 = scmp.ne.s32.totalorder %s90, %s93
      %p102 = scmp.eq.s32.totalorder %s21, 3
      %p103 = por %p101, %p102
      %p104 = scmp.ne.s32.totalorder %s93, %s94
      %p105 = scmp.eq.s32.totalorder %s21, 0
      %p106 = por %p104, %p105
      %p107 = scmp.ne.s32.totalorder %s93, %s94
      %p108 = scmp.eq.s32.totalorder %s22, 3
      %p109 = por %p107, %p108
      %p111 = scmp.ne.s32.totalorder %s94, %s110
      %p112 = scmp.eq.s32.totalorder %s22, 0
      %p113 = por %p111, %p112
      %p114 = scmp.lt.s32.totalorder %s24, 0
      %s115 = scalar_select %p114, %s24, 0
      %p116 = scmp.lt.s32.totalorder %s31, 0
      %s117 = scalar_select %p116, %s31, 0
      %s118 = ssub.s32 %s23, %s35
      %s119 = ssub.s32 %s115, %s117
      %s120 = sor.u32 %s118, %s119
      %p121 = scmp.eq.s32.totalorder %s120, 0
      %s123 = sadd.s32 %s122, 1
      %s124 = scalar_select %p121, %s122, %s123
      %p127 = pneg %p121
      %p128 = scmp.eq.s32.totalorder %s16, 3
      %p129 = por %p127, %p128
      %p130 = scmp.ne.s32.totalorder %s122, %s125
      %p131 = scmp.eq.s32.totalorder %s16, 0
      %p132 = por %p130, %p131
      %p133 = scmp.ne.s32.totalorder %s122, %s125
      %p134 = scmp.eq.s32.totalorder %s21, 3
      %p135 = por %p133, %p134
      %p136 = scmp.ne.s32.totalorder %s125, %s126
      %p137 = scmp.eq.s32.totalorder %s21, 0
      %p138 = por %p136, %p137
      %p139 = scmp.ne.s32.totalorder %s125, %s126
      %p140 = scmp.eq.s32.totalorder %s22, 3
      %p141 = por %p139, %p140
      %p143 = scmp.ne.s32.totalorder %s126, %s142
      %p144 = scmp.eq.s32.totalorder %s22, 0
      %p145 = por %p143, %p144
      %s146 = ssub.s32 %s23, %s35
      %p147 = scmp.eq.s32.totalorder %s146, 0
      %s149 = sadd.s32 %s148, 1
      %s150 = scalar_select %p147, %s148, %s149
      %p153 = pneg %p147
      %p154 = scmp.eq.s32.totalorder %s16, 3
      %p155 = por %p153, %p154
      %p156 = scmp.ne.s32.totalorder %s148, %s151
      %p157 = scmp.eq.s32.totalorder %s16, 0
      %p158 = por %p156, %p157
      %p159 = scmp.ne.s32.totalorder %s148, %s151
      %p160 = scmp.eq.s32.totalorder %s21, 3
      %p161 = por %p159, %p160
      %p162 = scmp.ne.s32.totalorder %s151, %s152
      %p163 = scmp.eq.s32.totalorder %s21, 0
      %p164 = por %p162, %p163
      %p165 = scmp.ne.s32.totalorder %s151, %s152
      %p166 = scmp.eq.s32.totalorder %s22, 3
      %p167 = por %p165, %p166
      %p169 = scmp.ne.s32.totalorder %s152, %s168
      %p170 = scmp.eq.s32.totalorder %s22, 0
      %p171 = por %p169, %p170
      %p172 = scmp.le.s32.totalorder 1, %s16
      %p173 = scmp.lt.s32.totalorder %s16, 5
      %p174 = pnand %p172, %p173
      %p175 = pneg %p174
      // Predicated region
      $region9: #{tpu_custom_call.1} parent=5 // pred_check
        _
      $region10: #{tpu_custom_call.1} parent=5 // pred_check_branch
        %177 = sbr.rel (%p174) target = $region12
      $region11: #{tpu_custom_call.1} parent=5 // pred_region
        %s178 = ssub.s32 %s16, 1
      $region12: #{tpu_custom_call.1} parent=5 // pred_fallthru
        _
      %p179 = scmp.lt.s32.totalorder %s16, 4
      // Predicated region
      $region13: #{tpu_custom_call.1} parent=5 // pred_check
        %p180 = pneg %p179
      $region14: #{tpu_custom_call.1} parent=5 // pred_check_branch
        %182 = sbr.rel (%p180) target = $region16
      $region15: #{tpu_custom_call.1} parent=5 // pred_region
        // Predicated region
        $region17: #{tpu_custom_call.1} parent=15 // pred_check
          %p183 = pneg %p48
        $region18: #{tpu_custom_call.1} parent=15 // pred_check_branch
          %185 = sbr.rel (%p183) target = $region20
        $region19: #{tpu_custom_call.1} parent=15 // pred_region
          %p186 = scmp.lt.s32.totalorder %s23, 1
          %s187 = scalar_select %p186, %s23, 1
          %s188 = smul.addr %s187, 8
          %s189 = scalar_lea.vmem %s0, %s188
        $region20: #{tpu_custom_call.1} parent=15 // pred_fallthru
          _
        // Predicated region
        $region21: #{tpu_custom_call.1} parent=15 // pred_check
          %p190 = pneg %p74
        $region22: #{tpu_custom_call.1} parent=15 // pred_check_branch
          %192 = sbr.rel (%p190) target = $region24
        $region23: #{tpu_custom_call.1} parent=15 // pred_region
          %p193 = scmp.lt.s32.totalorder %s23, 1
          %s194 = scalar_select %p193, %s23, 1
          %s195 = smul.addr %s194, 8
          %s196 = scalar_lea.vmem %s1, %s195
        $region24: #{tpu_custom_call.1} parent=15 // pred_fallthru
          _
        // Predicated region
        $region25: #{tpu_custom_call.1} parent=15 // pred_check
          %p197 = pneg %p100
        $region26: #{tpu_custom_call.1} parent=15 // pred_check_branch
          %199 = sbr.rel (%p197) target = $region28
        $region27: #{tpu_custom_call.1} parent=15 // pred_region
          %p200 = scmp.lt.s32.totalorder %s23, 1
          %s201 = scalar_select %p200, %s23, 1
          %s202 = smul.addr %s201, 4
          %s203 = smul.addr %s202, 4
          %s204 = scalar_lea.vmem %s2, %s203
        $region28: #{tpu_custom_call.1} parent=15 // pred_fallthru
          _
        // Predicated region
        $region29: #{tpu_custom_call.1} parent=15 // pred_check
          %p205 = pneg %p132
        $region30: #{tpu_custom_call.1} parent=15 // pred_check_branch
          %207 = sbr.rel (%p205) target = $region32
        $region31: #{tpu_custom_call.1} parent=15 // pred_region
          %s208 = sand.u32 %s122, 1
          %s209 = scalar_lea.sflag [#allocation9], %s208
          %s210 = sand.u32 %s122, 1
          %s211 = smul.addr %s210, 32
          %s212 = scalar_lea.vmem [#allocation8], %s211
          %p213 = scmp.lt.s32.totalorder %s24, 0
          %s214 = scalar_select %p213, %s24, 0
          %s215 = smul.u32 4, %s214
          %217 = vsyncadd %s209, 0
          %s218 = smul.addr %s23, 4
          %s219 = sadd.s32 %s215, %s218
          %s220 = smul.addr %s219, 8
          %s221 = scalar_lea.hbm %s3, %s220
          %s223 = sshll.u32 %s221, 4
          %s224 = int_to_ptr.hbm [resolvable:$true] %s223
          %s225 = sshll.u32 %s212, 4
          %s226 = int_to_ptr.vmem [resolvable:$true] %s225
          %228 = dma.hbm_to_vmem [thread:$0]  %s224, 512, %s226, %s209
        $region32: #{tpu_custom_call.1} parent=15 // pred_fallthru
          _
      $region16: #{tpu_custom_call.1} parent=5 // pred_fallthru
        _
      %p229 = scmp.le.s32.totalorder 1, %s16
      %p230 = scmp.lt.s32.totalorder %s16, 5
      %p231 = pnand %p229, %p230
      %p232 = pneg %p231
      // Predicated region
      $region33: #{tpu_custom_call.1} parent=5 // pred_check
        _
      $region34: #{tpu_custom_call.1} parent=5 // pred_check_branch
        %234 = sbr.rel (%p231) target = $region36
      $region35: #{tpu_custom_call.1} parent=5 // pred_region
        %s235 = ssub.s32 %s16, 1
        %s236 = sand.u32 %s125, 1
        %s237 = scalar_lea.sflag [#allocation9], %s236
        %s238 = sand.u32 %s125, 1
        %s239 = smul.addr %s238, 32
        %s240 = scalar_lea.vmem [#allocation8], %s239
        // Predicated region
        $region37: #{tpu_custom_call.1} parent=35 // pred_check
          %p241 = pneg %p138
        $region38: #{tpu_custom_call.1} parent=35 // pred_check_branch
          %243 = sbr.rel (%p241) target = $region40
        $region39: #{tpu_custom_call.1} parent=35 // pred_region
          %245 = dma.done %s237, 512
        $region40: #{tpu_custom_call.1} parent=35 // pred_fallthru
          _
        %p246 = scmp.lt.s32.totalorder %s25, 1
        %s247 = scalar_select %p246, %s25, 1
        %s248 = smul.addr %s247, 8
        %s249 = scalar_lea.vmem %s0, %s248
        %p250 = pneg %p54
        %p251 = pneg %p51
        %p252 = scmp.lt.s32.totalorder %s25, 1
        %s253 = scalar_select %p252, %s25, 1
        %s254 = smul.addr %s253, 8
        %s255 = scalar_lea.vmem %s1, %s254
        %p256 = pneg %p80
        %p257 = pneg %p77
        %p258 = scmp.lt.s32.totalorder %s25, 1
        %s259 = scalar_select %p258, %s25, 1
        %s260 = smul.addr %s259, 4
        %s261 = smul.addr %s260, 4
        %s262 = scalar_lea.vmem %s2, %s261
        %p263 = pneg %p106
        %p264 = pneg %p103
        %s265 = sand.u32 %s125, 1
        %s266 = scalar_lea.sflag [#allocation9], %s265
        %s267 = sand.u32 %s125, 1
        %s268 = smul.addr %s267, 32
        %s269 = scalar_lea.vmem [#allocation8], %s268
        %p270 = pneg %p138
        %p271 = pneg %p135
        %p272 = pneg %p164
        %p273 = pneg %p161
        %s274 = sand.u32 %s151, 1
        %s275 = scalar_lea.sflag [#allocation10], %s274
        %s276 = sand.u32 %s151, 1
        %s277 = scalar_lea.vmem [#allocation11], %s276
        %p278 = scmp.lt.s32.totalorder %s25, 1
        %s279 = scalar_select %p278, %s25, 1
        %s280 = smul.addr %s279, 8
        %s281 = scalar_lea.vmem %s0, %s280
        %p282 = scmp.lt.s32.totalorder %s25, 1
        %s283 = scalar_select %p282, %s25, 1
        %s284 = smul.addr %s283, 8
        %s285 = scalar_lea.vmem %s1, %s284
        %p286 = scmp.lt.s32.totalorder %s25, 1
        %s287 = scalar_select %p286, %s25, 1
        %s288 = smul.addr %s287, 4
        %s289 = smul.addr %s288, 4
        %s290 = scalar_lea.vmem %s2, %s289
        %p291 = scmp.lt.s32.totalorder %s26, 0
        %s292 = scalar_select %p291, %s26, 0
        %s293 = smul.u32 4, %s292
        %p294 = scmp.eq.s32.totalorder %s26, 0
        // Predicated region
        $region41: #{tpu_custom_call.1} parent=35 // pred_check
          %p295 = pneg %p294
        $region42: #{tpu_custom_call.1} parent=35 // pred_check_branch
          %297 = sbr.rel (%p295) target = $region44
        $region43: #{tpu_custom_call.1} parent=35 // pred_region
          %v298 = vld [vmem:[%s290] sm:$0xff]
          %v299 = vld [vmem:[%s290 + $0x8] sm:$0xff]
          %v300 = vld [vmem:[%s281] sm:$0xff]
          %v301 = vld [vmem:[%s285] sm:$0xff]
          %v302 = vlaneseq
          %v303 = vshrl.u32 %v302, 7
          %vm304 = vcmp.eq.s32.totalorder %v303, 3
          %v305 = vsel %vm304, 1.0, 0.0
          %vm306 = vcmp.eq.s32.totalorder %v303, 4
          %v307 = vsel %vm306, 1.0, 0.0
          %v308 = vlaneseq
          %v309 = vand.u32 %v308, 127
          %v310 = vadd.s32 %v309, 128
          %v311 = vadd.s32 %v309, 256
          %v312 = vadd.s32 %v309, 384
          %vm313 = vcmp.lt.s32.totalorder %v309, 300
          %vm314 = vcmp.lt.s32.totalorder %v310, 300
          %vm315 = vcmp.lt.s32.totalorder %v311, 300
          %vm316 = vcmp.lt.s32.totalorder %v312, 300
          %319 = vst [vmem:[#allocation1] ss:$2 sm:$0xff] %v298
          %s320 = scalar_lea.vmem [#allocation1], 16
          %321 = vst [vmem:[%s320] ss:$2 sm:$0xff] %v299
          %v322 = vld.sshfl [vmem:[#allocation1] sm:$0xff pattern:$0x75316420]
          %v323 = vld.sshfl [vmem:[#allocation1 + $0x8] sm:$0xff pattern:$0x75316420]
          %v324 = vld.sshfl [vmem:[#allocation1 + $0x10] sm:$0xff pattern:$0x75316420]
          %v325 = vld.sshfl [vmem:[#allocation1 + $0x18] sm:$0xff pattern:$0x75316420]
          %vm326 = vcmask 31744
          %v328 = vsel %vm326, %v300, 0
          %vm330 = vcmask 1043456
          %v331 = vsel %vm330, %v322, 0
          %v333 = vsel %vm330, %v323, 0
          %v335 = vsel %vm330, %v324, 0
          %v337 = vsel %vm330, %v325, 0
          %339 = vmatpush.msra.mxu0 0.0
          %340 = vmatpush.msra.mxu0 0.0
          %341 = vmatpush.msra.mxu0 0.0
          %342 = vmatpush.msra.mxu0 0.0
          %343 = vmatpush.msra.mxu0 0.0
          %344 = vmatpush.msra.mxu0 0.0
          %345 = vmatpush.msra.mxu0 0.0
          %346 = vmatpush.msra.mxu0 0.0
          %347 = vmatpush.msra.mxu0 0.0
          %348 = vmatpush.msra.mxu0 0.0
          %349 = vmatpush.msra.mxu0 0.0
          %350 = vmatpush.msra.mxu0 0.0
          %351 = vmatpush.msra.mxu0 0.0
          %352 = vmatpush.msra.mxu0 0.0
          %353 = vmatpush.msra.mxu0 0.0
          %354 = vmatpush.msra.mxu0 %v331
          %355 = vmatmul.f32.gmra.mxu0 %v328
          %v356 = vpop.f32.mrf.mxu0
          %v357 = vadd.f32 0.0, %v356
          %358 = vdwg.mxu0
          %359 = vmatpush.msra.mxu0 0.0
          %360 = vmatpush.msra.mxu0 0.0
          %361 = vmatpush.msra.mxu0 0.0
          %362 = vmatpush.msra.mxu0 0.0
          %363 = vmatpush.msra.mxu0 0.0
          %364 = vmatpush.msra.mxu0 0.0
          %365 = vmatpush.msra.mxu0 0.0
          %366 = vmatpush.msra.mxu0 0.0
          %367 = vmatpush.msra.mxu0 0.0
          %368 = vmatpush.msra.mxu0 0.0
          %369 = vmatpush.msra.mxu0 0.0
          %370 = vmatpush.msra.mxu0 0.0
          %371 = vmatpush.msra.mxu0 0.0
          %372 = vmatpush.msra.mxu0 0.0
          %373 = vmatpush.msra.mxu0 0.0
          %374 = vmatpush.msra.mxu0 %v333
          %375 = vmatmul.f32.gmra.mxu0 %v328
          %v376 = vpop.f32.mrf.mxu0
          %v377 = vadd.f32 0.0, %v376
          %378 = vdwg.mxu0
          %379 = vmatpush.msra.mxu0 0.0
          %380 = vmatpush.msra.mxu0 0.0
          %381 = vmatpush.msra.mxu0 0.0
          %382 = vmatpush.msra.mxu0 0.0
          %383 = vmatpush.msra.mxu0 0.0
          %384 = vmatpush.msra.mxu0 0.0
          %385 = vmatpush.msra.mxu0 0.0
          %386 = vmatpush.msra.mxu0 0.0
          %387 = vmatpush.msra.mxu0 0.0
          %388 = vmatpush.msra.mxu0 0.0
          %389 = vmatpush.msra.mxu0 0.0
          %390 = vmatpush.msra.mxu0 0.0
          %391 = vmatpush.msra.mxu0 0.0
          %392 = vmatpush.msra.mxu0 0.0
          %393 = vmatpush.msra.mxu0 0.0
          %394 = vmatpush.msra.mxu0 %v335
          %395 = vmatmul.f32.gmra.mxu0 %v328
          %v396 = vpop.f32.mrf.mxu0
          %v397 = vadd.f32 0.0, %v396
          %398 = vdwg.mxu0
          %399 = vmatpush.msra.mxu0 0.0
          %400 = vmatpush.msra.mxu0 0.0
          %401 = vmatpush.msra.mxu0 0.0
          %402 = vmatpush.msra.mxu0 0.0
          %403 = vmatpush.msra.mxu0 0.0
          %404 = vmatpush.msra.mxu0 0.0
          %405 = vmatpush.msra.mxu0 0.0
          %406 = vmatpush.msra.mxu0 0.0
          %407 = vmatpush.msra.mxu0 0.0
          %408 = vmatpush.msra.mxu0 0.0
          %409 = vmatpush.msra.mxu0 0.0
          %410 = vmatpush.msra.mxu0 0.0
          %411 = vmatpush.msra.mxu0 0.0
          %412 = vmatpush.msra.mxu0 0.0
          %413 = vmatpush.msra.mxu0 0.0
          %414 = vmatpush.msra.mxu0 %v337
          %415 = vmatmul.f32.gmra.mxu0 %v328
          %v416 = vpop.f32.mrf.mxu0
          %v417 = vadd.f32 0.0, %v416
          %418 = vdwg.mxu0
          %v419 = vmul.f32 %v357, %v357
          %v420 = vmul.f32 %v377, %v377
          %v421 = vmul.f32 %v397, %v397
          %v422 = vmul.f32 %v417, %v417
          %v423 = vrot.slane %v419, 4
          %v424 = vadd.f32 %v419, %v423
          %v425 = vrot.slane %v424, 2
          %v426 = vadd.f32 %v424, %v425
          %v427 = vrot.slane %v426, 1
          %v428 = vadd.f32 %v426, %v427
          %v429 = vrot.slane %v420, 4
          %v430 = vadd.f32 %v420, %v429
          %v431 = vrot.slane %v430, 2
          %v432 = vadd.f32 %v430, %v431
          %v433 = vrot.slane %v432, 1
          %v434 = vadd.f32 %v432, %v433
          %v435 = vrot.slane %v421, 4
          %v436 = vadd.f32 %v421, %v435
          %v437 = vrot.slane %v436, 2
          %v438 = vadd.f32 %v436, %v437
          %v439 = vrot.slane %v438, 1
          %v440 = vadd.f32 %v438, %v439
          %v441 = vrot.slane %v422, 4
          %v442 = vadd.f32 %v422, %v441
          %v443 = vrot.slane %v442, 2
          %v444 = vadd.f32 %v442, %v443
          %v445 = vrot.slane %v444, 1
          %v446 = vadd.f32 %v444, %v445
          %v447 = vsub.f32 %v428, 1.0
          %v448 = vsub.f32 %v434, 1.0
          %v449 = vsub.f32 %v440, 1.0
          %v450 = vsub.f32 %v446, 1.0
          %v451 = vmul.f32 %v357, -2.0
          %v452 = vmul.f32 %v377, -2.0
          %v453 = vmul.f32 %v397, -2.0
          %v454 = vmul.f32 %v417, -2.0
          %v455 = vmul.f32 %v305, 3.0
          %v456 = vadd.f32 %v451, %v455
          %v457 = vadd.f32 %v452, %v455
          %v458 = vadd.f32 %v453, %v455
          %v459 = vadd.f32 %v454, %v455
          %v460 = vmul.f32 %v307, %v447
          %v461 = vmul.f32 %v307, %v448
          %v462 = vmul.f32 %v307, %v449
          %v463 = vmul.f32 %v307, %v450
          %v464 = vadd.f32 %v456, %v460
          %v465 = vadd.f32 %v457, %v461
          %v466 = vadd.f32 %v458, %v462
          %v467 = vadd.f32 %v459, %v463
          %v468 = vmul.f32 %v307, 1e+30
          %v469 = vsel %vm313, %v464, %v468
          %v470 = vsel %vm314, %v465, %v468
          %v471 = vsel %vm315, %v466, %v468
          %v472 = vsel %vm316, %v467, %v468
          %473 = vst [vmem:[#allocation2] sm:$0xff] %v469
          %474 = vst [vmem:[#allocation2 + $0x8] sm:$0xff] %v470
          %475 = vst [vmem:[#allocation2 + $0x10] sm:$0xff] %v471
          %476 = vst [vmem:[#allocation2 + $0x18] sm:$0xff] %v472
          %477 = vst [vmem:[#allocation1] ss:$2 sm:$0xff] %v298
          %s478 = scalar_lea.vmem [#allocation1], 16
          %479 = vst [vmem:[%s478] ss:$2 sm:$0xff] %v299
          %v480 = vld.sshfl [vmem:[#allocation1] sm:$0xff pattern:$0x75316420]
          %v481 = vld.sshfl [vmem:[#allocation1 + $0x8] sm:$0xff pattern:$0x75316420]
          %v482 = vld.sshfl [vmem:[#allocation1 + $0x10] sm:$0xff pattern:$0x75316420]
          %v483 = vld.sshfl [vmem:[#allocation1 + $0x18] sm:$0xff pattern:$0x75316420]
          %v485 = vsel %vm326, %v301, 0
          %v487 = vsel %vm330, %v480, 0
          %v489 = vsel %vm330, %v481, 0
          %v491 = vsel %vm330, %v482, 0
          %v493 = vsel %vm330, %v483, 0
          %495 = vmatpush.msra.mxu0 0.0
          %496 = vmatpush.msra.mxu0 0.0
          %497 = vmatpush.msra.mxu0 0.0
          %498 = vmatpush.msra.mxu0 0.0
          %499 = vmatpush.msra.mxu0 0.0
          %500 = vmatpush.msra.mxu0 0.0
          %501 = vmatpush.msra.mxu0 0.0
          %502 = vmatpush.msra.mxu0 0.0
          %503 = vmatpush.msra.mxu0 0.0
          %504 = vmatpush.msra.mxu0 0.0
          %505 = vmatpush.msra.mxu0 0.0
          %506 = vmatpush.msra.mxu0 0.0
          %507 = vmatpush.msra.mxu0 0.0
          %508 = vmatpush.msra.mxu0 0.0
          %509 = vmatpush.msra.mxu0 0.0
          %510 = vmatpush.msra.mxu0 %v487
          %511 = vmatmul.f32.gmra.mxu0 %v485
          %v512 = vpop.f32.mrf.mxu0
          %v513 = vadd.f32 0.0, %v512
          %514 = vdwg.mxu0
          %515 = vmatpush.msra.mxu0 0.0
          %516 = vmatpush.msra.mxu0 0.0
          %517 = vmatpush.msra.mxu0 0.0
          %518 = vmatpush.msra.mxu0 0.0
          %519 = vmatpush.msra.mxu0 0.0
          %520 = vmatpush.msra.mxu0 0.0
          %521 = vmatpush.msra.mxu0 0.0
          %522 = vmatpush.msra.mxu0 0.0
          %523 = vmatpush.msra.mxu0 0.0
          %524 = vmatpush.msra.mxu0 0.0
          %525 = vmatpush.msra.mxu0 0.0
          %526 = vmatpush.msra.mxu0 0.0
          %527 = vmatpush.msra.mxu0 0.0
          %528 = vmatpush.msra.mxu0 0.0
          %529 = vmatpush.msra.mxu0 0.0
          %530 = vmatpush.msra.mxu0 %v489
          %531 = vmatmul.f32.gmra.mxu0 %v485
          %v532 = vpop.f32.mrf.mxu0
          %v533 = vadd.f32 0.0, %v532
          %534 = vdwg.mxu0
          %535 = vmatpush.msra.mxu0 0.0
          %536 = vmatpush.msra.mxu0 0.0
          %537 = vmatpush.msra.mxu0 0.0
          %538 = vmatpush.msra.mxu0 0.0
          %539 = vmatpush.msra.mxu0 0.0
          %540 = vmatpush.msra.mxu0 0.0
          %541 = vmatpush.msra.mxu0 0.0
          %542 = vmatpush.msra.mxu0 0.0
          %543 = vmatpush.msra.mxu0 0.0
          %544 = vmatpush.msra.mxu0 0.0
          %545 = vmatpush.msra.mxu0 0.0
          %546 = vmatpush.msra.mxu0 0.0
          %547 = vmatpush.msra.mxu0 0.0
          %548 = vmatpush.msra.mxu0 0.0
          %549 = vmatpush.msra.mxu0 0.0
          %550 = vmatpush.msra.mxu0 %v491
          %551 = vmatmul.f32.gmra.mxu0 %v485
          %v552 = vpop.f32.mrf.mxu0
          %v553 = vadd.f32 0.0, %v552
          %554 = vdwg.mxu0
          %555 = vmatpush.msra.mxu0 0.0
          %556 = vmatpush.msra.mxu0 0.0
          %557 = vmatpush.msra.mxu0 0.0
          %558 = vmatpush.msra.mxu0 0.0
          %559 = vmatpush.msra.mxu0 0.0
          %560 = vmatpush.msra.mxu0 0.0
          %561 = vmatpush.msra.mxu0 0.0
          %562 = vmatpush.msra.mxu0 0.0
          %563 = vmatpush.msra.mxu0 0.0
          %564 = vmatpush.msra.mxu0 0.0
          %565 = vmatpush.msra.mxu0 0.0
          %566 = vmatpush.msra.mxu0 0.0
          %567 = vmatpush.msra.mxu0 0.0
          %568 = vmatpush.msra.mxu0 0.0
          %569 = vmatpush.msra.mxu0 0.0
          %570 = vmatpush.msra.mxu0 %v493
          %571 = vmatmul.f32.gmra.mxu0 %v485
          %v572 = vpop.f32.mrf.mxu0
          %v573 = vadd.f32 0.0, %v572
          %574 = vdwg.mxu0
          %v575 = vmul.f32 %v513, %v513
          %v576 = vmul.f32 %v533, %v533
          %v577 = vmul.f32 %v553, %v553
          %v578 = vmul.f32 %v573, %v573
          %v579 = vrot.slane %v575, 4
          %v580 = vadd.f32 %v575, %v579
          %v581 = vrot.slane %v580, 2
          %v582 = vadd.f32 %v580, %v581
          %v583 = vrot.slane %v582, 1
          %v584 = vadd.f32 %v582, %v583
          %v585 = vrot.slane %v576, 4
          %v586 = vadd.f32 %v576, %v585
          %v587 = vrot.slane %v586, 2
          %v588 = vadd.f32 %v586, %v587
          %v589 = vrot.slane %v588, 1
          %v590 = vadd.f32 %v588, %v589
          %v591 = vrot.slane %v577, 4
          %v592 = vadd.f32 %v577, %v591
          %v593 = vrot.slane %v592, 2
          %v594 = vadd.f32 %v592, %v593
          %v595 = vrot.slane %v594, 1
          %v596 = vadd.f32 %v594, %v595
          %v597 = vrot.slane %v578, 4
          %v598 = vadd.f32 %v578, %v597
          %v599 = vrot.slane %v598, 2
          %v600 = vadd.f32 %v598, %v599
          %v601 = vrot.slane %v600, 1
          %v602 = vadd.f32 %v600, %v601
          %v603 = vsub.f32 %v584, 1.0
          %v604 = vsub.f32 %v590, 1.0
          %v605 = vsub.f32 %v596, 1.0
          %v606 = vsub.f32 %v602, 1.0
          %v607 = vsub.f32 %v603, 1.0
          %v608 = vsub.f32 %v604, 1.0
          %v609 = vsub.f32 %v605, 1.0
          %v610 = vsub.f32 %v606, 1.0
          %v611 = vmul.f32 %v305, %v607
          %v612 = vmul.f32 %v305, %v608
          %v613 = vmul.f32 %v305, %v609
          %v614 = vmul.f32 %v305, %v610
          %v615 = vadd.f32 %v513, %v611
          %v616 = vadd.f32 %v533, %v612
          %v617 = vadd.f32 %v553, %v613
          %v618 = vadd.f32 %v573, %v614
          %v619 = vadd.f32 %v615, %v307
          %v620 = vadd.f32 %v616, %v307
          %v621 = vadd.f32 %v617, %v307
          %v622 = vadd.f32 %v618, %v307
          %v623 = vmul.f32 %v305, 1e+30
          %v624 = vsel %vm313, %v619, %v623
          %v625 = vsel %vm314, %v620, %v623
          %v626 = vsel %vm315, %v621, %v623
          %v627 = vsel %vm316, %v622, %v623
          %628 = vst [vmem:[#allocation3] sm:$0xff] %v624
          %629 = vst [vmem:[#allocation3 + $0x8] sm:$0xff] %v625
          %630 = vst [vmem:[#allocation3 + $0x10] sm:$0xff] %v626
          %631 = vst [vmem:[#allocation3 + $0x18] sm:$0xff] %v627
          %v632 = vlaneseq
          %vm633 = vcmp.ge.s32.totalorder %v632, 0
          %vm634 = vcmp.lt.s32.totalorder %v632, 512
          %vm635 = vmand %vm633, %vm634
          %636 = vst.msk [vmem:[#allocation4] sm:$0xf] %vm635, inf
          %637 = vst.msk [vmem:[#allocation5] sm:$0xf] %vm635, inf
          %vm638 = vcmask 0
          %639 = vst.msk [vmem:[#allocation6] sm:$0x1] %vm638, 0.0
          %640 = vst.msk [vmem:[#allocation7] sm:$0x1] %vm638, 0.0
        $region44: #{tpu_custom_call.1} parent=35 // pred_fallthru
          _
        %p641 = scmp.lt.s32.totalorder %s26, 1
        %s642 = ssub.s32 %s26, 1
        %p643 = scmp.gt.s32.totalorder %s642, 0
        %s644 = scalar_select %p643, %s642, 0
        %v645 = vld [vmem:[%s240] sm:$0xff]
        %v646 = vld [vmem:[%s240 + $0x8] sm:$0xff]
        %v647 = vld [vmem:[%s240 + $0x10] sm:$0xff]
        %v648 = vld [vmem:[%s240 + $0x18] sm:$0xff]
        %s649 = smul.u32 %s644, 4
        %s650 = smul.addr %s649, 8
        %s651 = scalar_lea.vmem [#allocation3], %s650
        %v652 = vld [vmem:[%s651] sm:$0xff]
        %v653 = vld [vmem:[%s651 + $0x8] sm:$0xff]
        %v654 = vld [vmem:[%s651 + $0x10] sm:$0xff]
        %v655 = vld [vmem:[%s651 + $0x18] sm:$0xff]
        %s656 = scalar_select %p641, 1, 0
        %v657 = vstv %s656
        %vm658 = vcmp.eq.s32.totalorder %v657, 1
        %v659 = vsel %vm658, %v645, %v652
        %v660 = vsel %vm658, %v646, %v653
        %v661 = vsel %vm658, %v647, %v654
        %v662 = vsel %vm658, %v648, %v655
        %v663 = vld [vmem:[#allocation2] sm:$0xff]
        %v664 = vld [vmem:[#allocation2 + $0x8] sm:$0xff]
        %v665 = vld [vmem:[#allocation2 + $0x10] sm:$0xff]
        %v666 = vld [vmem:[#allocation2 + $0x18] sm:$0xff]
        %667 = vxpose.xlu0.b32.start [1/16] %v659, 128
        %668 = vxpose.xlu0.b32.cont [2/16] 0.0, 128
        %669 = vxpose.xlu0.b32.cont [3/16] 0.0, 128
        %670 = vxpose.xlu0.b32.cont [4/16] 0.0, 128
        %671 = vxpose.xlu0.b32.cont [5/16] 0.0, 128
        %672 = vxpose.xlu0.b32.cont [6/16] 0.0, 128
        %673 = vxpose.xlu0.b32.cont [7/16] 0.0, 128
        %674 = vxpose.xlu0.b32.cont [8/16] 0.0, 128
        %675 = vxpose.xlu0.b32.cont [9/16] 0.0, 128
        %676 = vxpose.xlu0.b32.cont [10/16] 0.0, 128
        %677 = vxpose.xlu0.b32.cont [11/16] 0.0, 128
        %678 = vxpose.xlu0.b32.cont [12/16] 0.0, 128
        %679 = vxpose.xlu0.b32.cont [13/16] 0.0, 128
        %680 = vxpose.xlu0.b32.cont [14/16] 0.0, 128
        %681 = vxpose.xlu0.b32.cont [15/16] 0.0, 128
        %682 = vxpose.xlu0.b32.end [16/16] 0.0, 128
        %v683 = vpop.trf.xlu0
        %v684 = vpop.trf.xlu0
        %v685 = vpop.trf.xlu0
        %v686 = vpop.trf.xlu0
        %v687 = vpop.trf.xlu0
        %v688 = vpop.trf.xlu0
        %v689 = vpop.trf.xlu0
        %v690 = vpop.trf.xlu0
        %v691 = vpop.trf.xlu0
        %v692 = vpop.trf.xlu0
        %v693 = vpop.trf.xlu0
        %v694 = vpop.trf.xlu0
        %v695 = vpop.trf.xlu0
        %v696 = vpop.trf.xlu0
        %v697 = vpop.trf.xlu0
        %v698 = vpop.trf.xlu0
        %699 = vxpose.xlu0.b32.start [1/16] %v660, 128
        %700 = vxpose.xlu0.b32.cont [2/16] 0.0, 128
        %701 = vxpose.xlu0.b32.cont [3/16] 0.0, 128
        %702 = vxpose.xlu0.b32.cont [4/16] 0.0, 128
        %703 = vxpose.xlu0.b32.cont [5/16] 0.0, 128
        %704 = vxpose.xlu0.b32.cont [6/16] 0.0, 128
        %705 = vxpose.xlu0.b32.cont [7/16] 0.0, 128
        %706 = vxpose.xlu0.b32.cont [8/16] 0.0, 128
        %707 = vxpose.xlu0.b32.cont [9/16] 0.0, 128
        %708 = vxpose.xlu0.b32.cont [10/16] 0.0, 128
        %709 = vxpose.xlu0.b32.cont [11/16] 0.0, 128
        %710 = vxpose.xlu0.b32.cont [12/16] 0.0, 128
        %711 = vxpose.xlu0.b32.cont [13/16] 0.0, 128
        %712 = vxpose.xlu0.b32.cont [14/16] 0.0, 128
        %713 = vxpose.xlu0.b32.cont [15/16] 0.0, 128
        %714 = vxpose.xlu0.b32.end [16/16] 0.0, 128
        %v715 = vpop.trf.xlu0
        %v716 = vpop.trf.xlu0
        %v717 = vpop.trf.xlu0
        %v718 = vpop.trf.xlu0
        %v719 = vpop.trf.xlu0
        %v720 = vpop.trf.xlu0
        %v721 = vpop.trf.xlu0
        %v722 = vpop.trf.xlu0
        %v723 = vpop.trf.xlu0
        %v724 = vpop.trf.xlu0
        %v725 = vpop.trf.xlu0
        %v726 = vpop.trf.xlu0
        %v727 = vpop.trf.xlu0
        %v728 = vpop.trf.xlu0
        %v729 = vpop.trf.xlu0
        %v730 = vpop.trf.xlu0
        %731 = vxpose.xlu0.b32.start [1/16] %v661, 128
        %732 = vxpose.xlu0.b32.cont [2/16] 0.0, 128
        %733 = vxpose.xlu0.b32.cont [3/16] 0.0, 128
        %734 = vxpose.xlu0.b32.cont [4/16] 0.0, 128
        %735 = vxpose.xlu0.b32.cont [5/16] 0.0, 128
        %736 = vxpose.xlu0.b32.cont [6/16] 0.0, 128
        %737 = vxpose.xlu0.b32.cont [7/16] 0.0, 128
        %738 = vxpose.xlu0.b32.cont [8/16] 0.0, 128
        %739 = vxpose.xlu0.b32.cont [9/16] 0.0, 128
        %740 = vxpose.xlu0.b32.cont [10/16] 0.0, 128
        %741 = vxpose.xlu0.b32.cont [11/16] 0.0, 128
        %742 = vxpose.xlu0.b32.cont [12/16] 0.0, 128
        %743 = vxpose.xlu0.b32.cont [13/16] 0.0, 128
        %744 = vxpose.xlu0.b32.cont [14/16] 0.0, 128
        %745 = vxpose.xlu0.b32.cont [15/16] 0.0, 128
        %746 = vxpose.xlu0.b32.end [16/16] 0.0, 128
        %v747 = vpop.trf.xlu0
        %v748 = vpop.trf.xlu0
        %v749 = vpop.trf.xlu0
        %v750 = vpop.trf.xlu0
        %v751 = vpop.trf.xlu0
        %v752 = vpop.trf.xlu0
        %v753 = vpop.trf.xlu0
        %v754 = vpop.trf.xlu0
        %v755 = vpop.trf.xlu0
        %v756 = vpop.trf.xlu0
        %v757 = vpop.trf.xlu0
        %v758 = vpop.trf.xlu0
        %v759 = vpop.trf.xlu0
        %v760 = vpop.trf.xlu0
        %v761 = vpop.trf.xlu0
        %v762 = vpop.trf.xlu0
        %763 = vxpose.xlu0.b32.start [1/16] %v662, 128
        %764 = vxpose.xlu0.b32.cont [2/16] 0.0, 128
        %765 = vxpose.xlu0.b32.cont [3/16] 0.0, 128
        %766 = vxpose.xlu0.b32.cont [4/16] 0.0, 128
        %767 = vxpose.xlu0.b32.cont [5/16] 0.0, 128
        %768 = vxpose.xlu0.b32.cont [6/16] 0.0, 128
        %769 = vxpose.xlu0.b32.cont [7/16] 0.0, 128
        %770 = vxpose.xlu0.b32.cont [8/16] 0.0, 128
        %771 = vxpose.xlu0.b32.cont [9/16] 0.0, 128
        %772 = vxpose.xlu0.b32.cont [10/16] 0.0, 128
        %773 = vxpose.xlu0.b32.cont [11/16] 0.0, 128
        %774 = vxpose.xlu0.b32.cont [12/16] 0.0, 128
        %775 = vxpose.xlu0.b32.cont [13/16] 0.0, 128
        %776 = vxpose.xlu0.b32.cont [14/16] 0.0, 128
        %777 = vxpose.xlu0.b32.cont [15/16] 0.0, 128
        %778 = vxpose.xlu0.b32.end [16/16] 0.0, 128
        %v779 = vpop.trf.xlu0
        %v780 = vpop.trf.xlu0
        %v781 = vpop.trf.xlu0
        %v782 = vpop.trf.xlu0
        %v783 = vpop.trf.xlu0
        %v784 = vpop.trf.xlu0
        %v785 = vpop.trf.xlu0
        %v786 = vpop.trf.xlu0
        %v787 = vpop.trf.xlu0
        %v788 = vpop.trf.xlu0
        %v789 = vpop.trf.xlu0
        %v790 = vpop.trf.xlu0
        %v791 = vpop.trf.xlu0
        %v792 = vpop.trf.xlu0
        %v793 = vpop.trf.xlu0
        %v794 = vpop.trf.xlu0
        %vm795 = vcmask 64512
        %v797 = vsel %vm795, %v683, 0
        %v800 = vsel %vm795, %v684, 0
        %v803 = vsel %vm795, %v685, 0
        %v806 = vsel %vm795, %v686, 0
        %v809 = vsel %vm795, %v687, 0
        %v812 = vsel %vm795, %v688, 0
        %v815 = vsel %vm795, %v689, 0
        %v818 = vsel %vm795, %v690, 0
        %v821 = vsel %vm795, %v691, 0
        %v824 = vsel %vm795, %v692, 0
        %v827 = vsel %vm795, %v693, 0
        %v830 = vsel %vm795, %v694, 0
        %v833 = vsel %vm795, %v695, 0
        %v836 = vsel %vm795, %v696, 0
        %v839 = vsel %vm795, %v697, 0
        %v842 = vsel %vm795, %v698, 0
        %v845 = vsel %vm795, %v715, 0
        %v848 = vsel %vm795, %v716, 0
        %v851 = vsel %vm795, %v717, 0
        %v854 = vsel %vm795, %v718, 0
        %v857 = vsel %vm795, %v719, 0
        %v860 = vsel %vm795, %v720, 0
        %v863 = vsel %vm795, %v721, 0
        %v866 = vsel %vm795, %v722, 0
        %v869 = vsel %vm795, %v723, 0
        %v872 = vsel %vm795, %v724, 0
        %v875 = vsel %vm795, %v725, 0
        %v878 = vsel %vm795, %v726, 0
        %v881 = vsel %vm795, %v727, 0
        %v884 = vsel %vm795, %v728, 0
        %v887 = vsel %vm795, %v729, 0
        %v890 = vsel %vm795, %v730, 0
        %v893 = vsel %vm795, %v747, 0
        %v896 = vsel %vm795, %v748, 0
        %v899 = vsel %vm795, %v749, 0
        %v902 = vsel %vm795, %v750, 0
        %v905 = vsel %vm795, %v751, 0
        %v908 = vsel %vm795, %v752, 0
        %v911 = vsel %vm795, %v753, 0
        %v914 = vsel %vm795, %v754, 0
        %v917 = vsel %vm795, %v755, 0
        %v920 = vsel %vm795, %v756, 0
        %v923 = vsel %vm795, %v757, 0
        %v926 = vsel %vm795, %v758, 0
        %v929 = vsel %vm795, %v759, 0
        %v932 = vsel %vm795, %v760, 0
        %v935 = vsel %vm795, %v761, 0
        %v938 = vsel %vm795, %v762, 0
        %v941 = vsel %vm795, %v779, 0
        %v944 = vsel %vm795, %v780, 0
        %v947 = vsel %vm795, %v781, 0
        %v950 = vsel %vm795, %v782, 0
        %v953 = vsel %vm795, %v783, 0
        %v956 = vsel %vm795, %v784, 0
        %v959 = vsel %vm795, %v785, 0
        %v962 = vsel %vm795, %v786, 0
        %v965 = vsel %vm795, %v787, 0
        %v968 = vsel %vm795, %v788, 0
        %v971 = vsel %vm795, %v789, 0
        %v974 = vsel %vm795, %v790, 0
        %v977 = vsel %vm795, %v791, 0
        %v980 = vsel %vm795, %v792, 0
        %v983 = vsel %vm795, %v793, 0
        %v986 = vsel %vm795, %v794, 0
        %988 = vmatpush.msra.mxu0 0.0
        %989 = vmatpush.msra.mxu0 0.0
        %990 = vmatpush.msra.mxu0 0.0
        %991 = vmatpush.msra.mxu0 0.0
        %992 = vmatpush.msra.mxu0 0.0
        %993 = vmatpush.msra.mxu0 0.0
        %994 = vmatpush.msra.mxu0 0.0
        %995 = vmatpush.msra.mxu0 0.0
        %996 = vmatpush.msra.mxu0 0.0
        %997 = vmatpush.msra.mxu0 0.0
        %998 = vmatpush.msra.mxu0 0.0
        %999 = vmatpush.msra.mxu0 0.0
        %1000 = vmatpush.msra.mxu0 0.0
        %1001 = vmatpush.msra.mxu0 0.0
        %1002 = vmatpush.msra.mxu0 0.0
        %1003 = vmatpush.msra.mxu0 %v663
        %1004 = vmatmul.f32.gmra.mxu0 %v797
        %v1005 = vpop.f32.mrf.mxu0
        %v1006 = vadd.f32 0.0, %v1005
        %1007 = vmatmul.f32.gmra.mxu0 %v800
        %v1008 = vpop.f32.mrf.mxu0
        %v1009 = vadd.f32 0.0, %v1008
        %1010 = vmatmul.f32.gmra.mxu0 %v803
        %v1011 = vpop.f32.mrf.mxu0
        %v1012 = vadd.f32 0.0, %v1011
        %1013 = vmatmul.f32.gmra.mxu0 %v806
        %v1014 = vpop.f32.mrf.mxu0
        %v1015 = vadd.f32 0.0, %v1014
        %1016 = vmatmul.f32.gmra.mxu0 %v809
        %v1017 = vpop.f32.mrf.mxu0
        %v1018 = vadd.f32 0.0, %v1017
        %1019 = vmatmul.f32.gmra.mxu0 %v812
        %v1020 = vpop.f32.mrf.mxu0
        %v1021 = vadd.f32 0.0, %v1020
        %1022 = vmatmul.f32.gmra.mxu0 %v815
        %v1023 = vpop.f32.mrf.mxu0
        %v1024 = vadd.f32 0.0, %v1023
        %1025 = vmatmul.f32.gmra.mxu0 %v818
        %v1026 = vpop.f32.mrf.mxu0
        %v1027 = vadd.f32 0.0, %v1026
        %1028 = vmatmul.f32.gmra.mxu0 %v821
        %v1029 = vpop.f32.mrf.mxu0
        %v1030 = vadd.f32 0.0, %v1029
        %1031 = vmatmul.f32.gmra.mxu0 %v824
        %v1032 = vpop.f32.mrf.mxu0
        %v1033 = vadd.f32 0.0, %v1032
        %1034 = vmatmul.f32.gmra.mxu0 %v827
        %v1035 = vpop.f32.mrf.mxu0
        %v1036 = vadd.f32 0.0, %v1035
        %1037 = vmatmul.f32.gmra.mxu0 %v830
        %v1038 = vpop.f32.mrf.mxu0
        %v1039 = vadd.f32 0.0, %v1038
        %1040 = vmatmul.f32.gmra.mxu0 %v833
        %v1041 = vpop.f32.mrf.mxu0
        %v1042 = vadd.f32 0.0, %v1041
        %1043 = vmatmul.f32.gmra.mxu0 %v836
        %v1044 = vpop.f32.mrf.mxu0
        %v1045 = vadd.f32 0.0, %v1044
        %1046 = vmatmul.f32.gmra.mxu0 %v839
        %v1047 = vpop.f32.mrf.mxu0
        %v1048 = vadd.f32 0.0, %v1047
        %1049 = vmatmul.f32.gmra.mxu0 %v842
        %v1050 = vpop.f32.mrf.mxu0
        %v1051 = vadd.f32 0.0, %v1050
        %1052 = vmatmul.f32.gmra.mxu0 %v845
        %v1053 = vpop.f32.mrf.mxu0
        %v1054 = vadd.f32 0.0, %v1053
        %1055 = vmatmul.f32.gmra.mxu0 %v848
        %v1056 = vpop.f32.mrf.mxu0
        %v1057 = vadd.f32 0.0, %v1056
        %1058 = vmatmul.f32.gmra.mxu0 %v851
        %v1059 = vpop.f32.mrf.mxu0
        %v1060 = vadd.f32 0.0, %v1059
        %1061 = vmatmul.f32.gmra.mxu0 %v854
        %v1062 = vpop.f32.mrf.mxu0
        %v1063 = vadd.f32 0.0, %v1062
        %1064 = vmatmul.f32.gmra.mxu0 %v857
        %v1065 = vpop.f32.mrf.mxu0
        %v1066 = vadd.f32 0.0, %v1065
        %1067 = vmatmul.f32.gmra.mxu0 %v860
        %v1068 = vpop.f32.mrf.mxu0
        %v1069 = vadd.f32 0.0, %v1068
        %1070 = vmatmul.f32.gmra.mxu0 %v863
        %v1071 = vpop.f32.mrf.mxu0
        %v1072 = vadd.f32 0.0, %v1071
        %1073 = vmatmul.f32.gmra.mxu0 %v866
        %v1074 = vpop.f32.mrf.mxu0
        %v1075 = vadd.f32 0.0, %v1074
        %1076 = vmatmul.f32.gmra.mxu0 %v869
        %v1077 = vpop.f32.mrf.mxu0
        %v1078 = vadd.f32 0.0, %v1077
        %1079 = vmatmul.f32.gmra.mxu0 %v872
        %v1080 = vpop.f32.mrf.mxu0
        %v1081 = vadd.f32 0.0, %v1080
        %1082 = vmatmul.f32.gmra.mxu0 %v875
        %v1083 = vpop.f32.mrf.mxu0
        %v1084 = vadd.f32 0.0, %v1083
        %1085 = vmatmul.f32.gmra.mxu0 %v878
        %v1086 = vpop.f32.mrf.mxu0
        %v1087 = vadd.f32 0.0, %v1086
        %1088 = vmatmul.f32.gmra.mxu0 %v881
        %v1089 = vpop.f32.mrf.mxu0
        %v1090 = vadd.f32 0.0, %v1089
        %1091 = vmatmul.f32.gmra.mxu0 %v884
        %v1092 = vpop.f32.mrf.mxu0
        %v1093 = vadd.f32 0.0, %v1092
        %1094 = vmatmul.f32.gmra.mxu0 %v887
        %v1095 = vpop.f32.mrf.mxu0
        %v1096 = vadd.f32 0.0, %v1095
        %1097 = vmatmul.f32.gmra.mxu0 %v890
        %v1098 = vpop.f32.mrf.mxu0
        %v1099 = vadd.f32 0.0, %v1098
        %1100 = vmatmul.f32.gmra.mxu0 %v893
        %v1101 = vpop.f32.mrf.mxu0
        %v1102 = vadd.f32 0.0, %v1101
        %1103 = vmatmul.f32.gmra.mxu0 %v896
        %v1104 = vpop.f32.mrf.mxu0
        %v1105 = vadd.f32 0.0, %v1104
        %1106 = vmatmul.f32.gmra.mxu0 %v899
        %v1107 = vpop.f32.mrf.mxu0
        %v1108 = vadd.f32 0.0, %v1107
        %1109 = vmatmul.f32.gmra.mxu0 %v902
        %v1110 = vpop.f32.mrf.mxu0
        %v1111 = vadd.f32 0.0, %v1110
        %1112 = vmatmul.f32.gmra.mxu0 %v905
        %v1113 = vpop.f32.mrf.mxu0
        %v1114 = vadd.f32 0.0, %v1113
        %1115 = vmatmul.f32.gmra.mxu0 %v908
        %v1116 = vpop.f32.mrf.mxu0
        %v1117 = vadd.f32 0.0, %v1116
        %1118 = vmatmul.f32.gmra.mxu0 %v911
        %v1119 = vpop.f32.mrf.mxu0
        %v1120 = vadd.f32 0.0, %v1119
        %1121 = vmatmul.f32.gmra.mxu0 %v914
        %v1122 = vpop.f32.mrf.mxu0
        %v1123 = vadd.f32 0.0, %v1122
        %1124 = vmatmul.f32.gmra.mxu0 %v917
        %v1125 = vpop.f32.mrf.mxu0
        %v1126 = vadd.f32 0.0, %v1125
        %1127 = vmatmul.f32.gmra.mxu0 %v920
        %v1128 = vpop.f32.mrf.mxu0
        %v1129 = vadd.f32 0.0, %v1128
        %1130 = vmatmul.f32.gmra.mxu0 %v923
        %v1131 = vpop.f32.mrf.mxu0
        %v1132 = vadd.f32 0.0, %v1131
        %1133 = vmatmul.f32.gmra.mxu0 %v926
        %v1134 = vpop.f32.mrf.mxu0
        %v1135 = vadd.f32 0.0, %v1134
        %1136 = vmatmul.f32.gmra.mxu0 %v929
        %v1137 = vpop.f32.mrf.mxu0
        %v1138 = vadd.f32 0.0, %v1137
        %1139 = vmatmul.f32.gmra.mxu0 %v932
        %v1140 = vpop.f32.mrf.mxu0
        %v1141 = vadd.f32 0.0, %v1140
        %1142 = vmatmul.f32.gmra.mxu0 %v935
        %v1143 = vpop.f32.mrf.mxu0
        %v1144 = vadd.f32 0.0, %v1143
        %1145 = vmatmul.f32.gmra.mxu0 %v938
        %v1146 = vpop.f32.mrf.mxu0
        %v1147 = vadd.f32 0.0, %v1146
        %1148 = vmatmul.f32.gmra.mxu0 %v941
        %v1149 = vpop.f32.mrf.mxu0
        %v1150 = vadd.f32 0.0, %v1149
        %1151 = vmatmul.f32.gmra.mxu0 %v944
        %v1152 = vpop.f32.mrf.mxu0
        %v1153 = vadd.f32 0.0, %v1152
        %1154 = vmatmul.f32.gmra.mxu0 %v947
        %v1155 = vpop.f32.mrf.mxu0
        %v1156 = vadd.f32 0.0, %v1155
        %1157 = vmatmul.f32.gmra.mxu0 %v950
        %v1158 = vpop.f32.mrf.mxu0
        %v1159 = vadd.f32 0.0, %v1158
        %1160 = vmatmul.f32.gmra.mxu0 %v953
        %v1161 = vpop.f32.mrf.mxu0
        %v1162 = vadd.f32 0.0, %v1161
        %1163 = vmatmul.f32.gmra.mxu0 %v956
        %v1164 = vpop.f32.mrf.mxu0
        %v1165 = vadd.f32 0.0, %v1164
        %1166 = vmatmul.f32.gmra.mxu0 %v959
        %v1167 = vpop.f32.mrf.mxu0
        %v1168 = vadd.f32 0.0, %v1167
        %1169 = vmatmul.f32.gmra.mxu0 %v962
        %v1170 = vpop.f32.mrf.mxu0
        %v1171 = vadd.f32 0.0, %v1170
        %1172 = vmatmul.f32.gmra.mxu0 %v965
        %v1173 = vpop.f32.mrf.mxu0
        %v1174 = vadd.f32 0.0, %v1173
        %1175 = vmatmul.f32.gmra.mxu0 %v968
        %v1176 = vpop.f32.mrf.mxu0
        %v1177 = vadd.f32 0.0, %v1176
        %1178 = vmatmul.f32.gmra.mxu0 %v971
        %v1179 = vpop.f32.mrf.mxu0
        %v1180 = vadd.f32 0.0, %v1179
        %1181 = vmatmul.f32.gmra.mxu0 %v974
        %v1182 = vpop.f32.mrf.mxu0
        %v1183 = vadd.f32 0.0, %v1182
        %1184 = vmatmul.f32.gmra.mxu0 %v977
        %v1185 = vpop.f32.mrf.mxu0
        %v1186 = vadd.f32 0.0, %v1185
        %1187 = vmatmul.f32.gmra.mxu0 %v980
        %v1188 = vpop.f32.mrf.mxu0
        %v1189 = vadd.f32 0.0, %v1188
        %1190 = vmatmul.f32.gmra.mxu0 %v983
        %v1191 = vpop.f32.mrf.mxu0
        %v1192 = vadd.f32 0.0, %v1191
        %1193 = vmatmul.f32.gmra.mxu0 %v986
        %v1194 = vpop.f32.mrf.mxu0
        %v1195 = vadd.f32 0.0, %v1194
        %1196 = vdwg.mxu0
        %1197 = vmatpush.msra.mxu0 0.0
        %1198 = vmatpush.msra.mxu0 0.0
        %1199 = vmatpush.msra.mxu0 0.0
        %1200 = vmatpush.msra.mxu0 0.0
        %1201 = vmatpush.msra.mxu0 0.0
        %1202 = vmatpush.msra.mxu0 0.0
        %1203 = vmatpush.msra.mxu0 0.0
        %1204 = vmatpush.msra.mxu0 0.0
        %1205 = vmatpush.msra.mxu0 0.0
        %1206 = vmatpush.msra.mxu0 0.0
        %1207 = vmatpush.msra.mxu0 0.0
        %1208 = vmatpush.msra.mxu0 0.0
        %1209 = vmatpush.msra.mxu0 0.0
        %1210 = vmatpush.msra.mxu0 0.0
        %1211 = vmatpush.msra.mxu0 0.0
        %1212 = vmatpush.msra.mxu0 %v664
        %1213 = vmatmul.f32.gmra.mxu0 %v797
        %v1214 = vpop.f32.mrf.mxu0
        %v1215 = vadd.f32 0.0, %v1214
        %1216 = vmatmul.f32.gmra.mxu0 %v800
        %v1217 = vpop.f32.mrf.mxu0
        %v1218 = vadd.f32 0.0, %v1217
        %1219 = vmatmul.f32.gmra.mxu0 %v803
        %v1220 = vpop.f32.mrf.mxu0
        %v1221 = vadd.f32 0.0, %v1220
        %1222 = vmatmul.f32.gmra.mxu0 %v806
        %v1223 = vpop.f32.mrf.mxu0
        %v1224 = vadd.f32 0.0, %v1223
        %1225 = vmatmul.f32.gmra.mxu0 %v809
        %v1226 = vpop.f32.mrf.mxu0
        %v1227 = vadd.f32 0.0, %v1226
        %1228 = vmatmul.f32.gmra.mxu0 %v812
        %v1229 = vpop.f32.mrf.mxu0
        %v1230 = vadd.f32 0.0, %v1229
        %1231 = vmatmul.f32.gmra.mxu0 %v815
        %v1232 = vpop.f32.mrf.mxu0
        %v1233 = vadd.f32 0.0, %v1232
        %1234 = vmatmul.f32.gmra.mxu0 %v818
        %v1235 = vpop.f32.mrf.mxu0
        %v1236 = vadd.f32 0.0, %v1235
        %1237 = vmatmul.f32.gmra.mxu0 %v821
        %v1238 = vpop.f32.mrf.mxu0
        %v1239 = vadd.f32 0.0, %v1238
        %1240 = vmatmul.f32.gmra.mxu0 %v824
        %v1241 = vpop.f32.mrf.mxu0
        %v1242 = vadd.f32 0.0, %v1241
        %1243 = vmatmul.f32.gmra.mxu0 %v827
        %v1244 = vpop.f32.mrf.mxu0
        %v1245 = vadd.f32 0.0, %v1244
        %1246 = vmatmul.f32.gmra.mxu0 %v830
        %v1247 = vpop.f32.mrf.mxu0
        %v1248 = vadd.f32 0.0, %v1247
        %1249 = vmatmul.f32.gmra.mxu0 %v833
        %v1250 = vpop.f32.mrf.mxu0
        %v1251 = vadd.f32 0.0, %v1250
        %1252 = vmatmul.f32.gmra.mxu0 %v836
        %v1253 = vpop.f32.mrf.mxu0
        %v1254 = vadd.f32 0.0, %v1253
        %1255 = vmatmul.f32.gmra.mxu0 %v839
        %v1256 = vpop.f32.mrf.mxu0
        %v1257 = vadd.f32 0.0, %v1256
        %1258 = vmatmul.f32.gmra.mxu0 %v842
        %v1259 = vpop.f32.mrf.mxu0
        %v1260 = vadd.f32 0.0, %v1259
        %1261 = vmatmul.f32.gmra.mxu0 %v845
        %v1262 = vpop.f32.mrf.mxu0
        %v1263 = vadd.f32 0.0, %v1262
        %1264 = vmatmul.f32.gmra.mxu0 %v848
        %v1265 = vpop.f32.mrf.mxu0
        %v1266 = vadd.f32 0.0, %v1265
        %1267 = vmatmul.f32.gmra.mxu0 %v851
        %v1268 = vpop.f32.mrf.mxu0
        %v1269 = vadd.f32 0.0, %v1268
        %1270 = vmatmul.f32.gmra.mxu0 %v854
        %v1271 = vpop.f32.mrf.mxu0
        %v1272 = vadd.f32 0.0, %v1271
        %1273 = vmatmul.f32.gmra.mxu0 %v857
        %v1274 = vpop.f32.mrf.mxu0
        %v1275 = vadd.f32 0.0, %v1274
        %1276 = vmatmul.f32.gmra.mxu0 %v860
        %v1277 = vpop.f32.mrf.mxu0
        %v1278 = vadd.f32 0.0, %v1277
        %1279 = vmatmul.f32.gmra.mxu0 %v863
        %v1280 = vpop.f32.mrf.mxu0
        %v1281 = vadd.f32 0.0, %v1280
        %1282 = vmatmul.f32.gmra.mxu0 %v866
        %v1283 = vpop.f32.mrf.mxu0
        %v1284 = vadd.f32 0.0, %v1283
        %1285 = vmatmul.f32.gmra.mxu0 %v869
        %v1286 = vpop.f32.mrf.mxu0
        %v1287 = vadd.f32 0.0, %v1286
        %1288 = vmatmul.f32.gmra.mxu0 %v872
        %v1289 = vpop.f32.mrf.mxu0
        %v1290 = vadd.f32 0.0, %v1289
        %1291 = vmatmul.f32.gmra.mxu0 %v875
        %v1292 = vpop.f32.mrf.mxu0
        %v1293 = vadd.f32 0.0, %v1292
        %1294 = vmatmul.f32.gmra.mxu0 %v878
        %v1295 = vpop.f32.mrf.mxu0
        %v1296 = vadd.f32 0.0, %v1295
        %1297 = vmatmul.f32.gmra.mxu0 %v881
        %v1298 = vpop.f32.mrf.mxu0
        %v1299 = vadd.f32 0.0, %v1298
        %1300 = vmatmul.f32.gmra.mxu0 %v884
        %v1301 = vpop.f32.mrf.mxu0
        %v1302 = vadd.f32 0.0, %v1301
        %1303 = vmatmul.f32.gmra.mxu0 %v887
        %v1304 = vpop.f32.mrf.mxu0
        %v1305 = vadd.f32 0.0, %v1304
        %1306 = vmatmul.f32.gmra.mxu0 %v890
        %v1307 = vpop.f32.mrf.mxu0
        %v1308 = vadd.f32 0.0, %v1307
        %1309 = vmatmul.f32.gmra.mxu0 %v893
        %v1310 = vpop.f32.mrf.mxu0
        %v1311 = vadd.f32 0.0, %v1310
        %1312 = vmatmul.f32.gmra.mxu0 %v896
        %v1313 = vpop.f32.mrf.mxu0
        %v1314 = vadd.f32 0.0, %v1313
        %1315 = vmatmul.f32.gmra.mxu0 %v899
        %v1316 = vpop.f32.mrf.mxu0
        %v1317 = vadd.f32 0.0, %v1316
        %1318 = vmatmul.f32.gmra.mxu0 %v902
        %v1319 = vpop.f32.mrf.mxu0
        %v1320 = vadd.f32 0.0, %v1319
        %1321 = vmatmul.f32.gmra.mxu0 %v905
        %v1322 = vpop.f32.mrf.mxu0
        %v1323 = vadd.f32 0.0, %v1322
        %1324 = vmatmul.f32.gmra.mxu0 %v908
        %v1325 = vpop.f32.mrf.mxu0
        %v1326 = vadd.f32 0.0, %v1325
        %1327 = vmatmul.f32.gmra.mxu0 %v911
        %v1328 = vpop.f32.mrf.mxu0
        %v1329 = vadd.f32 0.0, %v1328
        %1330 = vmatmul.f32.gmra.mxu0 %v914
        %v1331 = vpop.f32.mrf.mxu0
        %v1332 = vadd.f32 0.0, %v1331
        %1333 = vmatmul.f32.gmra.mxu0 %v917
        %v1334 = vpop.f32.mrf.mxu0
        %v1335 = vadd.f32 0.0, %v1334
        %1336 = vmatmul.f32.gmra.mxu0 %v920
        %v1337 = vpop.f32.mrf.mxu0
        %v1338 = vadd.f32 0.0, %v1337
        %1339 = vmatmul.f32.gmra.mxu0 %v923
        %v1340 = vpop.f32.mrf.mxu0
        %v1341 = vadd.f32 0.0, %v1340
        %1342 = vmatmul.f32.gmra.mxu0 %v926
        %v1343 = vpop.f32.mrf.mxu0
        %v1344 = vadd.f32 0.0, %v1343
        %1345 = vmatmul.f32.gmra.mxu0 %v929
        %v1346 = vpop.f32.mrf.mxu0
        %v1347 = vadd.f32 0.0, %v1346
        %1348 = vmatmul.f32.gmra.mxu0 %v932
        %v1349 = vpop.f32.mrf.mxu0
        %v1350 = vadd.f32 0.0, %v1349
        %1351 = vmatmul.f32.gmra.mxu0 %v935
        %v1352 = vpop.f32.mrf.mxu0
        %v1353 = vadd.f32 0.0, %v1352
        %1354 = vmatmul.f32.gmra.mxu0 %v938
        %v1355 = vpop.f32.mrf.mxu0
        %v1356 = vadd.f32 0.0, %v1355
        %1357 = vmatmul.f32.gmra.mxu0 %v941
        %v1358 = vpop.f32.mrf.mxu0
        %v1359 = vadd.f32 0.0, %v1358
        %1360 = vmatmul.f32.gmra.mxu0 %v944
        %v1361 = vpop.f32.mrf.mxu0
        %v1362 = vadd.f32 0.0, %v1361
        %1363 = vmatmul.f32.gmra.mxu0 %v947
        %v1364 = vpop.f32.mrf.mxu0
        %v1365 = vadd.f32 0.0, %v1364
        %1366 = vmatmul.f32.gmra.mxu0 %v950
        %v1367 = vpop.f32.mrf.mxu0
        %v1368 = vadd.f32 0.0, %v1367
        %1369 = vmatmul.f32.gmra.mxu0 %v953
        %v1370 = vpop.f32.mrf.mxu0
        %v1371 = vadd.f32 0.0, %v1370
        %1372 = vmatmul.f32.gmra.mxu0 %v956
        %v1373 = vpop.f32.mrf.mxu0
        %v1374 = vadd.f32 0.0, %v1373
        %1375 = vmatmul.f32.gmra.mxu0 %v959
        %v1376 = vpop.f32.mrf.mxu0
        %v1377 = vadd.f32 0.0, %v1376
        %1378 = vmatmul.f32.gmra.mxu0 %v962
        %v1379 = vpop.f32.mrf.mxu0
        %v1380 = vadd.f32 0.0, %v1379
        %1381 = vmatmul.f32.gmra.mxu0 %v965
        %v1382 = vpop.f32.mrf.mxu0
        %v1383 = vadd.f32 0.0, %v1382
        %1384 = vmatmul.f32.gmra.mxu0 %v968
        %v1385 = vpop.f32.mrf.mxu0
        %v1386 = vadd.f32 0.0, %v1385
        %1387 = vmatmul.f32.gmra.mxu0 %v971
        %v1388 = vpop.f32.mrf.mxu0
        %v1389 = vadd.f32 0.0, %v1388
        %1390 = vmatmul.f32.gmra.mxu0 %v974
        %v1391 = vpop.f32.mrf.mxu0
        %v1392 = vadd.f32 0.0, %v1391
        %1393 = vmatmul.f32.gmra.mxu0 %v977
        %v1394 = vpop.f32.mrf.mxu0
        %v1395 = vadd.f32 0.0, %v1394
        %1396 = vmatmul.f32.gmra.mxu0 %v980
        %v1397 = vpop.f32.mrf.mxu0
        %v1398 = vadd.f32 0.0, %v1397
        %1399 = vmatmul.f32.gmra.mxu0 %v983
        %v1400 = vpop.f32.mrf.mxu0
        %v1401 = vadd.f32 0.0, %v1400
        %1402 = vmatmul.f32.gmra.mxu0 %v986
        %v1403 = vpop.f32.mrf.mxu0
        %v1404 = vadd.f32 0.0, %v1403
        %1405 = vdwg.mxu0
        %1406 = vmatpush.msra.mxu0 0.0
        %1407 = vmatpush.msra.mxu0 0.0
        %1408 = vmatpush.msra.mxu0 0.0
        %1409 = vmatpush.msra.mxu0 0.0
        %1410 = vmatpush.msra.mxu0 0.0
        %1411 = vmatpush.msra.mxu0 0.0
        %1412 = vmatpush.msra.mxu0 0.0
        %1413 = vmatpush.msra.mxu0 0.0
        %1414 = vmatpush.msra.mxu0 0.0
        %1415 = vmatpush.msra.mxu0 0.0
        %1416 = vmatpush.msra.mxu0 0.0
        %1417 = vmatpush.msra.mxu0 0.0
        %1418 = vmatpush.msra.mxu0 0.0
        %1419 = vmatpush.msra.mxu0 0.0
        %1420 = vmatpush.msra.mxu0 0.0
        %1421 = vmatpush.msra.mxu0 %v665
        %1422 = vmatmul.f32.gmra.mxu0 %v797
        %v1423 = vpop.f32.mrf.mxu0
        %v1424 = vadd.f32 0.0, %v1423
        %1425 = vmatmul.f32.gmra.mxu0 %v800
        %v1426 = vpop.f32.mrf.mxu0
        %v1427 = vadd.f32 0.0, %v1426
        %1428 = vmatmul.f32.gmra.mxu0 %v803
        %v1429 = vpop.f32.mrf.mxu0
        %v1430 = vadd.f32 0.0, %v1429
        %1431 = vmatmul.f32.gmra.mxu0 %v806
        %v1432 = vpop.f32.mrf.mxu0
        %v1433 = vadd.f32 0.0, %v1432
        %1434 = vmatmul.f32.gmra.mxu0 %v809
        %v1435 = vpop.f32.mrf.mxu0
        %v1436 = vadd.f32 0.0, %v1435
        %1437 = vmatmul.f32.gmra.mxu0 %v812
        %v1438 = vpop.f32.mrf.mxu0
        %v1439 = vadd.f32 0.0, %v1438
        %1440 = vmatmul.f32.gmra.mxu0 %v815
        %v1441 = vpop.f32.mrf.mxu0
        %v1442 = vadd.f32 0.0, %v1441
        %1443 = vmatmul.f32.gmra.mxu0 %v818
        %v1444 = vpop.f32.mrf.mxu0
        %v1445 = vadd.f32 0.0, %v1444
        %1446 = vmatmul.f32.gmra.mxu0 %v821
        %v1447 = vpop.f32.mrf.mxu0
        %v1448 = vadd.f32 0.0, %v1447
        %1449 = vmatmul.f32.gmra.mxu0 %v824
        %v1450 = vpop.f32.mrf.mxu0
        %v1451 = vadd.f32 0.0, %v1450
        %1452 = vmatmul.f32.gmra.mxu0 %v827
        %v1453 = vpop.f32.mrf.mxu0
        %v1454 = vadd.f32 0.0, %v1453
        %1455 = vmatmul.f32.gmra.mxu0 %v830
        %v1456 = vpop.f32.mrf.mxu0
        %v1457 = vadd.f32 0.0, %v1456
        %1458 = vmatmul.f32.gmra.mxu0 %v833
        %v1459 = vpop.f32.mrf.mxu0
        %v1460 = vadd.f32 0.0, %v1459
        %1461 = vmatmul.f32.gmra.mxu0 %v836
        %v1462 = vpop.f32.mrf.mxu0
        %v1463 = vadd.f32 0.0, %v1462
        %1464 = vmatmul.f32.gmra.mxu0 %v839
        %v1465 = vpop.f32.mrf.mxu0
        %v1466 = vadd.f32 0.0, %v1465
        %1467 = vmatmul.f32.gmra.mxu0 %v842
        %v1468 = vpop.f32.mrf.mxu0
        %v1469 = vadd.f32 0.0, %v1468
        %1470 = vmatmul.f32.gmra.mxu0 %v845
        %v1471 = vpop.f32.mrf.mxu0
        %v1472 = vadd.f32 0.0, %v1471
        %1473 = vmatmul.f32.gmra.mxu0 %v848
        %v1474 = vpop.f32.mrf.mxu0
        %v1475 = vadd.f32 0.0, %v1474
        %1476 = vmatmul.f32.gmra.mxu0 %v851
        %v1477 = vpop.f32.mrf.mxu0
        %v1478 = vadd.f32 0.0, %v1477
        %1479 = vmatmul.f32.gmra.mxu0 %v854
        %v1480 = vpop.f32.mrf.mxu0
        %v1481 = vadd.f32 0.0, %v1480
        %1482 = vmatmul.f32.gmra.mxu0 %v857
        %v1483 = vpop.f32.mrf.mxu0
        %v1484 = vadd.f32 0.0, %v1483
        %1485 = vmatmul.f32.gmra.mxu0 %v860
        %v1486 = vpop.f32.mrf.mxu0
        %v1487 = vadd.f32 0.0, %v1486
        %1488 = vmatmul.f32.gmra.mxu0 %v863
        %v1489 = vpop.f32.mrf.mxu0
        %v1490 = vadd.f32 0.0, %v1489
        %1491 = vmatmul.f32.gmra.mxu0 %v866
        %v1492 = vpop.f32.mrf.mxu0
        %v1493 = vadd.f32 0.0, %v1492
        %1494 = vmatmul.f32.gmra.mxu0 %v869
        %v1495 = vpop.f32.mrf.mxu0
        %v1496 = vadd.f32 0.0, %v1495
        %1497 = vmatmul.f32.gmra.mxu0 %v872
        %v1498 = vpop.f32.mrf.mxu0
        %v1499 = vadd.f32 0.0, %v1498
        %1500 = vmatmul.f32.gmra.mxu0 %v875
        %v1501 = vpop.f32.mrf.mxu0
        %v1502 = vadd.f32 0.0, %v1501
        %1503 = vmatmul.f32.gmra.mxu0 %v878
        %v1504 = vpop.f32.mrf.mxu0
        %v1505 = vadd.f32 0.0, %v1504
        %1506 = vmatmul.f32.gmra.mxu0 %v881
        %v1507 = vpop.f32.mrf.mxu0
        %v1508 = vadd.f32 0.0, %v1507
        %1509 = vmatmul.f32.gmra.mxu0 %v884
        %v1510 = vpop.f32.mrf.mxu0
        %v1511 = vadd.f32 0.0, %v1510
        %1512 = vmatmul.f32.gmra.mxu0 %v887
        %v1513 = vpop.f32.mrf.mxu0
        %v1514 = vadd.f32 0.0, %v1513
        %1515 = vmatmul.f32.gmra.mxu0 %v890
        %v1516 = vpop.f32.mrf.mxu0
        %v1517 = vadd.f32 0.0, %v1516
        %1518 = vmatmul.f32.gmra.mxu0 %v893
        %v1519 = vpop.f32.mrf.mxu0
        %v1520 = vadd.f32 0.0, %v1519
        %1521 = vmatmul.f32.gmra.mxu0 %v896
        %v1522 = vpop.f32.mrf.mxu0
        %v1523 = vadd.f32 0.0, %v1522
        %1524 = vmatmul.f32.gmra.mxu0 %v899
        %v1525 = vpop.f32.mrf.mxu0
        %v1526 = vadd.f32 0.0, %v1525
        %1527 = vmatmul.f32.gmra.mxu0 %v902
        %v1528 = vpop.f32.mrf.mxu0
        %v1529 = vadd.f32 0.0, %v1528
        %1530 = vmatmul.f32.gmra.mxu0 %v905
        %v1531 = vpop.f32.mrf.mxu0
        %v1532 = vadd.f32 0.0, %v1531
        %1533 = vmatmul.f32.gmra.mxu0 %v908
        %v1534 = vpop.f32.mrf.mxu0
        %v1535 = vadd.f32 0.0, %v1534
        %1536 = vmatmul.f32.gmra.mxu0 %v911
        %v1537 = vpop.f32.mrf.mxu0
        %v1538 = vadd.f32 0.0, %v1537
        %1539 = vmatmul.f32.gmra.mxu0 %v914
        %v1540 = vpop.f32.mrf.mxu0
        %v1541 = vadd.f32 0.0, %v1540
        %1542 = vmatmul.f32.gmra.mxu0 %v917
        %v1543 = vpop.f32.mrf.mxu0
        %v1544 = vadd.f32 0.0, %v1543
        %1545 = vmatmul.f32.gmra.mxu0 %v920
        %v1546 = vpop.f32.mrf.mxu0
        %v1547 = vadd.f32 0.0, %v1546
        %1548 = vmatmul.f32.gmra.mxu0 %v923
        %v1549 = vpop.f32.mrf.mxu0
        %v1550 = vadd.f32 0.0, %v1549
        %1551 = vmatmul.f32.gmra.mxu0 %v926
        %v1552 = vpop.f32.mrf.mxu0
        %v1553 = vadd.f32 0.0, %v1552
        %1554 = vmatmul.f32.gmra.mxu0 %v929
        %v1555 = vpop.f32.mrf.mxu0
        %v1556 = vadd.f32 0.0, %v1555
        %1557 = vmatmul.f32.gmra.mxu0 %v932
        %v1558 = vpop.f32.mrf.mxu0
        %v1559 = vadd.f32 0.0, %v1558
        %1560 = vmatmul.f32.gmra.mxu0 %v935
        %v1561 = vpop.f32.mrf.mxu0
        %v1562 = vadd.f32 0.0, %v1561
        %1563 = vmatmul.f32.gmra.mxu0 %v938
        %v1564 = vpop.f32.mrf.mxu0
        %v1565 = vadd.f32 0.0, %v1564
        %1566 = vmatmul.f32.gmra.mxu0 %v941
        %v1567 = vpop.f32.mrf.mxu0
        %v1568 = vadd.f32 0.0, %v1567
        %1569 = vmatmul.f32.gmra.mxu0 %v944
        %v1570 = vpop.f32.mrf.mxu0
        %v1571 = vadd.f32 0.0, %v1570
        %1572 = vmatmul.f32.gmra.mxu0 %v947
        %v1573 = vpop.f32.mrf.mxu0
        %v1574 = vadd.f32 0.0, %v1573
        %1575 = vmatmul.f32.gmra.mxu0 %v950
        %v1576 = vpop.f32.mrf.mxu0
        %v1577 = vadd.f32 0.0, %v1576
        %1578 = vmatmul.f32.gmra.mxu0 %v953
        %v1579 = vpop.f32.mrf.mxu0
        %v1580 = vadd.f32 0.0, %v1579
        %1581 = vmatmul.f32.gmra.mxu0 %v956
        %v1582 = vpop.f32.mrf.mxu0
        %v1583 = vadd.f32 0.0, %v1582
        %1584 = vmatmul.f32.gmra.mxu0 %v959
        %v1585 = vpop.f32.mrf.mxu0
        %v1586 = vadd.f32 0.0, %v1585
        %1587 = vmatmul.f32.gmra.mxu0 %v962
        %v1588 = vpop.f32.mrf.mxu0
        %v1589 = vadd.f32 0.0, %v1588
        %1590 = vmatmul.f32.gmra.mxu0 %v965
        %v1591 = vpop.f32.mrf.mxu0
        %v1592 = vadd.f32 0.0, %v1591
        %1593 = vmatmul.f32.gmra.mxu0 %v968
        %v1594 = vpop.f32.mrf.mxu0
        %v1595 = vadd.f32 0.0, %v1594
        %1596 = vmatmul.f32.gmra.mxu0 %v971
        %v1597 = vpop.f32.mrf.mxu0
        %v1598 = vadd.f32 0.0, %v1597
        %1599 = vmatmul.f32.gmra.mxu0 %v974
        %v1600 = vpop.f32.mrf.mxu0
        %v1601 = vadd.f32 0.0, %v1600
        %1602 = vmatmul.f32.gmra.mxu0 %v977
        %v1603 = vpop.f32.mrf.mxu0
        %v1604 = vadd.f32 0.0, %v1603
        %1605 = vmatmul.f32.gmra.mxu0 %v980
        %v1606 = vpop.f32.mrf.mxu0
        %v1607 = vadd.f32 0.0, %v1606
        %1608 = vmatmul.f32.gmra.mxu0 %v983
        %v1609 = vpop.f32.mrf.mxu0
        %v1610 = vadd.f32 0.0, %v1609
        %1611 = vmatmul.f32.gmra.mxu0 %v986
        %v1612 = vpop.f32.mrf.mxu0
        %v1613 = vadd.f32 0.0, %v1612
        %1614 = vdwg.mxu0
        %1615 = vmatpush.msra.mxu0 0.0
        %1616 = vmatpush.msra.mxu0 0.0
        %1617 = vmatpush.msra.mxu0 0.0
        %1618 = vmatpush.msra.mxu0 0.0
        %1619 = vmatpush.msra.mxu0 0.0
        %1620 = vmatpush.msra.mxu0 0.0
        %1621 = vmatpush.msra.mxu0 0.0
        %1622 = vmatpush.msra.mxu0 0.0
        %1623 = vmatpush.msra.mxu0 0.0
        %1624 = vmatpush.msra.mxu0 0.0
        %1625 = vmatpush.msra.mxu0 0.0
        %1626 = vmatpush.msra.mxu0 0.0
        %1627 = vmatpush.msra.mxu0 0.0
        %1628 = vmatpush.msra.mxu0 0.0
        %1629 = vmatpush.msra.mxu0 0.0
        %1630 = vmatpush.msra.mxu0 %v666
        %1631 = vmatmul.f32.gmra.mxu0 %v797
        %v1632 = vpop.f32.mrf.mxu0
        %v1633 = vadd.f32 0.0, %v1632
        %1634 = vmatmul.f32.gmra.mxu0 %v800
        %v1635 = vpop.f32.mrf.mxu0
        %v1636 = vadd.f32 0.0, %v1635
        %1637 = vmatmul.f32.gmra.mxu0 %v803
        %v1638 = vpop.f32.mrf.mxu0
        %v1639 = vadd.f32 0.0, %v1638
        %1640 = vmatmul.f32.gmra.mxu0 %v806
        %v1641 = vpop.f32.mrf.mxu0
        %v1642 = vadd.f32 0.0, %v1641
        %1643 = vmatmul.f32.gmra.mxu0 %v809
        %v1644 = vpop.f32.mrf.mxu0
        %v1645 = vadd.f32 0.0, %v1644
        %1646 = vmatmul.f32.gmra.mxu0 %v812
        %v1647 = vpop.f32.mrf.mxu0
        %v1648 = vadd.f32 0.0, %v1647
        %1649 = vmatmul.f32.gmra.mxu0 %v815
        %v1650 = vpop.f32.mrf.mxu0
        %v1651 = vadd.f32 0.0, %v1650
        %1652 = vmatmul.f32.gmra.mxu0 %v818
        %v1653 = vpop.f32.mrf.mxu0
        %v1654 = vadd.f32 0.0, %v1653
        %1655 = vmatmul.f32.gmra.mxu0 %v821
        %v1656 = vpop.f32.mrf.mxu0
        %v1657 = vadd.f32 0.0, %v1656
        %1658 = vmatmul.f32.gmra.mxu0 %v824
        %v1659 = vpop.f32.mrf.mxu0
        %v1660 = vadd.f32 0.0, %v1659
        %1661 = vmatmul.f32.gmra.mxu0 %v827
        %v1662 = vpop.f32.mrf.mxu0
        %v1663 = vadd.f32 0.0, %v1662
        %1664 = vmatmul.f32.gmra.mxu0 %v830
        %v1665 = vpop.f32.mrf.mxu0
        %v1666 = vadd.f32 0.0, %v1665
        %1667 = vmatmul.f32.gmra.mxu0 %v833
        %v1668 = vpop.f32.mrf.mxu0
        %v1669 = vadd.f32 0.0, %v1668
        %1670 = vmatmul.f32.gmra.mxu0 %v836
        %v1671 = vpop.f32.mrf.mxu0
        %v1672 = vadd.f32 0.0, %v1671
        %1673 = vmatmul.f32.gmra.mxu0 %v839
        %v1674 = vpop.f32.mrf.mxu0
        %v1675 = vadd.f32 0.0, %v1674
        %1676 = vmatmul.f32.gmra.mxu0 %v842
        %v1677 = vpop.f32.mrf.mxu0
        %v1678 = vadd.f32 0.0, %v1677
        %1679 = vmatmul.f32.gmra.mxu0 %v845
        %v1680 = vpop.f32.mrf.mxu0
        %v1681 = vadd.f32 0.0, %v1680
        %1682 = vmatmul.f32.gmra.mxu0 %v848
        %v1683 = vpop.f32.mrf.mxu0
        %v1684 = vadd.f32 0.0, %v1683
        %1685 = vmatmul.f32.gmra.mxu0 %v851
        %v1686 = vpop.f32.mrf.mxu0
        %v1687 = vadd.f32 0.0, %v1686
        %1688 = vmatmul.f32.gmra.mxu0 %v854
        %v1689 = vpop.f32.mrf.mxu0
        %v1690 = vadd.f32 0.0, %v1689
        %1691 = vmatmul.f32.gmra.mxu0 %v857
        %v1692 = vpop.f32.mrf.mxu0
        %v1693 = vadd.f32 0.0, %v1692
        %1694 = vmatmul.f32.gmra.mxu0 %v860
        %v1695 = vpop.f32.mrf.mxu0
        %v1696 = vadd.f32 0.0, %v1695
        %1697 = vmatmul.f32.gmra.mxu0 %v863
        %v1698 = vpop.f32.mrf.mxu0
        %v1699 = vadd.f32 0.0, %v1698
        %1700 = vmatmul.f32.gmra.mxu0 %v866
        %v1701 = vpop.f32.mrf.mxu0
        %v1702 = vadd.f32 0.0, %v1701
        %1703 = vmatmul.f32.gmra.mxu0 %v869
        %v1704 = vpop.f32.mrf.mxu0
        %v1705 = vadd.f32 0.0, %v1704
        %1706 = vmatmul.f32.gmra.mxu0 %v872
        %v1707 = vpop.f32.mrf.mxu0
        %v1708 = vadd.f32 0.0, %v1707
        %1709 = vmatmul.f32.gmra.mxu0 %v875
        %v1710 = vpop.f32.mrf.mxu0
        %v1711 = vadd.f32 0.0, %v1710
        %1712 = vmatmul.f32.gmra.mxu0 %v878
        %v1713 = vpop.f32.mrf.mxu0
        %v1714 = vadd.f32 0.0, %v1713
        %1715 = vmatmul.f32.gmra.mxu0 %v881
        %v1716 = vpop.f32.mrf.mxu0
        %v1717 = vadd.f32 0.0, %v1716
        %1718 = vmatmul.f32.gmra.mxu0 %v884
        %v1719 = vpop.f32.mrf.mxu0
        %v1720 = vadd.f32 0.0, %v1719
        %1721 = vmatmul.f32.gmra.mxu0 %v887
        %v1722 = vpop.f32.mrf.mxu0
        %v1723 = vadd.f32 0.0, %v1722
        %1724 = vmatmul.f32.gmra.mxu0 %v890
        %v1725 = vpop.f32.mrf.mxu0
        %v1726 = vadd.f32 0.0, %v1725
        %1727 = vmatmul.f32.gmra.mxu0 %v893
        %v1728 = vpop.f32.mrf.mxu0
        %v1729 = vadd.f32 0.0, %v1728
        %1730 = vmatmul.f32.gmra.mxu0 %v896
        %v1731 = vpop.f32.mrf.mxu0
        %v1732 = vadd.f32 0.0, %v1731
        %1733 = vmatmul.f32.gmra.mxu0 %v899
        %v1734 = vpop.f32.mrf.mxu0
        %v1735 = vadd.f32 0.0, %v1734
        %1736 = vmatmul.f32.gmra.mxu0 %v902
        %v1737 = vpop.f32.mrf.mxu0
        %v1738 = vadd.f32 0.0, %v1737
        %1739 = vmatmul.f32.gmra.mxu0 %v905
        %v1740 = vpop.f32.mrf.mxu0
        %v1741 = vadd.f32 0.0, %v1740
        %1742 = vmatmul.f32.gmra.mxu0 %v908
        %v1743 = vpop.f32.mrf.mxu0
        %v1744 = vadd.f32 0.0, %v1743
        %1745 = vmatmul.f32.gmra.mxu0 %v911
        %v1746 = vpop.f32.mrf.mxu0
        %v1747 = vadd.f32 0.0, %v1746
        %1748 = vmatmul.f32.gmra.mxu0 %v914
        %v1749 = vpop.f32.mrf.mxu0
        %v1750 = vadd.f32 0.0, %v1749
        %1751 = vmatmul.f32.gmra.mxu0 %v917
        %v1752 = vpop.f32.mrf.mxu0
        %v1753 = vadd.f32 0.0, %v1752
        %1754 = vmatmul.f32.gmra.mxu0 %v920
        %v1755 = vpop.f32.mrf.mxu0
        %v1756 = vadd.f32 0.0, %v1755
        %1757 = vmatmul.f32.gmra.mxu0 %v923
        %v1758 = vpop.f32.mrf.mxu0
        %v1759 = vadd.f32 0.0, %v1758
        %1760 = vmatmul.f32.gmra.mxu0 %v926
        %v1761 = vpop.f32.mrf.mxu0
        %v1762 = vadd.f32 0.0, %v1761
        %1763 = vmatmul.f32.gmra.mxu0 %v929
        %v1764 = vpop.f32.mrf.mxu0
        %v1765 = vadd.f32 0.0, %v1764
        %1766 = vmatmul.f32.gmra.mxu0 %v932
        %v1767 = vpop.f32.mrf.mxu0
        %v1768 = vadd.f32 0.0, %v1767
        %1769 = vmatmul.f32.gmra.mxu0 %v935
        %v1770 = vpop.f32.mrf.mxu0
        %v1771 = vadd.f32 0.0, %v1770
        %1772 = vmatmul.f32.gmra.mxu0 %v938
        %v1773 = vpop.f32.mrf.mxu0
        %v1774 = vadd.f32 0.0, %v1773
        %1775 = vmatmul.f32.gmra.mxu0 %v941
        %v1776 = vpop.f32.mrf.mxu0
        %v1777 = vadd.f32 0.0, %v1776
        %1778 = vmatmul.f32.gmra.mxu0 %v944
        %v1779 = vpop.f32.mrf.mxu0
        %v1780 = vadd.f32 0.0, %v1779
        %1781 = vmatmul.f32.gmra.mxu0 %v947
        %v1782 = vpop.f32.mrf.mxu0
        %v1783 = vadd.f32 0.0, %v1782
        %1784 = vmatmul.f32.gmra.mxu0 %v950
        %v1785 = vpop.f32.mrf.mxu0
        %v1786 = vadd.f32 0.0, %v1785
        %1787 = vmatmul.f32.gmra.mxu0 %v953
        %v1788 = vpop.f32.mrf.mxu0
        %v1789 = vadd.f32 0.0, %v1788
        %1790 = vmatmul.f32.gmra.mxu0 %v956
        %v1791 = vpop.f32.mrf.mxu0
        %v1792 = vadd.f32 0.0, %v1791
        %1793 = vmatmul.f32.gmra.mxu0 %v959
        %v1794 = vpop.f32.mrf.mxu0
        %v1795 = vadd.f32 0.0, %v1794
        %1796 = vmatmul.f32.gmra.mxu0 %v962
        %v1797 = vpop.f32.mrf.mxu0
        %v1798 = vadd.f32 0.0, %v1797
        %1799 = vmatmul.f32.gmra.mxu0 %v965
        %v1800 = vpop.f32.mrf.mxu0
        %v1801 = vadd.f32 0.0, %v1800
        %1802 = vmatmul.f32.gmra.mxu0 %v968
        %v1803 = vpop.f32.mrf.mxu0
        %v1804 = vadd.f32 0.0, %v1803
        %1805 = vmatmul.f32.gmra.mxu0 %v971
        %v1806 = vpop.f32.mrf.mxu0
        %v1807 = vadd.f32 0.0, %v1806
        %1808 = vmatmul.f32.gmra.mxu0 %v974
        %v1809 = vpop.f32.mrf.mxu0
        %v1810 = vadd.f32 0.0, %v1809
        %1811 = vmatmul.f32.gmra.mxu0 %v977
        %v1812 = vpop.f32.mrf.mxu0
        %v1813 = vadd.f32 0.0, %v1812
        %1814 = vmatmul.f32.gmra.mxu0 %v980
        %v1815 = vpop.f32.mrf.mxu0
        %v1816 = vadd.f32 0.0, %v1815
        %1817 = vmatmul.f32.gmra.mxu0 %v983
        %v1818 = vpop.f32.mrf.mxu0
        %v1819 = vadd.f32 0.0, %v1818
        %1820 = vmatmul.f32.gmra.mxu0 %v986
        %v1821 = vpop.f32.mrf.mxu0
        %v1822 = vadd.f32 0.0, %v1821
        %1823 = vdwg.mxu0
        %v1824 = vmax.f32 %v1006, 0.0
        %v1825 = vmax.f32 %v1215, 0.0
        %v1826 = vmax.f32 %v1424, 0.0
        %v1827 = vmax.f32 %v1633, 0.0
        %v1828 = vmax.f32 %v1009, 0.0
        %v1829 = vmax.f32 %v1218, 0.0
        %v1830 = vmax.f32 %v1427, 0.0
        %v1831 = vmax.f32 %v1636, 0.0
        %v1832 = vmax.f32 %v1012, 0.0
        %v1833 = vmax.f32 %v1221, 0.0
        %v1834 = vmax.f32 %v1430, 0.0
        %v1835 = vmax.f32 %v1639, 0.0
        %v1836 = vmax.f32 %v1015, 0.0
        %v1837 = vmax.f32 %v1224, 0.0
        %v1838 = vmax.f32 %v1433, 0.0
        %v1839 = vmax.f32 %v1642, 0.0
        %v1840 = vmax.f32 %v1018, 0.0
        %v1841 = vmax.f32 %v1227, 0.0
        %v1842 = vmax.f32 %v1436, 0.0
        %v1843 = vmax.f32 %v1645, 0.0
        %v1844 = vmax.f32 %v1021, 0.0
        %v1845 = vmax.f32 %v1230, 0.0
        %v1846 = vmax.f32 %v1439, 0.0
        %v1847 = vmax.f32 %v1648, 0.0
        %v1848 = vmax.f32 %v1024, 0.0
        %v1849 = vmax.f32 %v1233, 0.0
        %v1850 = vmax.f32 %v1442, 0.0
        %v1851 = vmax.f32 %v1651, 0.0
        %v1852 = vmax.f32 %v1027, 0.0
        %v1853 = vmax.f32 %v1236, 0.0
        %v1854 = vmax.f32 %v1445, 0.0
        %v1855 = vmax.f32 %v1654, 0.0
        %v1856 = vmax.f32 %v1030, 0.0
        %v1857 = vmax.f32 %v1239, 0.0
        %v1858 = vmax.f32 %v1448, 0.0
        %v1859 = vmax.f32 %v1657, 0.0
        %v1860 = vmax.f32 %v1033, 0.0
        %v1861 = vmax.f32 %v1242, 0.0
        %v1862 = vmax.f32 %v1451, 0.0
        %v1863 = vmax.f32 %v1660, 0.0
        %v1864 = vmax.f32 %v1036, 0.0
        %v1865 = vmax.f32 %v1245, 0.0
        %v1866 = vmax.f32 %v1454, 0.0
        %v1867 = vmax.f32 %v1663, 0.0
        %v1868 = vmax.f32 %v1039, 0.0
        %v1869 = vmax.f32 %v1248, 0.0
        %v1870 = vmax.f32 %v1457, 0.0
        %v1871 = vmax.f32 %v1666, 0.0
        %v1872 = vmax.f32 %v1042, 0.0
        %v1873 = vmax.f32 %v1251, 0.0
        %v1874 = vmax.f32 %v1460, 0.0
        %v1875 = vmax.f32 %v1669, 0.0
        %v1876 = vmax.f32 %v1045, 0.0
        %v1877 = vmax.f32 %v1254, 0.0
        %v1878 = vmax.f32 %v1463, 0.0
        %v1879 = vmax.f32 %v1672, 0.0
        %v1880 = vmax.f32 %v1048, 0.0
        %v1881 = vmax.f32 %v1257, 0.0
        %v1882 = vmax.f32 %v1466, 0.0
        %v1883 = vmax.f32 %v1675, 0.0
        %v1884 = vmax.f32 %v1051, 0.0
        %v1885 = vmax.f32 %v1260, 0.0
        %v1886 = vmax.f32 %v1469, 0.0
        %v1887 = vmax.f32 %v1678, 0.0
        %v1888 = vmax.f32 %v1054, 0.0
        %v1889 = vmax.f32 %v1263, 0.0
        %v1890 = vmax.f32 %v1472, 0.0
        %v1891 = vmax.f32 %v1681, 0.0
        %v1892 = vmax.f32 %v1057, 0.0
        %v1893 = vmax.f32 %v1266, 0.0
        %v1894 = vmax.f32 %v1475, 0.0
        %v1895 = vmax.f32 %v1684, 0.0
        %v1896 = vmax.f32 %v1060, 0.0
        %v1897 = vmax.f32 %v1269, 0.0
        %v1898 = vmax.f32 %v1478, 0.0
        %v1899 = vmax.f32 %v1687, 0.0
        %v1900 = vmax.f32 %v1063, 0.0
        %v1901 = vmax.f32 %v1272, 0.0
        %v1902 = vmax.f32 %v1481, 0.0
        %v1903 = vmax.f32 %v1690, 0.0
        %v1904 = vmax.f32 %v1066, 0.0
        %v1905 = vmax.f32 %v1275, 0.0
        %v1906 = vmax.f32 %v1484, 0.0
        %v1907 = vmax.f32 %v1693, 0.0
        %v1908 = vmax.f32 %v1069, 0.0
        %v1909 = vmax.f32 %v1278, 0.0
        %v1910 = vmax.f32 %v1487, 0.0
        %v1911 = vmax.f32 %v1696, 0.0
        %v1912 = vmax.f32 %v1072, 0.0
        %v1913 = vmax.f32 %v1281, 0.0
        %v1914 = vmax.f32 %v1490, 0.0
        %v1915 = vmax.f32 %v1699, 0.0
        %v1916 = vmax.f32 %v1075, 0.0
        %v1917 = vmax.f32 %v1284, 0.0
        %v1918 = vmax.f32 %v1493, 0.0
        %v1919 = vmax.f32 %v1702, 0.0
        %v1920 = vmax.f32 %v1078, 0.0
        %v1921 = vmax.f32 %v1287, 0.0
        %v1922 = vmax.f32 %v1496, 0.0
        %v1923 = vmax.f32 %v1705, 0.0
        %v1924 = vmax.f32 %v1081, 0.0
        %v1925 = vmax.f32 %v1290, 0.0
        %v1926 = vmax.f32 %v1499, 0.0
        %v1927 = vmax.f32 %v1708, 0.0
        %v1928 = vmax.f32 %v1084, 0.0
        %v1929 = vmax.f32 %v1293, 0.0
        %v1930 = vmax.f32 %v1502, 0.0
        %v1931 = vmax.f32 %v1711, 0.0
        %v1932 = vmax.f32 %v1087, 0.0
        %v1933 = vmax.f32 %v1296, 0.0
        %v1934 = vmax.f32 %v1505, 0.0
        %v1935 = vmax.f32 %v1714, 0.0
        %v1936 = vmax.f32 %v1090, 0.0
        %v1937 = vmax.f32 %v1299, 0.0
        %v1938 = vmax.f32 %v1508, 0.0
        %v1939 = vmax.f32 %v1717, 0.0
        %v1940 = vmax.f32 %v1093, 0.0
        %v1941 = vmax.f32 %v1302, 0.0
        %v1942 = vmax.f32 %v1511, 0.0
        %v1943 = vmax.f32 %v1720, 0.0
        %v1944 = vmax.f32 %v1096, 0.0
        %v1945 = vmax.f32 %v1305, 0.0
        %v1946 = vmax.f32 %v1514, 0.0
        %v1947 = vmax.f32 %v1723, 0.0
        %v1948 = vmax.f32 %v1099, 0.0
        %v1949 = vmax.f32 %v1308, 0.0
        %v1950 = vmax.f32 %v1517, 0.0
        %v1951 = vmax.f32 %v1726, 0.0
        %v1952 = vmax.f32 %v1102, 0.0
        %v1953 = vmax.f32 %v1311, 0.0
        %v1954 = vmax.f32 %v1520, 0.0
        %v1955 = vmax.f32 %v1729, 0.0
        %v1956 = vmax.f32 %v1105, 0.0
        %v1957 = vmax.f32 %v1314, 0.0
        %v1958 = vmax.f32 %v1523, 0.0
        %v1959 = vmax.f32 %v1732, 0.0
        %v1960 = vmax.f32 %v1108, 0.0
        %v1961 = vmax.f32 %v1317, 0.0
        %v1962 = vmax.f32 %v1526, 0.0
        %v1963 = vmax.f32 %v1735, 0.0
        %v1964 = vmax.f32 %v1111, 0.0
        %v1965 = vmax.f32 %v1320, 0.0
        %v1966 = vmax.f32 %v1529, 0.0
        %v1967 = vmax.f32 %v1738, 0.0
        %v1968 = vmax.f32 %v1114, 0.0
        %v1969 = vmax.f32 %v1323, 0.0
        %v1970 = vmax.f32 %v1532, 0.0
        %v1971 = vmax.f32 %v1741, 0.0
        %v1972 = vmax.f32 %v1117, 0.0
        %v1973 = vmax.f32 %v1326, 0.0
        %v1974 = vmax.f32 %v1535, 0.0
        %v1975 = vmax.f32 %v1744, 0.0
        %v1976 = vmax.f32 %v1120, 0.0
        %v1977 = vmax.f32 %v1329, 0.0
        %v1978 = vmax.f32 %v1538, 0.0
        %v1979 = vmax.f32 %v1747, 0.0
        %v1980 = vmax.f32 %v1123, 0.0
        %v1981 = vmax.f32 %v1332, 0.0
        %v1982 = vmax.f32 %v1541, 0.0
        %v1983 = vmax.f32 %v1750, 0.0
        %v1984 = vmax.f32 %v1126, 0.0
        %v1985 = vmax.f32 %v1335, 0.0
        %v1986 = vmax.f32 %v1544, 0.0
        %v1987 = vmax.f32 %v1753, 0.0
        %v1988 = vmax.f32 %v1129, 0.0
        %v1989 = vmax.f32 %v1338, 0.0
        %v1990 = vmax.f32 %v1547, 0.0
        %v1991 = vmax.f32 %v1756, 0.0
        %v1992 = vmax.f32 %v1132, 0.0
        %v1993 = vmax.f32 %v1341, 0.0
        %v1994 = vmax.f32 %v1550, 0.0
        %v1995 = vmax.f32 %v1759, 0.0
        %v1996 = vmax.f32 %v1135, 0.0
        %v1997 = vmax.f32 %v1344, 0.0
        %v1998 = vmax.f32 %v1553, 0.0
        %v1999 = vmax.f32 %v1762, 0.0
        %v2000 = vmax.f32 %v1138, 0.0
        %v2001 = vmax.f32 %v1347, 0.0
        %v2002 = vmax.f32 %v1556, 0.0
        %v2003 = vmax.f32 %v1765, 0.0
        %v2004 = vmax.f32 %v1141, 0.0
        %v2005 = vmax.f32 %v1350, 0.0
        %v2006 = vmax.f32 %v1559, 0.0
        %v2007 = vmax.f32 %v1768, 0.0
        %v2008 = vmax.f32 %v1144, 0.0
        %v2009 = vmax.f32 %v1353, 0.0
        %v2010 = vmax.f32 %v1562, 0.0
        %v2011 = vmax.f32 %v1771, 0.0
        %v2012 = vmax.f32 %v1147, 0.0
        %v2013 = vmax.f32 %v1356, 0.0
        %v2014 = vmax.f32 %v1565, 0.0
        %v2015 = vmax.f32 %v1774, 0.0
        %v2016 = vmax.f32 %v1150, 0.0
        %v2017 = vmax.f32 %v1359, 0.0
        %v2018 = vmax.f32 %v1568, 0.0
        %v2019 = vmax.f32 %v1777, 0.0
        %v2020 = vmax.f32 %v1153, 0.0
        %v2021 = vmax.f32 %v1362, 0.0
        %v2022 = vmax.f32 %v1571, 0.0
        %v2023 = vmax.f32 %v1780, 0.0
        %v2024 = vmax.f32 %v1156, 0.0
        %v2025 = vmax.f32 %v1365, 0.0
        %v2026 = vmax.f32 %v1574, 0.0
        %v2027 = vmax.f32 %v1783, 0.0
        %v2028 = vmax.f32 %v1159, 0.0
        %v2029 = vmax.f32 %v1368, 0.0
        %v2030 = vmax.f32 %v1577, 0.0
        %v2031 = vmax.f32 %v1786, 0.0
        %v2032 = vmax.f32 %v1162, 0.0
        %v2033 = vmax.f32 %v1371, 0.0
        %v2034 = vmax.f32 %v1580, 0.0
        %v2035 = vmax.f32 %v1789, 0.0
        %v2036 = vmax.f32 %v1165, 0.0
        %v2037 = vmax.f32 %v1374, 0.0
        %v2038 = vmax.f32 %v1583, 0.0
        %v2039 = vmax.f32 %v1792, 0.0
        %v2040 = vmax.f32 %v1168, 0.0
        %v2041 = vmax.f32 %v1377, 0.0
        %v2042 = vmax.f32 %v1586, 0.0
        %v2043 = vmax.f32 %v1795, 0.0
        %v2044 = vmax.f32 %v1171, 0.0
        %v2045 = vmax.f32 %v1380, 0.0
        %v2046 = vmax.f32 %v1589, 0.0
        %v2047 = vmax.f32 %v1798, 0.0
        %v2048 = vmax.f32 %v1174, 0.0
        %v2049 = vmax.f32 %v1383, 0.0
        %v2050 = vmax.f32 %v1592, 0.0
        %v2051 = vmax.f32 %v1801, 0.0
        %v2052 = vmax.f32 %v1177, 0.0
        %v2053 = vmax.f32 %v1386, 0.0
        %v2054 = vmax.f32 %v1595, 0.0
        %v2055 = vmax.f32 %v1804, 0.0
        %v2056 = vmax.f32 %v1180, 0.0
        %v2057 = vmax.f32 %v1389, 0.0
        %v2058 = vmax.f32 %v1598, 0.0
        %v2059 = vmax.f32 %v1807, 0.0
        %v2060 = vmax.f32 %v1183, 0.0
        %v2061 = vmax.f32 %v1392, 0.0
        %v2062 = vmax.f32 %v1601, 0.0
        %v2063 = vmax.f32 %v1810, 0.0
        %v2064 = vmax.f32 %v1186, 0.0
        %v2065 = vmax.f32 %v1395, 0.0
        %v2066 = vmax.f32 %v1604, 0.0
        %v2067 = vmax.f32 %v1813, 0.0
        %v2068 = vmax.f32 %v1189, 0.0
        %v2069 = vmax.f32 %v1398, 0.0
        %v2070 = vmax.f32 %v1607, 0.0
        %v2071 = vmax.f32 %v1816, 0.0
        %v2072 = vmax.f32 %v1192, 0.0
        %v2073 = vmax.f32 %v1401, 0.0
        %v2074 = vmax.f32 %v1610, 0.0
        %v2075 = vmax.f32 %v1819, 0.0
        %v2076 = vmax.f32 %v1195, 0.0
        %v2077 = vmax.f32 %v1404, 0.0
        %v2078 = vmax.f32 %v1613, 0.0
        %v2079 = vmax.f32 %v1822, 0.0
        %v2080 = vmin.f32 %v1824, %v1828
        %v2081 = vmin.f32 %v2080, %v1832
        %v2082 = vmin.f32 %v2081, %v1836
        %v2083 = vmin.f32 %v2082, %v1840
        %v2084 = vmin.f32 %v2083, %v1844
        %v2085 = vmin.f32 %v2084, %v1848
        %v2086 = vmin.f32 %v2085, %v1852
        %v2087 = vmin.f32 %v2086, %v1856
        %v2088 = vmin.f32 %v2087, %v1860
        %v2089 = vmin.f32 %v2088, %v1864
        %v2090 = vmin.f32 %v2089, %v1868
        %v2091 = vmin.f32 %v2090, %v1872
        %v2092 = vmin.f32 %v2091, %v1876
        %v2093 = vmin.f32 %v2092, %v1880
        %v2094 = vmin.f32 %v2093, %v1884
        %v2095 = vmin.f32 %v2094, %v1888
        %v2096 = vmin.f32 %v2095, %v1892
        %v2097 = vmin.f32 %v2096, %v1896
        %v2098 = vmin.f32 %v2097, %v1900
        %v2099 = vmin.f32 %v2098, %v1904
        %v2100 = vmin.f32 %v2099, %v1908
        %v2101 = vmin.f32 %v2100, %v1912
        %v2102 = vmin.f32 %v2101, %v1916
        %v2103 = vmin.f32 %v2102, %v1920
        %v2104 = vmin.f32 %v2103, %v1924
        %v2105 = vmin.f32 %v2104, %v1928
        %v2106 = vmin.f32 %v2105, %v1932
        %v2107 = vmin.f32 %v2106, %v1936
        %v2108 = vmin.f32 %v2107, %v1940
        %v2109 = vmin.f32 %v2108, %v1944
        %v2110 = vmin.f32 %v2109, %v1948
        %v2111 = vmin.f32 %v2110, %v1952
        %v2112 = vmin.f32 %v2111, %v1956
        %v2113 = vmin.f32 %v2112, %v1960
        %v2114 = vmin.f32 %v2113, %v1964
        %v2115 = vmin.f32 %v2114, %v1968
        %v2116 = vmin.f32 %v2115, %v1972
        %v2117 = vmin.f32 %v2116, %v1976
        %v2118 = vmin.f32 %v2117, %v1980
        %v2119 = vmin.f32 %v2118, %v1984
        %v2120 = vmin.f32 %v2119, %v1988
        %v2121 = vmin.f32 %v2120, %v1992
        %v2122 = vmin.f32 %v2121, %v1996
        %v2123 = vmin.f32 %v2122, %v2000
        %v2124 = vmin.f32 %v2123, %v2004
        %v2125 = vmin.f32 %v2124, %v2008
        %v2126 = vmin.f32 %v2125, %v2012
        %v2127 = vmin.f32 %v2126, %v2016
        %v2128 = vmin.f32 %v2127, %v2020
        %v2129 = vmin.f32 %v2128, %v2024
        %v2130 = vmin.f32 %v2129, %v2028
        %v2131 = vmin.f32 %v2130, %v2032
        %v2132 = vmin.f32 %v2131, %v2036
        %v2133 = vmin.f32 %v2132, %v2040
        %v2134 = vmin.f32 %v2133, %v2044
        %v2135 = vmin.f32 %v2134, %v2048
        %v2136 = vmin.f32 %v2135, %v2052
        %v2137 = vmin.f32 %v2136, %v2056
        %v2138 = vmin.f32 %v2137, %v2060
        %v2139 = vmin.f32 %v2138, %v2064
        %v2140 = vmin.f32 %v2139, %v2068
        %v2141 = vmin.f32 %v2140, %v2072
        %v2142 = vmin.f32 %v2141, %v2076
        %v2143 = vrot.slane %v2142, 4
        %v2144 = vmin.f32 %v2142, %v2143
        %v2145 = vrot.slane %v2144, 2
        %v2146 = vmin.f32 %v2144, %v2145
        %v2147 = vrot.slane %v2146, 1
        %v2148 = vmin.f32 %v2146, %v2147
        %v2149 = vmin.f32 %v1825, %v1829
        %v2150 = vmin.f32 %v2149, %v1833
        %v2151 = vmin.f32 %v2150, %v1837
        %v2152 = vmin.f32 %v2151, %v1841
        %v2153 = vmin.f32 %v2152, %v1845
        %v2154 = vmin.f32 %v2153, %v1849
        %v2155 = vmin.f32 %v2154, %v1853
        %v2156 = vmin.f32 %v2155, %v1857
        %v2157 = vmin.f32 %v2156, %v1861
        %v2158 = vmin.f32 %v2157, %v1865
        %v2159 = vmin.f32 %v2158, %v1869
        %v2160 = vmin.f32 %v2159, %v1873
        %v2161 = vmin.f32 %v2160, %v1877
        %v2162 = vmin.f32 %v2161, %v1881
        %v2163 = vmin.f32 %v2162, %v1885
        %v2164 = vmin.f32 %v2163, %v1889
        %v2165 = vmin.f32 %v2164, %v1893
        %v2166 = vmin.f32 %v2165, %v1897
        %v2167 = vmin.f32 %v2166, %v1901
        %v2168 = vmin.f32 %v2167, %v1905
        %v2169 = vmin.f32 %v2168, %v1909
        %v2170 = vmin.f32 %v2169, %v1913
        %v2171 = vmin.f32 %v2170, %v1917
        %v2172 = vmin.f32 %v2171, %v1921
        %v2173 = vmin.f32 %v2172, %v1925
        %v2174 = vmin.f32 %v2173, %v1929
        %v2175 = vmin.f32 %v2174, %v1933
        %v2176 = vmin.f32 %v2175, %v1937
        %v2177 = vmin.f32 %v2176, %v1941
        %v2178 = vmin.f32 %v2177, %v1945
        %v2179 = vmin.f32 %v2178, %v1949
        %v2180 = vmin.f32 %v2179, %v1953
        %v2181 = vmin.f32 %v2180, %v1957
        %v2182 = vmin.f32 %v2181, %v1961
        %v2183 = vmin.f32 %v2182, %v1965
        %v2184 = vmin.f32 %v2183, %v1969
        %v2185 = vmin.f32 %v2184, %v1973
        %v2186 = vmin.f32 %v2185, %v1977
        %v2187 = vmin.f32 %v2186, %v1981
        %v2188 = vmin.f32 %v2187, %v1985
        %v2189 = vmin.f32 %v2188, %v1989
        %v2190 = vmin.f32 %v2189, %v1993
        %v2191 = vmin.f32 %v2190, %v1997
        %v2192 = vmin.f32 %v2191, %v2001
        %v2193 = vmin.f32 %v2192, %v2005
        %v2194 = vmin.f32 %v2193, %v2009
        %v2195 = vmin.f32 %v2194, %v2013
        %v2196 = vmin.f32 %v2195, %v2017
        %v2197 = vmin.f32 %v2196, %v2021
        %v2198 = vmin.f32 %v2197, %v2025
        %v2199 = vmin.f32 %v2198, %v2029
        %v2200 = vmin.f32 %v2199, %v2033
        %v2201 = vmin.f32 %v2200, %v2037
        %v2202 = vmin.f32 %v2201, %v2041
        %v2203 = vmin.f32 %v2202, %v2045
        %v2204 = vmin.f32 %v2203, %v2049
        %v2205 = vmin.f32 %v2204, %v2053
        %v2206 = vmin.f32 %v2205, %v2057
        %v2207 = vmin.f32 %v2206, %v2061
        %v2208 = vmin.f32 %v2207, %v2065
        %v2209 = vmin.f32 %v2208, %v2069
        %v2210 = vmin.f32 %v2209, %v2073
        %v2211 = vmin.f32 %v2210, %v2077
        %v2212 = vrot.slane %v2211, 4
        %v2213 = vmin.f32 %v2211, %v2212
        %v2214 = vrot.slane %v2213, 2
        %v2215 = vmin.f32 %v2213, %v2214
        %v2216 = vrot.slane %v2215, 1
        %v2217 = vmin.f32 %v2215, %v2216
        %v2218 = vmin.f32 %v1826, %v1830
        %v2219 = vmin.f32 %v2218, %v1834
        %v2220 = vmin.f32 %v2219, %v1838
        %v2221 = vmin.f32 %v2220, %v1842
        %v2222 = vmin.f32 %v2221, %v1846
        %v2223 = vmin.f32 %v2222, %v1850
        %v2224 = vmin.f32 %v2223, %v1854
        %v2225 = vmin.f32 %v2224, %v1858
        %v2226 = vmin.f32 %v2225, %v1862
        %v2227 = vmin.f32 %v2226, %v1866
        %v2228 = vmin.f32 %v2227, %v1870
        %v2229 = vmin.f32 %v2228, %v1874
        %v2230 = vmin.f32 %v2229, %v1878
        %v2231 = vmin.f32 %v2230, %v1882
        %v2232 = vmin.f32 %v2231, %v1886
        %v2233 = vmin.f32 %v2232, %v1890
        %v2234 = vmin.f32 %v2233, %v1894
        %v2235 = vmin.f32 %v2234, %v1898
        %v2236 = vmin.f32 %v2235, %v1902
        %v2237 = vmin.f32 %v2236, %v1906
        %v2238 = vmin.f32 %v2237, %v1910
        %v2239 = vmin.f32 %v2238, %v1914
        %v2240 = vmin.f32 %v2239, %v1918
        %v2241 = vmin.f32 %v2240, %v1922
        %v2242 = vmin.f32 %v2241, %v1926
        %v2243 = vmin.f32 %v2242, %v1930
        %v2244 = vmin.f32 %v2243, %v1934
        %v2245 = vmin.f32 %v2244, %v1938
        %v2246 = vmin.f32 %v2245, %v1942
        %v2247 = vmin.f32 %v2246, %v1946
        %v2248 = vmin.f32 %v2247, %v1950
        %v2249 = vmin.f32 %v2248, %v1954
        %v2250 = vmin.f32 %v2249, %v1958
        %v2251 = vmin.f32 %v2250, %v1962
        %v2252 = vmin.f32 %v2251, %v1966
        %v2253 = vmin.f32 %v2252, %v1970
        %v2254 = vmin.f32 %v2253, %v1974
        %v2255 = vmin.f32 %v2254, %v1978
        %v2256 = vmin.f32 %v2255, %v1982
        %v2257 = vmin.f32 %v2256, %v1986
        %v2258 = vmin.f32 %v2257, %v1990
        %v2259 = vmin.f32 %v2258, %v1994
        %v2260 = vmin.f32 %v2259, %v1998
        %v2261 = vmin.f32 %v2260, %v2002
        %v2262 = vmin.f32 %v2261, %v2006
        %v2263 = vmin.f32 %v2262, %v2010
        %v2264 = vmin.f32 %v2263, %v2014
        %v2265 = vmin.f32 %v2264, %v2018
        %v2266 = vmin.f32 %v2265, %v2022
        %v2267 = vmin.f32 %v2266, %v2026
        %v2268 = vmin.f32 %v2267, %v2030
        %v2269 = vmin.f32 %v2268, %v2034
        %v2270 = vmin.f32 %v2269, %v2038
        %v2271 = vmin.f32 %v2270, %v2042
        %v2272 = vmin.f32 %v2271, %v2046
        %v2273 = vmin.f32 %v2272, %v2050
        %v2274 = vmin.f32 %v2273, %v2054
        %v2275 = vmin.f32 %v2274, %v2058
        %v2276 = vmin.f32 %v2275, %v2062
        %v2277 = vmin.f32 %v2276, %v2066
        %v2278 = vmin.f32 %v2277, %v2070
        %v2279 = vmin.f32 %v2278, %v2074
        %v2280 = vmin.f32 %v2279, %v2078
        %v2281 = vrot.slane %v2280, 4
        %v2282 = vmin.f32 %v2280, %v2281
        %v2283 = vrot.slane %v2282, 2
        %v2284 = vmin.f32 %v2282, %v2283
        %v2285 = vrot.slane %v2284, 1
        %v2286 = vmin.f32 %v2284, %v2285
        %v2287 = vmin.f32 %v1827, %v1831
        %v2288 = vmin.f32 %v2287, %v1835
        %v2289 = vmin.f32 %v2288, %v1839
        %v2290 = vmin.f32 %v2289, %v1843
        %v2291 = vmin.f32 %v2290, %v1847
        %v2292 = vmin.f32 %v2291, %v1851
        %v2293 = vmin.f32 %v2292, %v1855
        %v2294 = vmin.f32 %v2293, %v1859
        %v2295 = vmin.f32 %v2294, %v1863
        %v2296 = vmin.f32 %v2295, %v1867
        %v2297 = vmin.f32 %v2296, %v1871
        %v2298 = vmin.f32 %v2297, %v1875
        %v2299 = vmin.f32 %v2298, %v1879
        %v2300 = vmin.f32 %v2299, %v1883
        %v2301 = vmin.f32 %v2300, %v1887
        %v2302 = vmin.f32 %v2301, %v1891
        %v2303 = vmin.f32 %v2302, %v1895
        %v2304 = vmin.f32 %v2303, %v1899
        %v2305 = vmin.f32 %v2304, %v1903
        %v2306 = vmin.f32 %v2305, %v1907
        %v2307 = vmin.f32 %v2306, %v1911
        %v2308 = vmin.f32 %v2307, %v1915
        %v2309 = vmin.f32 %v2308, %v1919
        %v2310 = vmin.f32 %v2309, %v1923
        %v2311 = vmin.f32 %v2310, %v1927
        %v2312 = vmin.f32 %v2311, %v1931
        %v2313 = vmin.f32 %v2312, %v1935
        %v2314 = vmin.f32 %v2313, %v1939
        %v2315 = vmin.f32 %v2314, %v1943
        %v2316 = vmin.f32 %v2315, %v1947
        %v2317 = vmin.f32 %v2316, %v1951
        %v2318 = vmin.f32 %v2317, %v1955
        %v2319 = vmin.f32 %v2318, %v1959
        %v2320 = vmin.f32 %v2319, %v1963
        %v2321 = vmin.f32 %v2320, %v1967
        %v2322 = vmin.f32 %v2321, %v1971
        %v2323 = vmin.f32 %v2322, %v1975
        %v2324 = vmin.f32 %v2323, %v1979
        %v2325 = vmin.f32 %v2324, %v1983
        %v2326 = vmin.f32 %v2325, %v1987
        %v2327 = vmin.f32 %v2326, %v1991
        %v2328 = vmin.f32 %v2327, %v1995
        %v2329 = vmin.f32 %v2328, %v1999
        %v2330 = vmin.f32 %v2329, %v2003
        %v2331 = vmin.f32 %v2330, %v2007
        %v2332 = vmin.f32 %v2331, %v2011
        %v2333 = vmin.f32 %v2332, %v2015
        %v2334 = vmin.f32 %v2333, %v2019
        %v2335 = vmin.f32 %v2334, %v2023
        %v2336 = vmin.f32 %v2335, %v2027
        %v2337 = vmin.f32 %v2336, %v2031
        %v2338 = vmin.f32 %v2337, %v2035
        %v2339 = vmin.f32 %v2338, %v2039
        %v2340 = vmin.f32 %v2339, %v2043
        %v2341 = vmin.f32 %v2340, %v2047
        %v2342 = vmin.f32 %v2341, %v2051
        %v2343 = vmin.f32 %v2342, %v2055
        %v2344 = vmin.f32 %v2343, %v2059
        %v2345 = vmin.f32 %v2344, %v2063
        %v2346 = vmin.f32 %v2345, %v2067
        %v2347 = vmin.f32 %v2346, %v2071
        %v2348 = vmin.f32 %v2347, %v2075
        %v2349 = vmin.f32 %v2348, %v2079
        %v2350 = vrot.slane %v2349, 4
        %v2351 = vmin.f32 %v2349, %v2350
        %v2352 = vrot.slane %v2351, 2
        %v2353 = vmin.f32 %v2351, %v2352
        %v2354 = vrot.slane %v2353, 1
        %v2355 = vmin.f32 %v2353, %v2354
        %v2356 = vmin.f32 %v1824, %v1825
        %v2357 = vmin.f32 %v2356, %v1826
        %v2358 = vmin.f32 %v2357, %v1827
        %2359 = vmin.xlane.f32.xlu0 %v2358
        %v2360 = vpop.xlane.xlu0 %2359
        %v2361 = vmin.f32 %v1828, %v1829
        %v2362 = vmin.f32 %v2361, %v1830
        %v2363 = vmin.f32 %v2362, %v1831
        %2364 = vmin.xlane.f32.xlu0 %v2363
        %v2365 = vpop.xlane.xlu0 %2364
        %v2366 = vmin.f32 %v1832, %v1833
        %v2367 = vmin.f32 %v2366, %v1834
        %v2368 = vmin.f32 %v2367, %v1835
        %2369 = vmin.xlane.f32.xlu0 %v2368
        %v2370 = vpop.xlane.xlu0 %2369
        %v2371 = vmin.f32 %v1836, %v1837
        %v2372 = vmin.f32 %v2371, %v1838
        %v2373 = vmin.f32 %v2372, %v1839
        %2374 = vmin.xlane.f32.xlu0 %v2373
        %v2375 = vpop.xlane.xlu0 %2374
        %v2376 = vmin.f32 %v1840, %v1841
        %v2377 = vmin.f32 %v2376, %v1842
        %v2378 = vmin.f32 %v2377, %v1843
        %2379 = vmin.xlane.f32.xlu0 %v2378
        %v2380 = vpop.xlane.xlu0 %2379
        %v2381 = vmin.f32 %v1844, %v1845
        %v2382 = vmin.f32 %v2381, %v1846
        %v2383 = vmin.f32 %v2382, %v1847
        %2384 = vmin.xlane.f32.xlu0 %v2383
        %v2385 = vpop.xlane.xlu0 %2384
        %v2386 = vmin.f32 %v1848, %v1849
        %v2387 = vmin.f32 %v2386, %v1850
        %v2388 = vmin.f32 %v2387, %v1851
        %2389 = vmin.xlane.f32.xlu0 %v2388
        %v2390 = vpop.xlane.xlu0 %2389
        %v2391 = vmin.f32 %v1852, %v1853
        %v2392 = vmin.f32 %v2391, %v1854
        %v2393 = vmin.f32 %v2392, %v1855
        %2394 = vmin.xlane.f32.xlu0 %v2393
        %v2395 = vpop.xlane.xlu0 %2394
        %v2396 = vmin.f32 %v1856, %v1857
        %v2397 = vmin.f32 %v2396, %v1858
        %v2398 = vmin.f32 %v2397, %v1859
        %2399 = vmin.xlane.f32.xlu0 %v2398
        %v2400 = vpop.xlane.xlu0 %2399
        %v2401 = vmin.f32 %v1860, %v1861
        %v2402 = vmin.f32 %v2401, %v1862
        %v2403 = vmin.f32 %v2402, %v1863
        %2404 = vmin.xlane.f32.xlu0 %v2403
        %v2405 = vpop.xlane.xlu0 %2404
        %v2406 = vmin.f32 %v1864, %v1865
        %v2407 = vmin.f32 %v2406, %v1866
        %v2408 = vmin.f32 %v2407, %v1867
        %2409 = vmin.xlane.f32.xlu0 %v2408
        %v2410 = vpop.xlane.xlu0 %2409
        %v2411 = vmin.f32 %v1868, %v1869
        %v2412 = vmin.f32 %v2411, %v1870
        %v2413 = vmin.f32 %v2412, %v1871
        %2414 = vmin.xlane.f32.xlu0 %v2413
        %v2415 = vpop.xlane.xlu0 %2414
        %v2416 = vmin.f32 %v1872, %v1873
        %v2417 = vmin.f32 %v2416, %v1874
        %v2418 = vmin.f32 %v2417, %v1875
        %2419 = vmin.xlane.f32.xlu0 %v2418
        %v2420 = vpop.xlane.xlu0 %2419
        %v2421 = vmin.f32 %v1876, %v1877
        %v2422 = vmin.f32 %v2421, %v1878
        %v2423 = vmin.f32 %v2422, %v1879
        %2424 = vmin.xlane.f32.xlu0 %v2423
        %v2425 = vpop.xlane.xlu0 %2424
        %v2426 = vmin.f32 %v1880, %v1881
        %v2427 = vmin.f32 %v2426, %v1882
        %v2428 = vmin.f32 %v2427, %v1883
        %2429 = vmin.xlane.f32.xlu0 %v2428
        %v2430 = vpop.xlane.xlu0 %2429
        %v2431 = vmin.f32 %v1884, %v1885
        %v2432 = vmin.f32 %v2431, %v1886
        %v2433 = vmin.f32 %v2432, %v1887
        %2434 = vmin.xlane.f32.xlu0 %v2433
        %v2435 = vpop.xlane.xlu0 %2434
        %v2436 = vmin.f32 %v1888, %v1889
        %v2437 = vmin.f32 %v2436, %v1890
        %v2438 = vmin.f32 %v2437, %v1891
        %2439 = vmin.xlane.f32.xlu0 %v2438
        %v2440 = vpop.xlane.xlu0 %2439
        %v2441 = vmin.f32 %v1892, %v1893
        %v2442 = vmin.f32 %v2441, %v1894
        %v2443 = vmin.f32 %v2442, %v1895
        %2444 = vmin.xlane.f32.xlu0 %v2443
        %v2445 = vpop.xlane.xlu0 %2444
        %v2446 = vmin.f32 %v1896, %v1897
        %v2447 = vmin.f32 %v2446, %v1898
        %v2448 = vmin.f32 %v2447, %v1899
        %2449 = vmin.xlane.f32.xlu0 %v2448
        %v2450 = vpop.xlane.xlu0 %2449
        %v2451 = vmin.f32 %v1900, %v1901
        %v2452 = vmin.f32 %v2451, %v1902
        %v2453 = vmin.f32 %v2452, %v1903
        %2454 = vmin.xlane.f32.xlu0 %v2453
        %v2455 = vpop.xlane.xlu0 %2454
        %v2456 = vmin.f32 %v1904, %v1905
        %v2457 = vmin.f32 %v2456, %v1906
        %v2458 = vmin.f32 %v2457, %v1907
        %2459 = vmin.xlane.f32.xlu0 %v2458
        %v2460 = vpop.xlane.xlu0 %2459
        %v2461 = vmin.f32 %v1908, %v1909
        %v2462 = vmin.f32 %v2461, %v1910
        %v2463 = vmin.f32 %v2462, %v1911
        %2464 = vmin.xlane.f32.xlu0 %v2463
        %v2465 = vpop.xlane.xlu0 %2464
        %v2466 = vmin.f32 %v1912, %v1913
        %v2467 = vmin.f32 %v2466, %v1914
        %v2468 = vmin.f32 %v2467, %v1915
        %2469 = vmin.xlane.f32.xlu0 %v2468
        %v2470 = vpop.xlane.xlu0 %2469
        %v2471 = vmin.f32 %v1916, %v1917
        %v2472 = vmin.f32 %v2471, %v1918
        %v2473 = vmin.f32 %v2472, %v1919
        %2474 = vmin.xlane.f32.xlu0 %v2473
        %v2475 = vpop.xlane.xlu0 %2474
        %v2476 = vmin.f32 %v1920, %v1921
        %v2477 = vmin.f32 %v2476, %v1922
        %v2478 = vmin.f32 %v2477, %v1923
        %2479 = vmin.xlane.f32.xlu0 %v2478
        %v2480 = vpop.xlane.xlu0 %2479
        %v2481 = vmin.f32 %v1924, %v1925
        %v2482 = vmin.f32 %v2481, %v1926
        %v2483 = vmin.f32 %v2482, %v1927
        %2484 = vmin.xlane.f32.xlu0 %v2483
        %v2485 = vpop.xlane.xlu0 %2484
        %v2486 = vmin.f32 %v1928, %v1929
        %v2487 = vmin.f32 %v2486, %v1930
        %v2488 = vmin.f32 %v2487, %v1931
        %2489 = vmin.xlane.f32.xlu0 %v2488
        %v2490 = vpop.xlane.xlu0 %2489
        %v2491 = vmin.f32 %v1932, %v1933
        %v2492 = vmin.f32 %v2491, %v1934
        %v2493 = vmin.f32 %v2492, %v1935
        %2494 = vmin.xlane.f32.xlu0 %v2493
        %v2495 = vpop.xlane.xlu0 %2494
        %v2496 = vmin.f32 %v1936, %v1937
        %v2497 = vmin.f32 %v2496, %v1938
        %v2498 = vmin.f32 %v2497, %v1939
        %2499 = vmin.xlane.f32.xlu0 %v2498
        %v2500 = vpop.xlane.xlu0 %2499
        %v2501 = vmin.f32 %v1940, %v1941
        %v2502 = vmin.f32 %v2501, %v1942
        %v2503 = vmin.f32 %v2502, %v1943
        %2504 = vmin.xlane.f32.xlu0 %v2503
        %v2505 = vpop.xlane.xlu0 %2504
        %v2506 = vmin.f32 %v1944, %v1945
        %v2507 = vmin.f32 %v2506, %v1946
        %v2508 = vmin.f32 %v2507, %v1947
        %2509 = vmin.xlane.f32.xlu0 %v2508
        %v2510 = vpop.xlane.xlu0 %2509
        %v2511 = vmin.f32 %v1948, %v1949
        %v2512 = vmin.f32 %v2511, %v1950
        %v2513 = vmin.f32 %v2512, %v1951
        %2514 = vmin.xlane.f32.xlu0 %v2513
        %v2515 = vpop.xlane.xlu0 %2514
        %v2516 = vmin.f32 %v1952, %v1953
        %v2517 = vmin.f32 %v2516, %v1954
        %v2518 = vmin.f32 %v2517, %v1955
        %2519 = vmin.xlane.f32.xlu0 %v2518
        %v2520 = vpop.xlane.xlu0 %2519
        %v2521 = vmin.f32 %v1956, %v1957
        %v2522 = vmin.f32 %v2521, %v1958
        %v2523 = vmin.f32 %v2522, %v1959
        %2524 = vmin.xlane.f32.xlu0 %v2523
        %v2525 = vpop.xlane.xlu0 %2524
        %v2526 = vmin.f32 %v1960, %v1961
        %v2527 = vmin.f32 %v2526, %v1962
        %v2528 = vmin.f32 %v2527, %v1963
        %2529 = vmin.xlane.f32.xlu0 %v2528
        %v2530 = vpop.xlane.xlu0 %2529
        %v2531 = vmin.f32 %v1964, %v1965
        %v2532 = vmin.f32 %v2531, %v1966
        %v2533 = vmin.f32 %v2532, %v1967
        %2534 = vmin.xlane.f32.xlu0 %v2533
        %v2535 = vpop.xlane.xlu0 %2534
        %v2536 = vmin.f32 %v1968, %v1969
        %v2537 = vmin.f32 %v2536, %v1970
        %v2538 = vmin.f32 %v2537, %v1971
        %2539 = vmin.xlane.f32.xlu0 %v2538
        %v2540 = vpop.xlane.xlu0 %2539
        %v2541 = vmin.f32 %v1972, %v1973
        %v2542 = vmin.f32 %v2541, %v1974
        %v2543 = vmin.f32 %v2542, %v1975
        %2544 = vmin.xlane.f32.xlu0 %v2543
        %v2545 = vpop.xlane.xlu0 %2544
        %v2546 = vmin.f32 %v1976, %v1977
        %v2547 = vmin.f32 %v2546, %v1978
        %v2548 = vmin.f32 %v2547, %v1979
        %2549 = vmin.xlane.f32.xlu0 %v2548
        %v2550 = vpop.xlane.xlu0 %2549
        %v2551 = vmin.f32 %v1980, %v1981
        %v2552 = vmin.f32 %v2551, %v1982
        %v2553 = vmin.f32 %v2552, %v1983
        %2554 = vmin.xlane.f32.xlu0 %v2553
        %v2555 = vpop.xlane.xlu0 %2554
        %v2556 = vmin.f32 %v1984, %v1985
        %v2557 = vmin.f32 %v2556, %v1986
        %v2558 = vmin.f32 %v2557, %v1987
        %2559 = vmin.xlane.f32.xlu0 %v2558
        %v2560 = vpop.xlane.xlu0 %2559
        %v2561 = vmin.f32 %v1988, %v1989
        %v2562 = vmin.f32 %v2561, %v1990
        %v2563 = vmin.f32 %v2562, %v1991
        %2564 = vmin.xlane.f32.xlu0 %v2563
        %v2565 = vpop.xlane.xlu0 %2564
        %v2566 = vmin.f32 %v1992, %v1993
        %v2567 = vmin.f32 %v2566, %v1994
        %v2568 = vmin.f32 %v2567, %v1995
        %2569 = vmin.xlane.f32.xlu0 %v2568
        %v2570 = vpop.xlane.xlu0 %2569
        %v2571 = vmin.f32 %v1996, %v1997
        %v2572 = vmin.f32 %v2571, %v1998
        %v2573 = vmin.f32 %v2572, %v1999
        %2574 = vmin.xlane.f32.xlu0 %v2573
        %v2575 = vpop.xlane.xlu0 %2574
        %v2576 = vmin.f32 %v2000, %v2001
        %v2577 = vmin.f32 %v2576, %v2002
        %v2578 = vmin.f32 %v2577, %v2003
        %2579 = vmin.xlane.f32.xlu0 %v2578
        %v2580 = vpop.xlane.xlu0 %2579
        %v2581 = vmin.f32 %v2004, %v2005
        %v2582 = vmin.f32 %v2581, %v2006
        %v2583 = vmin.f32 %v2582, %v2007
        %2584 = vmin.xlane.f32.xlu0 %v2583
        %v2585 = vpop.xlane.xlu0 %2584
        %v2586 = vmin.f32 %v2008, %v2009
        %v2587 = vmin.f32 %v2586, %v2010
        %v2588 = vmin.f32 %v2587, %v2011
        %2589 = vmin.xlane.f32.xlu0 %v2588
        %v2590 = vpop.xlane.xlu0 %2589
        %v2591 = vmin.f32 %v2012, %v2013
        %v2592 = vmin.f32 %v2591, %v2014
        %v2593 = vmin.f32 %v2592, %v2015
        %2594 = vmin.xlane.f32.xlu0 %v2593
        %v2595 = vpop.xlane.xlu0 %2594
        %v2596 = vmin.f32 %v2016, %v2017
        %v2597 = vmin.f32 %v2596, %v2018
        %v2598 = vmin.f32 %v2597, %v2019
        %2599 = vmin.xlane.f32.xlu0 %v2598
        %v2600 = vpop.xlane.xlu0 %2599
        %v2601 = vmin.f32 %v2020, %v2021
        %v2602 = vmin.f32 %v2601, %v2022
        %v2603 = vmin.f32 %v2602, %v2023
        %2604 = vmin.xlane.f32.xlu0 %v2603
        %v2605 = vpop.xlane.xlu0 %2604
        %v2606 = vmin.f32 %v2024, %v2025
        %v2607 = vmin.f32 %v2606, %v2026
        %v2608 = vmin.f32 %v2607, %v2027
        %2609 = vmin.xlane.f32.xlu0 %v2608
        %v2610 = vpop.xlane.xlu0 %2609
        %v2611 = vmin.f32 %v2028, %v2029
        %v2612 = vmin.f32 %v2611, %v2030
        %v2613 = vmin.f32 %v2612, %v2031
        %2614 = vmin.xlane.f32.xlu0 %v2613
        %v2615 = vpop.xlane.xlu0 %2614
        %v2616 = vmin.f32 %v2032, %v2033
        %v2617 = vmin.f32 %v2616, %v2034
        %v2618 = vmin.f32 %v2617, %v2035
        %2619 = vmin.xlane.f32.xlu0 %v2618
        %v2620 = vpop.xlane.xlu0 %2619
        %v2621 = vmin.f32 %v2036, %v2037
        %v2622 = vmin.f32 %v2621, %v2038
        %v2623 = vmin.f32 %v2622, %v2039
        %2624 = vmin.xlane.f32.xlu0 %v2623
        %v2625 = vpop.xlane.xlu0 %2624
        %v2626 = vmin.f32 %v2040, %v2041
        %v2627 = vmin.f32 %v2626, %v2042
        %v2628 = vmin.f32 %v2627, %v2043
        %2629 = vmin.xlane.f32.xlu0 %v2628
        %v2630 = vpop.xlane.xlu0 %2629
        %v2631 = vmin.f32 %v2044, %v2045
        %v2632 = vmin.f32 %v2631, %v2046
        %v2633 = vmin.f32 %v2632, %v2047
        %2634 = vmin.xlane.f32.xlu0 %v2633
        %v2635 = vpop.xlane.xlu0 %2634
        %v2636 = vmin.f32 %v2048, %v2049
        %v2637 = vmin.f32 %v2636, %v2050
        %v2638 = vmin.f32 %v2637, %v2051
        %2639 = vmin.xlane.f32.xlu0 %v2638
        %v2640 = vpop.xlane.xlu0 %2639
        %v2641 = vmin.f32 %v2052, %v2053
        %v2642 = vmin.f32 %v2641, %v2054
        %v2643 = vmin.f32 %v2642, %v2055
        %2644 = vmin.xlane.f32.xlu0 %v2643
        %v2645 = vpop.xlane.xlu0 %2644
        %v2646 = vmin.f32 %v2056, %v2057
        %v2647 = vmin.f32 %v2646, %v2058
        %v2648 = vmin.f32 %v2647, %v2059
        %2649 = vmin.xlane.f32.xlu0 %v2648
        %v2650 = vpop.xlane.xlu0 %2649
        %v2651 = vmin.f32 %v2060, %v2061
        %v2652 = vmin.f32 %v2651, %v2062
        %v2653 = vmin.f32 %v2652, %v2063
        %2654 = vmin.xlane.f32.xlu0 %v2653
        %v2655 = vpop.xlane.xlu0 %2654
        %v2656 = vmin.f32 %v2064, %v2065
        %v2657 = vmin.f32 %v2656, %v2066
        %v2658 = vmin.f32 %v2657, %v2067
        %2659 = vmin.xlane.f32.xlu0 %v2658
        %v2660 = vpop.xlane.xlu0 %2659
        %v2661 = vmin.f32 %v2068, %v2069
        %v2662 = vmin.f32 %v2661, %v2070
        %v2663 = vmin.f32 %v2662, %v2071
        %2664 = vmin.xlane.f32.xlu0 %v2663
        %v2665 = vpop.xlane.xlu0 %2664
        %v2666 = vmin.f32 %v2072, %v2073
        %v2667 = vmin.f32 %v2666, %v2074
        %v2668 = vmin.f32 %v2667, %v2075
        %2669 = vmin.xlane.f32.xlu0 %v2668
        %v2670 = vpop.xlane.xlu0 %2669
        %v2671 = vmin.f32 %v2076, %v2077
        %v2672 = vmin.f32 %v2671, %v2078
        %v2673 = vmin.f32 %v2672, %v2079
        %2674 = vmin.xlane.f32.xlu0 %v2673
        %v2675 = vpop.xlane.xlu0 %2674
        %v2676 = vlaneseq
        %v2677 = vshrl.u32 %v2676, 7
        %v2678 = vadd.s32 %v2677, 8
        %v2679 = vadd.s32 %v2677, 16
        %v2680 = vadd.s32 %v2677, 24
        %v2681 = vadd.s32 %v2677, 32
        %v2682 = vadd.s32 %v2677, 40
        %v2683 = vadd.s32 %v2677, 48
        %v2684 = vadd.s32 %v2677, 56
        %v2685 = vadd.s32 %v2677, 64
        %v2686 = vadd.s32 %v2677, 72
        %v2687 = vadd.s32 %v2677, 80
        %v2688 = vadd.s32 %v2677, 88
        %v2689 = vadd.s32 %v2677, 96
        %v2690 = vadd.s32 %v2677, 104
        %v2691 = vadd.s32 %v2677, 112
        %v2692 = vadd.s32 %v2677, 120
        %v2693 = vadd.s32 %v2677, 128
        %v2694 = vadd.s32 %v2677, 136
        %v2695 = vadd.s32 %v2677, 144
        %v2696 = vadd.s32 %v2677, 152
        %v2697 = vadd.s32 %v2677, 160
        %v2698 = vadd.s32 %v2677, 168
        %v2699 = vadd.s32 %v2677, 176
        %v2700 = vadd.s32 %v2677, 184
        %v2701 = vadd.s32 %v2677, 192
        %v2702 = vadd.s32 %v2677, 200
        %v2703 = vadd.s32 %v2677, 208
        %v2704 = vadd.s32 %v2677, 216
        %v2705 = vadd.s32 %v2677, 224
        %v2706 = vadd.s32 %v2677, 232
        %v2707 = vadd.s32 %v2677, 240
        %v2708 = vadd.s32 %v2677, 248
        %v2709 = vadd.s32 %v2677, 256
        %v2710 = vadd.s32 %v2677, 264
        %v2711 = vadd.s32 %v2677, 272
        %v2712 = vadd.s32 %v2677, 280
        %v2713 = vadd.s32 %v2677, 288
        %v2714 = vadd.s32 %v2677, 296
        %v2715 = vadd.s32 %v2677, 304
        %v2716 = vadd.s32 %v2677, 312
        %v2717 = vadd.s32 %v2677, 320
        %v2718 = vadd.s32 %v2677, 328
        %v2719 = vadd.s32 %v2677, 336
        %v2720 = vadd.s32 %v2677, 344
        %v2721 = vadd.s32 %v2677, 352
        %v2722 = vadd.s32 %v2677, 360
        %v2723 = vadd.s32 %v2677, 368
        %v2724 = vadd.s32 %v2677, 376
        %v2725 = vadd.s32 %v2677, 384
        %v2726 = vadd.s32 %v2677, 392
        %v2727 = vadd.s32 %v2677, 400
        %v2728 = vadd.s32 %v2677, 408
        %v2729 = vadd.s32 %v2677, 416
        %v2730 = vadd.s32 %v2677, 424
        %v2731 = vadd.s32 %v2677, 432
        %v2732 = vadd.s32 %v2677, 440
        %v2733 = vadd.s32 %v2677, 448
        %v2734 = vadd.s32 %v2677, 456
        %v2735 = vadd.s32 %v2677, 464
        %v2736 = vadd.s32 %v2677, 472
        %v2737 = vadd.s32 %v2677, 480
        %v2738 = vadd.s32 %v2677, 488
        %v2739 = vadd.s32 %v2677, 496
        %v2740 = vadd.s32 %v2677, 504
        %s2741 = smul.u32 %s26, 512
        %s2742 = ssub.s32 450, %s2741
        %s2743 = smul.u32 %s644, 512
        %s2744 = ssub.s32 300, %s2743
        %s2745 = scalar_select %p641, %s2742, %s2744
        %v2746 = vstv %s2745
        %vm2747 = vcmp.lt.s32.totalorder %v2677, %v2746
        %vm2748 = vcmp.lt.s32.totalorder %v2678, %v2746
        %vm2749 = vcmp.lt.s32.totalorder %v2679, %v2746
        %vm2750 = vcmp.lt.s32.totalorder %v2680, %v2746
        %vm2751 = vcmp.lt.s32.totalorder %v2681, %v2746
        %vm2752 = vcmp.lt.s32.totalorder %v2682, %v2746
        %vm2753 = vcmp.lt.s32.totalorder %v2683, %v2746
        %vm2754 = vcmp.lt.s32.totalorder %v2684, %v2746
        %vm2755 = vcmp.lt.s32.totalorder %v2685, %v2746
        %vm2756 = vcmp.lt.s32.totalorder %v2686, %v2746
        %vm2757 = vcmp.lt.s32.totalorder %v2687, %v2746
        %vm2758 = vcmp.lt.s32.totalorder %v2688, %v2746
        %vm2759 = vcmp.lt.s32.totalorder %v2689, %v2746
        %vm2760 = vcmp.lt.s32.totalorder %v2690, %v2746
        %vm2761 = vcmp.lt.s32.totalorder %v2691, %v2746
        %vm2762 = vcmp.lt.s32.totalorder %v2692, %v2746
        %vm2763 = vcmp.lt.s32.totalorder %v2693, %v2746
        %vm2764 = vcmp.lt.s32.totalorder %v2694, %v2746
        %vm2765 = vcmp.lt.s32.totalorder %v2695, %v2746
        %vm2766 = vcmp.lt.s32.totalorder %v2696, %v2746
        %vm2767 = vcmp.lt.s32.totalorder %v2697, %v2746
        %vm2768 = vcmp.lt.s32.totalorder %v2698, %v2746
        %vm2769 = vcmp.lt.s32.totalorder %v2699, %v2746
        %vm2770 = vcmp.lt.s32.totalorder %v2700, %v2746
        %vm2771 = vcmp.lt.s32.totalorder %v2701, %v2746
        %vm2772 = vcmp.lt.s32.totalorder %v2702, %v2746
        %vm2773 = vcmp.lt.s32.totalorder %v2703, %v2746
        %vm2774 = vcmp.lt.s32.totalorder %v2704, %v2746
        %vm2775 = vcmp.lt.s32.totalorder %v2705, %v2746
        %vm2776 = vcmp.lt.s32.totalorder %v2706, %v2746
        %vm2777 = vcmp.lt.s32.totalorder %v2707, %v2746
        %vm2778 = vcmp.lt.s32.totalorder %v2708, %v2746
        %vm2779 = vcmp.lt.s32.totalorder %v2709, %v2746
        %vm2780 = vcmp.lt.s32.totalorder %v2710, %v2746
        %vm2781 = vcmp.lt.s32.totalorder %v2711, %v2746
        %vm2782 = vcmp.lt.s32.totalorder %v2712, %v2746
        %vm2783 = vcmp.lt.s32.totalorder %v2713, %v2746
        %vm2784 = vcmp.lt.s32.totalorder %v2714, %v2746
        %vm2785 = vcmp.lt.s32.totalorder %v2715, %v2746
        %vm2786 = vcmp.lt.s32.totalorder %v2716, %v2746
        %vm2787 = vcmp.lt.s32.totalorder %v2717, %v2746
        %vm2788 = vcmp.lt.s32.totalorder %v2718, %v2746
        %vm2789 = vcmp.lt.s32.totalorder %v2719, %v2746
        %vm2790 = vcmp.lt.s32.totalorder %v2720, %v2746
        %vm2791 = vcmp.lt.s32.totalorder %v2721, %v2746
        %vm2792 = vcmp.lt.s32.totalorder %v2722, %v2746
        %vm2793 = vcmp.lt.s32.totalorder %v2723, %v2746
        %vm2794 = vcmp.lt.s32.totalorder %v2724, %v2746
        %vm2795 = vcmp.lt.s32.totalorder %v2725, %v2746
        %vm2796 = vcmp.lt.s32.totalorder %v2726, %v2746
        %vm2797 = vcmp.lt.s32.totalorder %v2727, %v2746
        %vm2798 = vcmp.lt.s32.totalorder %v2728, %v2746
        %vm2799 = vcmp.lt.s32.totalorder %v2729, %v2746
        %vm2800 = vcmp.lt.s32.totalorder %v2730, %v2746
        %vm2801 = vcmp.lt.s32.totalorder %v2731, %v2746
        %vm2802 = vcmp.lt.s32.totalorder %v2732, %v2746
        %vm2803 = vcmp.lt.s32.totalorder %v2733, %v2746
        %vm2804 = vcmp.lt.s32.totalorder %v2734, %v2746
        %vm2805 = vcmp.lt.s32.totalorder %v2735, %v2746
        %vm2806 = vcmp.lt.s32.totalorder %v2736, %v2746
        %vm2807 = vcmp.lt.s32.totalorder %v2737, %v2746
        %vm2808 = vcmp.lt.s32.totalorder %v2738, %v2746
        %vm2809 = vcmp.lt.s32.totalorder %v2739, %v2746
        %vm2810 = vcmp.lt.s32.totalorder %v2740, %v2746
        %v2811 = vsel %vm2747, %v2360, 0.0
        %v2812 = vsel %vm2748, %v2365, 0.0
        %v2813 = vsel %vm2749, %v2370, 0.0
        %v2814 = vsel %vm2750, %v2375, 0.0
        %v2815 = vsel %vm2751, %v2380, 0.0
        %v2816 = vsel %vm2752, %v2385, 0.0
        %v2817 = vsel %vm2753, %v2390, 0.0
        %v2818 = vsel %vm2754, %v2395, 0.0
        %v2819 = vsel %vm2755, %v2400, 0.0
        %v2820 = vsel %vm2756, %v2405, 0.0
        %v2821 = vsel %vm2757, %v2410, 0.0
        %v2822 = vsel %vm2758, %v2415, 0.0
        %v2823 = vsel %vm2759, %v2420, 0.0
        %v2824 = vsel %vm2760, %v2425, 0.0
        %v2825 = vsel %vm2761, %v2430, 0.0
        %v2826 = vsel %vm2762, %v2435, 0.0
        %v2827 = vsel %vm2763, %v2440, 0.0
        %v2828 = vsel %vm2764, %v2445, 0.0
        %v2829 = vsel %vm2765, %v2450, 0.0
        %v2830 = vsel %vm2766, %v2455, 0.0
        %v2831 = vsel %vm2767, %v2460, 0.0
        %v2832 = vsel %vm2768, %v2465, 0.0
        %v2833 = vsel %vm2769, %v2470, 0.0
        %v2834 = vsel %vm2770, %v2475, 0.0
        %v2835 = vsel %vm2771, %v2480, 0.0
        %v2836 = vsel %vm2772, %v2485, 0.0
        %v2837 = vsel %vm2773, %v2490, 0.0
        %v2838 = vsel %vm2774, %v2495, 0.0
        %v2839 = vsel %vm2775, %v2500, 0.0
        %v2840 = vsel %vm2776, %v2505, 0.0
        %v2841 = vsel %vm2777, %v2510, 0.0
        %v2842 = vsel %vm2778, %v2515, 0.0
        %v2843 = vsel %vm2779, %v2520, 0.0
        %v2844 = vsel %vm2780, %v2525, 0.0
        %v2845 = vsel %vm2781, %v2530, 0.0
        %v2846 = vsel %vm2782, %v2535, 0.0
        %v2847 = vsel %vm2783, %v2540, 0.0
        %v2848 = vsel %vm2784, %v2545, 0.0
        %v2849 = vsel %vm2785, %v2550, 0.0
        %v2850 = vsel %vm2786, %v2555, 0.0
        %v2851 = vsel %vm2787, %v2560, 0.0
        %v2852 = vsel %vm2788, %v2565, 0.0
        %v2853 = vsel %vm2789, %v2570, 0.0
        %v2854 = vsel %vm2790, %v2575, 0.0
        %v2855 = vsel %vm2791, %v2580, 0.0
        %v2856 = vsel %vm2792, %v2585, 0.0
        %v2857 = vsel %vm2793, %v2590, 0.0
        %v2858 = vsel %vm2794, %v2595, 0.0
        %v2859 = vsel %vm2795, %v2600, 0.0
        %v2860 = vsel %vm2796, %v2605, 0.0
        %v2861 = vsel %vm2797, %v2610, 0.0
        %v2862 = vsel %vm2798, %v2615, 0.0
        %v2863 = vsel %vm2799, %v2620, 0.0
        %v2864 = vsel %vm2800, %v2625, 0.0
        %v2865 = vsel %vm2801, %v2630, 0.0
        %v2866 = vsel %vm2802, %v2635, 0.0
        %v2867 = vsel %vm2803, %v2640, 0.0
        %v2868 = vsel %vm2804, %v2645, 0.0
        %v2869 = vsel %vm2805, %v2650, 0.0
        %v2870 = vsel %vm2806, %v2655, 0.0
        %v2871 = vsel %vm2807, %v2660, 0.0
        %v2872 = vsel %vm2808, %v2665, 0.0
        %v2873 = vsel %vm2809, %v2670, 0.0
        %v2874 = vsel %vm2810, %v2675, 0.0
        %v2875 = vadd.f32 %v2811, %v2812
        %v2876 = vadd.f32 %v2875, %v2813
        %v2877 = vadd.f32 %v2876, %v2814
        %v2878 = vadd.f32 %v2877, %v2815
        %v2879 = vadd.f32 %v2878, %v2816
        %v2880 = vadd.f32 %v2879, %v2817
        %v2881 = vadd.f32 %v2880, %v2818
        %v2882 = vadd.f32 %v2881, %v2819
        %v2883 = vadd.f32 %v2882, %v2820
        %v2884 = vadd.f32 %v2883, %v2821
        %v2885 = vadd.f32 %v2884, %v2822
        %v2886 = vadd.f32 %v2885, %v2823
        %v2887 = vadd.f32 %v2886, %v2824
        %v2888 = vadd.f32 %v2887, %v2825
        %v2889 = vadd.f32 %v2888, %v2826
        %v2890 = vadd.f32 %v2889, %v2827
        %v2891 = vadd.f32 %v2890, %v2828
        %v2892 = vadd.f32 %v2891, %v2829
        %v2893 = vadd.f32 %v2892, %v2830
        %v2894 = vadd.f32 %v2893, %v2831
        %v2895 = vadd.f32 %v2894, %v2832
        %v2896 = vadd.f32 %v2895, %v2833
        %v2897 = vadd.f32 %v2896, %v2834
        %v2898 = vadd.f32 %v2897, %v2835
        %v2899 = vadd.f32 %v2898, %v2836
        %v2900 = vadd.f32 %v2899, %v2837
        %v2901 = vadd.f32 %v2900, %v2838
        %v2902 = vadd.f32 %v2901, %v2839
        %v2903 = vadd.f32 %v2902, %v2840
        %v2904 = vadd.f32 %v2903, %v2841
        %v2905 = vadd.f32 %v2904, %v2842
        %v2906 = vadd.f32 %v2905, %v2843
        %v2907 = vadd.f32 %v2906, %v2844
        %v2908 = vadd.f32 %v2907, %v2845
        %v2909 = vadd.f32 %v2908, %v2846
        %v2910 = vadd.f32 %v2909, %v2847
        %v2911 = vadd.f32 %v2910, %v2848
        %v2912 = vadd.f32 %v2911, %v2849
        %v2913 = vadd.f32 %v2912, %v2850
        %v2914 = vadd.f32 %v2913, %v2851
        %v2915 = vadd.f32 %v2914, %v2852
        %v2916 = vadd.f32 %v2915, %v2853
        %v2917 = vadd.f32 %v2916, %v2854
        %v2918 = vadd.f32 %v2917, %v2855
        %v2919 = vadd.f32 %v2918, %v2856
        %v2920 = vadd.f32 %v2919, %v2857
        %v2921 = vadd.f32 %v2920, %v2858
        %v2922 = vadd.f32 %v2921, %v2859
        %v2923 = vadd.f32 %v2922, %v2860
        %v2924 = vadd.f32 %v2923, %v2861
        %v2925 = vadd.f32 %v2924, %v2862
        %v2926 = vadd.f32 %v2925, %v2863
        %v2927 = vadd.f32 %v2926, %v2864
        %v2928 = vadd.f32 %v2927, %v2865
        %v2929 = vadd.f32 %v2928, %v2866
        %v2930 = vadd.f32 %v2929, %v2867
        %v2931 = vadd.f32 %v2930, %v2868
        %v2932 = vadd.f32 %v2931, %v2869
        %v2933 = vadd.f32 %v2932, %v2870
        %v2934 = vadd.f32 %v2933, %v2871
        %v2935 = vadd.f32 %v2934, %v2872
        %v2936 = vadd.f32 %v2935, %v2873
        %v2937 = vadd.f32 %v2936, %v2874
        %v2938 = vrot.slane %v2937, 4
        %v2939 = vadd.f32 %v2937, %v2938
        %v2940 = vrot.slane %v2939, 2
        %v2941 = vadd.f32 %v2939, %v2940
        %v2942 = vrot.slane %v2941, 1
        %v2943 = vadd.f32 %v2941, %v2942
        // Predicated region
        $region45: #{tpu_custom_call.1} parent=35 // pred_check
          %p2944 = pneg %p641
        $region46: #{tpu_custom_call.1} parent=35 // pred_check_branch
          %2946 = sbr.rel (%p2944) target = $region48
        $region47: #{tpu_custom_call.1} parent=35 // pred_region
          %v2947 = vld [vmem:[#allocation4] sm:$0xf]
          %v2952 = vrot.slane %v2217, 7
          %v2953 = vrot.slane %v2286, 6
          %v2954 = vrot.slane %v2355, 5
          %vm2955 = vcmask 1040384
          %v2956 = vsel %vm2955, %v2148, %v2952
          %vm2957 = vcmask 1042434
          %v2958 = vsel %vm2957, %v2953, %v2954
          %vm2959 = vcmask 1041408
          %v2960 = vsel %vm2959, %v2956, %v2958
          %v2962 = vmin.f32 %v2947, %v2960
          %v2963 = vlaneseq
          %vm2964 = vcmp.ge.s32.totalorder %v2963, 0
          %vm2965 = vcmp.lt.s32.totalorder %v2963, 512
          %vm2966 = vmand %vm2964, %vm2965
          %2967 = vst.msk [vmem:[#allocation4] sm:$0xf] %vm2966, %v2962
          %v2968 = vld [vmem:[#allocation6] sm:$0x1]
          %v2969 = vadd.f32 %v2968, %v2943
          %vm2970 = vcmask 0
          %2971 = vst.msk [vmem:[#allocation6] sm:$0x1] %vm2970, %v2969
        $region48: #{tpu_custom_call.1} parent=35 // pred_fallthru
          _
        %p2972 = scmp.ge.s32.totalorder %s26, 1
        // Predicated region
        $region49: #{tpu_custom_call.1} parent=35 // pred_check
          %p2973 = pneg %p2972
        $region50: #{tpu_custom_call.1} parent=35 // pred_check_branch
          %2975 = sbr.rel (%p2973) target = $region52
        $region51: #{tpu_custom_call.1} parent=35 // pred_region
          %v2976 = vld [vmem:[#allocation5] sm:$0xf]
          %v2981 = vrot.slane %v2217, 7
          %v2982 = vrot.slane %v2286, 6
          %v2983 = vrot.slane %v2355, 5
          %vm2984 = vcmask 1040384
          %v2985 = vsel %vm2984, %v2148, %v2981
          %vm2986 = vcmask 1042434
          %v2987 = vsel %vm2986, %v2982, %v2983
          %vm2988 = vcmask 1041408
          %v2989 = vsel %vm2988, %v2985, %v2987
          %v2991 = vmin.f32 %v2976, %v2989
          %v2992 = vlaneseq
          %vm2993 = vcmp.ge.s32.totalorder %v2992, 0
          %vm2994 = vcmp.lt.s32.totalorder %v2992, 512
          %vm2995 = vmand %vm2993, %vm2994
          %2996 = vst.msk [vmem:[#allocation5] sm:$0xf] %vm2995, %v2991
          %v2997 = vld [vmem:[#allocation7] sm:$0x1]
          %v2998 = vadd.f32 %v2997, %v2943
          %vm2999 = vcmask 0
          %3000 = vst.msk [vmem:[#allocation7] sm:$0x1] %vm2999, %v2998
        $region52: #{tpu_custom_call.1} parent=35 // pred_fallthru
          _
        %p3001 = scmp.eq.s32.totalorder %s26, 1
        // Predicated region
        $region53: #{tpu_custom_call.1} parent=35 // pred_check
          %p3002 = pneg %p3001
        $region54: #{tpu_custom_call.1} parent=35 // pred_check_branch
          %3004 = sbr.rel (%p3002) target = $region56
        $region55: #{tpu_custom_call.1} parent=35 // pred_region
          %v3005 = vlaneseq
          %v3006 = vand.u32 %v3005, 127
          %v3007 = vadd.s32 %v3006, 128
          %v3008 = vadd.s32 %v3006, 256
          %v3009 = vadd.s32 %v3006, 384
          %vm3010 = vcmp.lt.s32.totalorder %v3006, 300
          %vm3011 = vcmp.lt.s32.totalorder %v3007, 300
          %vm3012 = vcmp.lt.s32.totalorder %v3008, 300
          %vm3013 = vcmp.lt.s32.totalorder %v3009, 300
          %v3014 = vld [vmem:[#allocation4] sm:$0xf]
          %v3016 = vperm.slane %v3014, 0
          %v3017 = vperm.slane %v3014, 1
          %v3018 = vperm.slane %v3014, 2
          %v3019 = vperm.slane %v3014, 3
          %v3024 = vsel %vm3010, %v3016, 0.0
          %v3025 = vsel %vm3011, %v3017, 0.0
          %v3026 = vsel %vm3012, %v3018, 0.0
          %v3027 = vsel %vm3013, %v3019, 0.0
          %vm3028 = vcmask 1040384
          %v3029 = vsel %vm3028, %v3024, 0.0
          %v3030 = vsel %vm3028, %v3025, 0.0
          %v3031 = vadd.f32 %v3029, %v3030
          %v3032 = vsel %vm3028, %v3026, 0.0
          %v3033 = vadd.f32 %v3031, %v3032
          %v3034 = vsel %vm3028, %v3027, 0.0
          %v3035 = vadd.f32 %v3033, %v3034
          %3036 = vadd.xlane.f32.xlu0 %v3035
          %v3037 = vpop.xlane.xlu0 %3036
          %v3038 = vld [vmem:[#allocation5] sm:$0xf]
          %v3040 = vperm.slane %v3038, 0
          %v3041 = vperm.slane %v3038, 1
          %v3042 = vperm.slane %v3038, 2
          %v3043 = vperm.slane %v3038, 3
          %v3048 = vsel %vm3010, %v3040, 0.0
          %v3049 = vsel %vm3011, %v3041, 0.0
          %v3050 = vsel %vm3012, %v3042, 0.0
          %v3051 = vsel %vm3013, %v3043, 0.0
          %v3052 = vsel %vm3028, %v3048, 0.0
          %v3053 = vsel %vm3028, %v3049, 0.0
          %v3054 = vadd.f32 %v3052, %v3053
          %v3055 = vsel %vm3028, %v3050, 0.0
          %v3056 = vadd.f32 %v3054, %v3055
          %v3057 = vsel %vm3028, %v3051, 0.0
          %v3058 = vadd.f32 %v3056, %v3057
          %3059 = vadd.xlane.f32.xlu0 %v3058
          %v3060 = vpop.xlane.xlu0 %3059
          %v3061 = vmul.f32 %v3037, 0.0033333334
          %v3062 = vld [vmem:[#allocation6] sm:$0x1]
          %v3063 = vmul.f32 %v3062, 0.0022222223
          %v3064 = vadd.f32 %v3061, %v3063
          %v3065 = vmul.f32 %v3060, 0.0033333334
          %v3066 = vld [vmem:[#allocation7] sm:$0x1]
          %v3067 = vmul.f32 %v3066, 0.0033333334
          %v3068 = vadd.f32 %v3065, %v3067
          %v3069 = vld [vmem:[%s281] sm:$0xff]
          %v3070 = vld [vmem:[%s285] sm:$0xff]
          %v3071 = vsub.f32 %v3069, %v3070
          %v3072 = vmul.f32 %v3071, %v3071
          %vm3073 = vcmp.lt.s32.totalorder %v2677, 3
          %vm3074 = vcmp.lt.s32.totalorder %v3006, 3
          %vm3075 = vmand %vm3073, %vm3074
          %v3076 = vsel %vm3075, %v3072, 0.0
          %vm3077 = vcmp.eq.s32.totalorder %v3006, 3
          %vm3078 = vmand %vm3073, %vm3077
          %v3079 = vsel %vm3078, %v3072, 0.0
          %vm3080 = vcmask 31744
          %v3081 = vsel %vm3080, %v3076, 0.0
          %3082 = vadd.xlane.f32.xlu0 %v3081
          %v3083 = vpop.xlane.xlu0 %3082
          %v3084 = vrot.slane %v3083, 4
          %v3085 = vadd.f32 %v3083, %v3084
          %v3086 = vrot.slane %v3085, 2
          %v3087 = vadd.f32 %v3085, %v3086
          %v3088 = vrot.slane %v3087, 1
          %v3089 = vadd.f32 %v3087, %v3088
          %v3090 = vrsqrt.pop %v3089
          %v3091 = vmul.f32 %v3090, %v3089
          %v3092 = vmul.f32 %v3091, %v3090
          %v3093 = vmul.f32 0.5, %v3092
          %v3094 = vsub.f32 1.5, %v3093
          %v3095 = vmul.f32 %v3090, %v3094
          %v3096 = vmul.f32 %v3089, %v3095
          %vm3097 = vcmp.eq.f32.partialorder %v3089, inf
          %v3098 = vsel %vm3097, %v3089, %v3096
          %vm3099 = vcmp.eq.f32.partialorder %v3089, 0.0
          %v3100 = vand.u32 %v3089, 2147483648
          %v3101 = vsel %vm3099, %v3100, %v3098
          %v3102 = vsel %vm3080, %v3079, 0.0
          %3103 = vadd.xlane.f32.xlu0 %v3102
          %v3104 = vpop.xlane.xlu0 %3103
          %v3105 = vrot.slane %v3104, 4
          %v3106 = vadd.f32 %v3104, %v3105
          %v3107 = vrot.slane %v3106, 2
          %v3108 = vadd.f32 %v3106, %v3107
          %v3109 = vrot.slane %v3108, 1
          %v3110 = vadd.f32 %v3108, %v3109
          %v3111 = vrsqrt.pop %v3110
          %v3112 = vmul.f32 %v3111, %v3110
          %v3113 = vmul.f32 %v3112, %v3111
          %v3114 = vmul.f32 0.5, %v3113
          %v3115 = vsub.f32 1.5, %v3114
          %v3116 = vmul.f32 %v3111, %v3115
          %v3117 = vmul.f32 %v3110, %v3116
          %vm3118 = vcmp.eq.f32.partialorder %v3110, inf
          %v3119 = vsel %vm3118, %v3110, %v3117
          %vm3120 = vcmp.eq.f32.partialorder %v3110, 0.0
          %v3121 = vand.u32 %v3110, 2147483648
          %v3122 = vsel %vm3120, %v3121, %v3119
          %v3123 = vadd.f32 %v3101, %v3122
          %v3124 = vadd.f32 %v3064, %v3123
          %v3125 = vmul.f32 %v3068, 0.5
          %v3126 = vadd.f32 %v3124, %v3125
          %vm3127 = vcmp.eq.s32.totalorder %v3006, 0
          %3129 = vset.pattern.permute.xlu0 0
          %3130 = vperm.xlu0 %3129, %v3126
          %v3131 = vpop.permute.xlu0 %3130
          %v3133 = vsel %vm3127, %v3131, 0.0
          %vm3134 = vcmp.eq.s32.totalorder %v3006, 1
          %3136 = vset.pattern.permute.xlu0 0
          %3137 = vperm.xlu0 %3136, %v3064
          %v3138 = vpop.permute.xlu0 %3137
          %v3140 = vsel %vm3134, %v3138, 0.0
          %v3141 = vadd.f32 %v3133, %v3140
          %vm3142 = vcmp.eq.s32.totalorder %v3006, 2
          %v3143 = vsel %vm3142, %v3123, 0.0
          %v3144 = vadd.f32 %v3141, %v3143
          %3146 = vset.pattern.permute.xlu0 0
          %3147 = vperm.xlu0 %3146, %v3068
          %v3148 = vpop.permute.xlu0 %3147
          %v3150 = vsel %vm3077, %v3148, 0.0
          %v3151 = vadd.f32 %v3144, %v3150
          %vm3152 = vcmask 57344
          %3153 = vst.msk [vmem:[%s277] sm:$0x1] %vm3152, %v3151
        $region56: #{tpu_custom_call.1} parent=35 // pred_fallthru
          _
        %s3154 = sand.u32 %s151, 1
        %s3155 = scalar_lea.sflag [#allocation10], %s3154
        %s3156 = sand.u32 %s151, 1
        %s3157 = scalar_lea.vmem [#allocation11], %s3156
        // Predicated region
        $region57: #{tpu_custom_call.1} parent=35 // pred_check
          %p3158 = pneg %p161
        $region58: #{tpu_custom_call.1} parent=35 // pred_check_branch
          %3160 = sbr.rel (%p3158) target = $region60
        $region59: #{tpu_custom_call.1} parent=35 // pred_region
          %3162 = vsyncadd %s3155, 0
          %s3163 = scalar_lea.hbm %s4, %s25
          %s3165 = sshll.u32 %s3157, 4
          %s3166 = int_to_ptr.vmem [resolvable:$true] %s3165
          %s3167 = sshll.u32 %s3163, 4
          %s3168 = int_to_ptr.hbm [resolvable:$true] %s3167
          %3170 = dma.vmem_to_hbm [thread:$0]  %s3166, 16, %s3168, %s3155
        $region60: #{tpu_custom_call.1} parent=35 // pred_fallthru
          _
      $region36: #{tpu_custom_call.1} parent=5 // pred_fallthru
        _
      %p3171 = scmp.le.s32.totalorder 2, %s16
      // Predicated region
      $region61: #{tpu_custom_call.1} parent=5 // pred_check
        %p3172 = pneg %p3171
      $region62: #{tpu_custom_call.1} parent=5 // pred_check_branch
        %3174 = sbr.rel (%p3172) target = $region64
      $region63: #{tpu_custom_call.1} parent=5 // pred_region
        %s3175 = ssub.s32 %s16, 2
        // Predicated region
        $region65: #{tpu_custom_call.1} parent=63 // pred_check
          %p3176 = pneg %p167
        $region66: #{tpu_custom_call.1} parent=63 // pred_check_branch
          %3178 = sbr.rel (%p3176) target = $region68
        $region67: #{tpu_custom_call.1} parent=63 // pred_region
          %s3179 = sand.u32 %s152, 1
          %s3180 = scalar_lea.sflag [#allocation10], %s3179
          %s3181 = sand.u32 %s152, 1
          %s3182 = scalar_lea.vmem [#allocation11], %s3181
          %3184 = dma.done %s3180, 16
        $region68: #{tpu_custom_call.1} parent=63 // pred_fallthru
          _
      $region64: #{tpu_custom_call.1} parent=5 // pred_fallthru
        _
    $region6: #{tpu_custom_call.1} parent=1 // loop_footer
      %s20 = sadd.s32 1, %s16
    $region7: #{tpu_custom_call.1} parent=1 // loop_footer_branch
      %15 = sbr.rel target = $region3
    $region8: #{tpu_custom_call.1} parent=1 // loop_exit
      _
    %3185 = vsyncpa [#allocation9], 1
    %s3186 = scalar_lea.sflag [#allocation9], 1
    %3187 = vsyncpa %s3186, 1
    %3188 = vsyncpa [#allocation10], 1
    %s3189 = scalar_lea.sflag [#allocation10], 1
    %3190 = vsyncpa %s3189, 1

</llo_original>
